<compile_context>
chip_gen: v7x
topology: tpu7x:2x2x1
jax: 0.10.0
libtpu: 0.0.40
codegen_flags: <defaults>
</compile_context>

<pallas_src>
from functools import partial

import jax
import jax.numpy as jnp
from jax.experimental import pallas as pl
from jax.experimental.pallas import tpu as pltpu


# ------------------------------ Pallas kernel -------------------------------


def _im2col_3x3(pad_ref, col_ref, H, W, C):
    """Scatter the 9 shifted 3x3 taps of a zero-padded (H+2, W+2, C) scratch
    into an (H*W, 9*C) im2col scratch (static slices, unrolled)."""
    for di in range(3):
        for dj in range(3):
            t = di * 3 + dj
            patch = pad_ref[di:di + H, dj:dj + W, :].reshape(H * W, C)
            col_ref[:, t * C:(t + 1) * C] = patch


def _basic_block_kernel(
    x_ref, w1_ref, b1_ref, w2_ref, b2_ref, o_ref,
    xpad, ypad, col1, col2, *, H, W, Cin, Cout,
):
    # ---- build zero halo for the input inside VMEM (no host pad) ----
    xpad[...] = jnp.zeros_like(xpad)
    xpad[1:H + 1, 1:W + 1, :] = x_ref[0]

    # ---- conv1 (+ folded bn1) + relu : single im2col matmul, K = 9*Cin ----
    _im2col_3x3(xpad, col1, H, W, Cin)
    y1 = jnp.dot(col1[...], w1_ref[...], preferred_element_type=jnp.float32)
    y1 = jnp.maximum(y1 + b1_ref[...], 0.0)               # (H*W, Cout)

    # ---- conv2 (+ folded bn2) : intermediate stays in VMEM ----
    ypad[...] = jnp.zeros_like(ypad)
    ypad[1:H + 1, 1:W + 1, :] = y1.reshape(H, W, Cout)
    _im2col_3x3(ypad, col2, H, W, Cout)
    y2 = jnp.dot(col2[...], w2_ref[...], preferred_element_type=jnp.float32)
    y2 = y2 + b2_ref[...]

    # ---- residual add (x already resident in VMEM) + final relu ----
    out = y2.reshape(H, W, Cout) + x_ref[0]
    o_ref[0] = jnp.maximum(out, 0.0)


# ------------------------------ host wrappers --------------------------------


def fused_basic_block(x_nhwc, w1_col, b1, w2_col, b2):
    """Fused conv3x3+bn1+relu+conv3x3+bn2+add+relu in one pallas_call."""
    N, H, W, Cin = x_nhwc.shape
    Cout = w1_col.shape[-1]
    assert Cin == Cout, "BasicBlock(stride=1, downsample=None) needs Cin == Cout"

    flops = 2 * N * H * W * 9 * (Cin * Cout + Cout * Cout)
    bytes_accessed = 4 * (x_nhwc.size + w1_col.size + w2_col.size
                          + b1.size + b2.size + N * H * W * Cout)

    kernel = partial(_basic_block_kernel, H=H, W=W, Cin=Cin, Cout=Cout)
    return pl.pallas_call(
        kernel,
        out_shape=jax.ShapeDtypeStruct((N, H, W, Cout), jnp.float32),
        grid=(N,),
        in_specs=[
            pl.BlockSpec((1, H, W, Cin), lambda n: (n, 0, 0, 0)),   # x (+residual)
            pl.BlockSpec((9 * Cin, Cout), lambda n: (0, 0)),        # w1 (im2col, bn-scaled)
            pl.BlockSpec((1, Cout), lambda n: (0, 0)),              # bn1 bias
            pl.BlockSpec((9 * Cout, Cout), lambda n: (0, 0)),       # w2 (im2col, bn-scaled)
            pl.BlockSpec((1, Cout), lambda n: (0, 0)),              # bn2 bias
        ],
        out_specs=pl.BlockSpec((1, H, W, Cout), lambda n: (n, 0, 0, 0)),
        scratch_shapes=[
            pltpu.VMEM((H + 2, W + 2, Cin), jnp.float32),    # padded input
            pltpu.VMEM((H + 2, W + 2, Cout), jnp.float32),   # padded mid activation
            pltpu.VMEM((H * W, 9 * Cin), jnp.float32),       # im2col for conv1
            pltpu.VMEM((H * W, 9 * Cout), jnp.float32),      # im2col for conv2
        ],
        compiler_params=pltpu.CompilerParams(dimension_semantics=("parallel",)),
        cost_estimate=pl.CostEstimate(
            flops=flops, transcendentals=0, bytes_accessed=bytes_accessed),
    )(x_nhwc, w1_col, b1, w2_col, b2)


def _fold_bn(gamma, beta, mean, var, eps=1e-5):
    scale = gamma / jnp.sqrt(var + eps)
    bias = beta - mean * scale
    return scale, bias


def basic_block_forward(x_nchw, p):
    """BasicBlock.forward (stride=1, downsample=None). Input/output are NCHW."""
    x = jnp.transpose(x_nchw, (0, 2, 3, 1)).astype(jnp.float32)   # -> NHWC
    Cin, Cout = p["w1"].shape[2], p["w1"].shape[3]
    s1, b1 = _fold_bn(p["bn1_g"], p["bn1_b"], p["bn1_m"], p["bn1_v"])
    s2, b2 = _fold_bn(p["bn2_g"], p["bn2_b"], p["bn2_m"], p["bn2_v"])
    # Fold BN scale into conv weights (per output channel) + reshape to im2col.
    w1_col = (p["w1"] * s1).reshape(9 * Cin, Cout)
    w2_col = (p["w2"] * s2).reshape(9 * Cout, Cout)
    out = fused_basic_block(x, w1_col, b1.reshape(1, Cout),
                            w2_col, b2.reshape(1, Cout))
    return jnp.transpose(out, (0, 3, 1, 2))                       # -> NCHW


# ----------------------------- pure-JAX reference ----------------------------


def _ref_forward(x_nchw, p):
    x = jnp.transpose(x_nchw, (0, 2, 3, 1)).astype(jnp.float32)

    def conv(a, w):
        return jax.lax.conv_general_dilated(
            a, w, (1, 1), "SAME", dimension_numbers=("NHWC", "HWIO", "NHWC")
        )

    s1, b1 = _fold_bn(p["bn1_g"], p["bn1_b"], p["bn1_m"], p["bn1_v"])
    s2, b2 = _fold_bn(p["bn2_g"], p["bn2_b"], p["bn2_m"], p["bn2_v"])
    out = jnp.maximum(conv(x, p["w1"]) * s1 + b1, 0.0)
    out = jnp.maximum(conv(out, p["w2"]) * s2 + b2 + x, 0.0)
    return jnp.transpose(out, (0, 3, 1, 2))


# ----------------------------------- main -------------------------------------


if __name__ == "__main__":
    key = jax.random.PRNGKey(0)
    N, C, H, W = 2, 4, 16, 16          # inplanes = planes = 4, stride = 1
    k = jax.random.split(key, 10)

    x = jax.random.normal(k[0], (N, C, H, W), jnp.float32)

    params = {
        # conv weights in (kh, kw, Cin, Cout), bias=False as in conv3x3
        "w1": jax.random.normal(k[1], (3, 3, C, C), jnp.float32) * 0.2,
        "w2": jax.random.normal(k[2], (3, 3, C, C), jnp.float32) * 0.2,
        # BatchNorm2d params / running stats (deterministic, inference mode)
        "bn1_g": 1.0 + 0.1 * jax.random.normal(k[3], (C,), jnp.float32),
        "bn1_b": 0.1 * jax.random.normal(k[4], (C,), jnp.float32),
        "bn1_m": 0.1 * jax.random.normal(k[5], (C,), jnp.float32),
        "bn1_v": jnp.abs(1.0 + 0.1 * jax.random.normal(k[6], (C,), jnp.float32)),
        "bn2_g": 1.0 + 0.1 * jax.random.normal(k[7], (C,), jnp.float32),
        "bn2_b": 0.1 * jax.random.normal(k[8], (C,), jnp.float32),
        "bn2_m": 0.1 * jax.random.normal(k[9], (C,), jnp.float32),
        "bn2_v": jnp.abs(1.0 + 0.05 * jax.random.normal(k[3], (C,), jnp.float32)),
    }

    out = basic_block_forward(x, params)
    out = jax.block_until_ready(out)

    ref = jax.block_until_ready(_ref_forward(x, params))
    assert out.shape == (N, C, H, W) and out.dtype == jnp.float32
    assert jnp.allclose(out, ref, rtol=1e-4, atol=1e-4), "mismatch vs reference"

    print("KERNEL_OK")
</pallas_src>

<mosaic_0001>
module attributes {stable_mosaic.version = 11 : i64} {
  func.func @_basic_block_kernel(%arg0: i32, %arg1: memref<1x16x16x4xf32, #tpu.memory_space<vmem>>, %arg2: memref<36x4xf32, #tpu.memory_space<vmem>>, %arg3: memref<1x4xf32, #tpu.memory_space<vmem>>, %arg4: memref<36x4xf32, #tpu.memory_space<vmem>>, %arg5: memref<1x4xf32, #tpu.memory_space<vmem>>, %arg6: memref<1x16x16x4xf32, #tpu.memory_space<vmem>>, %arg7: memref<18x18x4xf32, #tpu.memory_space<vmem>>, %arg8: memref<18x18x4xf32, #tpu.memory_space<vmem>>, %arg9: memref<256x36xf32, #tpu.memory_space<vmem>>, %arg10: memref<256x36xf32, #tpu.memory_space<vmem>>) attributes {dimension_semantics = [#tpu.dimension_semantics<parallel>], iteration_bounds = array<i64: 2>, scalar_prefetch = 0 : i64, scratch_operands = 4 : i64, tpu.core_type = #tpu.core_type<tc>, window_params = [{transform_indices = @transform_0, window_bounds = array<i64: 1, 16, 16, 4>}, {pipeline_mode = #tpu.pipeline_mode<synchronous>, transform_indices = @transform_1, window_bounds = array<i64: 36, 4>}, {pipeline_mode = #tpu.pipeline_mode<synchronous>, transform_indices = @transform_2, window_bounds = array<i64: 1, 4>}, {pipeline_mode = #tpu.pipeline_mode<synchronous>, transform_indices = @transform_3, window_bounds = array<i64: 36, 4>}, {pipeline_mode = #tpu.pipeline_mode<synchronous>, transform_indices = @transform_4, window_bounds = array<i64: 1, 4>}, {transform_indices = @transform_5, window_bounds = array<i64: 1, 16, 16, 4>}]} {
    %cst = arith.constant 0.000000e+00 : f32
    %0 = vector.broadcast %cst : f32 to vector<18x18x4xf32>
    %c0 = arith.constant 0 : index
    %c0_0 = arith.constant 0 : index
    %c0_1 = arith.constant 0 : index
    %1 = vector.load %arg7[%c0, %c0_0, %c0_1] : memref<18x18x4xf32, #tpu.memory_space<vmem>>, vector<18x18x4xf32>
    tpu.vector_store %arg7[%c0, %c0_0, %c0_1], %0 {strides = array<i32>} : memref<18x18x4xf32, #tpu.memory_space<vmem>>, vector<18x18x4xf32>,
    %c0_2 = arith.constant 0 : index
    %c0_3 = arith.constant 0 : index
    %c0_4 = arith.constant 0 : index
    %c0_5 = arith.constant 0 : index
    %2 = vector.load %arg1[%c0_2, %c0_3, %c0_4, %c0_5] : memref<1x16x16x4xf32, #tpu.memory_space<vmem>>, vector<1x16x16x4xf32>
    %3 = vector.shape_cast %2 : vector<1x16x16x4xf32> to vector<16x16x4xf32>
    %c1 = arith.constant 1 : index
    %c1_6 = arith.constant 1 : index
    %c0_7 = arith.constant 0 : index
    %4 = vector.load %arg7[%c1, %c1_6, %c0_7] : memref<18x18x4xf32, #tpu.memory_space<vmem>>, vector<16x16x4xf32>
    tpu.vector_store %arg7[%c1, %c1_6, %c0_7], %3 {strides = array<i32>} : memref<18x18x4xf32, #tpu.memory_space<vmem>>, vector<16x16x4xf32>,
    %c0_8 = arith.constant 0 : index
    %c0_9 = arith.constant 0 : index
    %c0_10 = arith.constant 0 : index
    %5 = vector.load %arg7[%c0_8, %c0_9, %c0_10] : memref<18x18x4xf32, #tpu.memory_space<vmem>>, vector<16x16x4xf32>
    %6 = vector.shape_cast %5 : vector<16x16x4xf32> to vector<256x4xf32>
    %c0_11 = arith.constant 0 : index
    %c0_12 = arith.constant 0 : index
    %7 = vector.load %arg9[%c0_11, %c0_12] : memref<256x36xf32, #tpu.memory_space<vmem>>, vector<256x4xf32>
    tpu.vector_store %arg9[%c0_11, %c0_12], %6 {strides = array<i32>} : memref<256x36xf32, #tpu.memory_space<vmem>>, vector<256x4xf32>,
    %c0_13 = arith.constant 0 : index
    %c1_14 = arith.constant 1 : index
    %c0_15 = arith.constant 0 : index
    %8 = vector.load %arg7[%c0_13, %c1_14, %c0_15] : memref<18x18x4xf32, #tpu.memory_space<vmem>>, vector<16x16x4xf32>
    %9 = vector.shape_cast %8 : vector<16x16x4xf32> to vector<256x4xf32>
    %c0_16 = arith.constant 0 : index
    %c4 = arith.constant 4 : index
    %10 = vector.load %arg9[%c0_16, %c4] : memref<256x36xf32, #tpu.memory_space<vmem>>, vector<256x4xf32>
    tpu.vector_store %arg9[%c0_16, %c4], %9 {strides = array<i32>} : memref<256x36xf32, #tpu.memory_space<vmem>>, vector<256x4xf32>,
    %c0_17 = arith.constant 0 : index
    %c2 = arith.constant 2 : index
    %c0_18 = arith.constant 0 : index
    %11 = vector.load %arg7[%c0_17, %c2, %c0_18] : memref<18x18x4xf32, #tpu.memory_space<vmem>>, vector<16x16x4xf32>
    %12 = vector.shape_cast %11 : vector<16x16x4xf32> to vector<256x4xf32>
    %c0_19 = arith.constant 0 : index
    %c8 = arith.constant 8 : index
    %13 = vector.load %arg9[%c0_19, %c8] : memref<256x36xf32, #tpu.memory_space<vmem>>, vector<256x4xf32>
    tpu.vector_store %arg9[%c0_19, %c8], %12 {strides = array<i32>} : memref<256x36xf32, #tpu.memory_space<vmem>>, vector<256x4xf32>,
    %c1_20 = arith.constant 1 : index
    %c0_21 = arith.constant 0 : index
    %c0_22 = arith.constant 0 : index
    %14 = vector.load %arg7[%c1_20, %c0_21, %c0_22] : memref<18x18x4xf32, #tpu.memory_space<vmem>>, vector<16x16x4xf32>
    %15 = vector.shape_cast %14 : vector<16x16x4xf32> to vector<256x4xf32>
    %c0_23 = arith.constant 0 : index
    %c12 = arith.constant 12 : index
    %16 = vector.load %arg9[%c0_23, %c12] : memref<256x36xf32, #tpu.memory_space<vmem>>, vector<256x4xf32>
    tpu.vector_store %arg9[%c0_23, %c12], %15 {strides = array<i32>} : memref<256x36xf32, #tpu.memory_space<vmem>>, vector<256x4xf32>,
    %c1_24 = arith.constant 1 : index
    %c1_25 = arith.constant 1 : index
    %c0_26 = arith.constant 0 : index
    %17 = vector.load %arg7[%c1_24, %c1_25, %c0_26] : memref<18x18x4xf32, #tpu.memory_space<vmem>>, vector<16x16x4xf32>
    %18 = vector.shape_cast %17 : vector<16x16x4xf32> to vector<256x4xf32>
    %c0_27 = arith.constant 0 : index
    %c16 = arith.constant 16 : index
    %19 = vector.load %arg9[%c0_27, %c16] : memref<256x36xf32, #tpu.memory_space<vmem>>, vector<256x4xf32>
    tpu.vector_store %arg9[%c0_27, %c16], %18 {strides = array<i32>} : memref<256x36xf32, #tpu.memory_space<vmem>>, vector<256x4xf32>,
    %c1_28 = arith.constant 1 : index
    %c2_29 = arith.constant 2 : index
    %c0_30 = arith.constant 0 : index
    %20 = vector.load %arg7[%c1_28, %c2_29, %c0_30] : memref<18x18x4xf32, #tpu.memory_space<vmem>>, vector<16x16x4xf32>
    %21 = vector.shape_cast %20 : vector<16x16x4xf32> to vector<256x4xf32>
    %c0_31 = arith.constant 0 : index
    %c20 = arith.constant 20 : index
    %22 = vector.load %arg9[%c0_31, %c20] : memref<256x36xf32, #tpu.memory_space<vmem>>, vector<256x4xf32>
    tpu.vector_store %arg9[%c0_31, %c20], %21 {strides = array<i32>} : memref<256x36xf32, #tpu.memory_space<vmem>>, vector<256x4xf32>,
    %c2_32 = arith.constant 2 : index
    %c0_33 = arith.constant 0 : index
    %c0_34 = arith.constant 0 : index
    %23 = vector.load %arg7[%c2_32, %c0_33, %c0_34] : memref<18x18x4xf32, #tpu.memory_space<vmem>>, vector<16x16x4xf32>
    %24 = vector.shape_cast %23 : vector<16x16x4xf32> to vector<256x4xf32>
    %c0_35 = arith.constant 0 : index
    %c24 = arith.constant 24 : index
    %25 = vector.load %arg9[%c0_35, %c24] : memref<256x36xf32, #tpu.memory_space<vmem>>, vector<256x4xf32>
    tpu.vector_store %arg9[%c0_35, %c24], %24 {strides = array<i32>} : memref<256x36xf32, #tpu.memory_space<vmem>>, vector<256x4xf32>,
    %c2_36 = arith.constant 2 : index
    %c1_37 = arith.constant 1 : index
    %c0_38 = arith.constant 0 : index
    %26 = vector.load %arg7[%c2_36, %c1_37, %c0_38] : memref<18x18x4xf32, #tpu.memory_space<vmem>>, vector<16x16x4xf32>
    %27 = vector.shape_cast %26 : vector<16x16x4xf32> to vector<256x4xf32>
    %c0_39 = arith.constant 0 : index
    %c28 = arith.constant 28 : index
    %28 = vector.load %arg9[%c0_39, %c28] : memref<256x36xf32, #tpu.memory_space<vmem>>, vector<256x4xf32>
    tpu.vector_store %arg9[%c0_39, %c28], %27 {strides = array<i32>} : memref<256x36xf32, #tpu.memory_space<vmem>>, vector<256x4xf32>,
    %c2_40 = arith.constant 2 : index
    %c2_41 = arith.constant 2 : index
    %c0_42 = arith.constant 0 : index
    %29 = vector.load %arg7[%c2_40, %c2_41, %c0_42] : memref<18x18x4xf32, #tpu.memory_space<vmem>>, vector<16x16x4xf32>
    %30 = vector.shape_cast %29 : vector<16x16x4xf32> to vector<256x4xf32>
    %c0_43 = arith.constant 0 : index
    %c32 = arith.constant 32 : index
    %31 = vector.load %arg9[%c0_43, %c32] : memref<256x36xf32, #tpu.memory_space<vmem>>, vector<256x4xf32>
    tpu.vector_store %arg9[%c0_43, %c32], %30 {strides = array<i32>} : memref<256x36xf32, #tpu.memory_space<vmem>>, vector<256x4xf32>,
    %c0_44 = arith.constant 0 : index
    %c0_45 = arith.constant 0 : index
    %32 = vector.load %arg9[%c0_44, %c0_45] : memref<256x36xf32, #tpu.memory_space<vmem>>, vector<256x36xf32>
    %c0_46 = arith.constant 0 : index
    %c0_47 = arith.constant 0 : index
    %33 = vector.load %arg2[%c0_46, %c0_47] : memref<36x4xf32, #tpu.memory_space<vmem>>, vector<36x4xf32>
    %cst_48 = arith.constant dense<0.000000e+00> : vector<256x4xf32>
    %34 = tpu.matmul %32, %33, %cst_48 {dimension_numbers = #tpu.dot_dimension_numbers<[1], [0], [0], [1], [0, 0, 1, 1], [], []>} : vector<256x36xf32>, vector<36x4xf32>, vector<256x4xf32> -> vector<256x4xf32>
    %c0_49 = arith.constant 0 : index
    %c0_50 = arith.constant 0 : index
    %35 = vector.load %arg3[%c0_49, %c0_50] : memref<1x4xf32, #tpu.memory_space<vmem>>, vector<1x4xf32>
    %36 = vector.broadcast %35 : vector<1x4xf32> to vector<256x4xf32>
    %37 = arith.addf %34, %36 : vector<256x4xf32>
    %cst_51 = arith.constant 0.000000e+00 : f32
    %38 = vector.broadcast %cst_51 : f32 to vector<256x4xf32>
    %39 = arith.maximumf %37, %38 : vector<256x4xf32>
    %cst_52 = arith.constant 0.000000e+00 : f32
    %40 = vector.broadcast %cst_52 : f32 to vector<18x18x4xf32>
    %c0_53 = arith.constant 0 : index
    %c0_54 = arith.constant 0 : index
    %c0_55 = arith.constant 0 : index
    %41 = vector.load %arg8[%c0_53, %c0_54, %c0_55] : memref<18x18x4xf32, #tpu.memory_space<vmem>>, vector<18x18x4xf32>
    tpu.vector_store %arg8[%c0_53, %c0_54, %c0_55], %40 {strides = array<i32>} : memref<18x18x4xf32, #tpu.memory_space<vmem>>, vector<18x18x4xf32>,
    %42 = vector.shape_cast %39 : vector<256x4xf32> to vector<16x16x4xf32>
    %c1_56 = arith.constant 1 : index
    %c1_57 = arith.constant 1 : index
    %c0_58 = arith.constant 0 : index
    %43 = vector.load %arg8[%c1_56, %c1_57, %c0_58] : memref<18x18x4xf32, #tpu.memory_space<vmem>>, vector<16x16x4xf32>
    tpu.vector_store %arg8[%c1_56, %c1_57, %c0_58], %42 {strides = array<i32>} : memref<18x18x4xf32, #tpu.memory_space<vmem>>, vector<16x16x4xf32>,
    %c0_59 = arith.constant 0 : index
    %c0_60 = arith.constant 0 : index
    %c0_61 = arith.constant 0 : index
    %44 = vector.load %arg8[%c0_59, %c0_60, %c0_61] : memref<18x18x4xf32, #tpu.memory_space<vmem>>, vector<16x16x4xf32>
    %45 = vector.shape_cast %44 : vector<16x16x4xf32> to vector<256x4xf32>
    %c0_62 = arith.constant 0 : index
    %c0_63 = arith.constant 0 : index
    %46 = vector.load %arg10[%c0_62, %c0_63] : memref<256x36xf32, #tpu.memory_space<vmem>>, vector<256x4xf32>
    tpu.vector_store %arg10[%c0_62, %c0_63], %45 {strides = array<i32>} : memref<256x36xf32, #tpu.memory_space<vmem>>, vector<256x4xf32>,
    %c0_64 = arith.constant 0 : index
    %c1_65 = arith.constant 1 : index
    %c0_66 = arith.constant 0 : index
    %47 = vector.load %arg8[%c0_64, %c1_65, %c0_66] : memref<18x18x4xf32, #tpu.memory_space<vmem>>, vector<16x16x4xf32>
    %48 = vector.shape_cast %47 : vector<16x16x4xf32> to vector<256x4xf32>
    %c0_67 = arith.constant 0 : index
    %c4_68 = arith.constant 4 : index
    %49 = vector.load %arg10[%c0_67, %c4_68] : memref<256x36xf32, #tpu.memory_space<vmem>>, vector<256x4xf32>
    tpu.vector_store %arg10[%c0_67, %c4_68], %48 {strides = array<i32>} : memref<256x36xf32, #tpu.memory_space<vmem>>, vector<256x4xf32>,
    %c0_69 = arith.constant 0 : index
    %c2_70 = arith.constant 2 : index
    %c0_71 = arith.constant 0 : index
    %50 = vector.load %arg8[%c0_69, %c2_70, %c0_71] : memref<18x18x4xf32, #tpu.memory_space<vmem>>, vector<16x16x4xf32>
    %51 = vector.shape_cast %50 : vector<16x16x4xf32> to vector<256x4xf32>
    %c0_72 = arith.constant 0 : index
    %c8_73 = arith.constant 8 : index
    %52 = vector.load %arg10[%c0_72, %c8_73] : memref<256x36xf32, #tpu.memory_space<vmem>>, vector<256x4xf32>
    tpu.vector_store %arg10[%c0_72, %c8_73], %51 {strides = array<i32>} : memref<256x36xf32, #tpu.memory_space<vmem>>, vector<256x4xf32>,
    %c1_74 = arith.constant 1 : index
    %c0_75 = arith.constant 0 : index
    %c0_76 = arith.constant 0 : index
    %53 = vector.load %arg8[%c1_74, %c0_75, %c0_76] : memref<18x18x4xf32, #tpu.memory_space<vmem>>, vector<16x16x4xf32>
    %54 = vector.shape_cast %53 : vector<16x16x4xf32> to vector<256x4xf32>
    %c0_77 = arith.constant 0 : index
    %c12_78 = arith.constant 12 : index
    %55 = vector.load %arg10[%c0_77, %c12_78] : memref<256x36xf32, #tpu.memory_space<vmem>>, vector<256x4xf32>
    tpu.vector_store %arg10[%c0_77, %c12_78], %54 {strides = array<i32>} : memref<256x36xf32, #tpu.memory_space<vmem>>, vector<256x4xf32>,
    %c1_79 = arith.constant 1 : index
    %c1_80 = arith.constant 1 : index
    %c0_81 = arith.constant 0 : index
    %56 = vector.load %arg8[%c1_79, %c1_80, %c0_81] : memref<18x18x4xf32, #tpu.memory_space<vmem>>, vector<16x16x4xf32>
    %57 = vector.shape_cast %56 : vector<16x16x4xf32> to vector<256x4xf32>
    %c0_82 = arith.constant 0 : index
    %c16_83 = arith.constant 16 : index
    %58 = vector.load %arg10[%c0_82, %c16_83] : memref<256x36xf32, #tpu.memory_space<vmem>>, vector<256x4xf32>
    tpu.vector_store %arg10[%c0_82, %c16_83], %57 {strides = array<i32>} : memref<256x36xf32, #tpu.memory_space<vmem>>, vector<256x4xf32>,
    %c1_84 = arith.constant 1 : index
    %c2_85 = arith.constant 2 : index
    %c0_86 = arith.constant 0 : index
    %59 = vector.load %arg8[%c1_84, %c2_85, %c0_86] : memref<18x18x4xf32, #tpu.memory_space<vmem>>, vector<16x16x4xf32>
    %60 = vector.shape_cast %59 : vector<16x16x4xf32> to vector<256x4xf32>
    %c0_87 = arith.constant 0 : index
    %c20_88 = arith.constant 20 : index
    %61 = vector.load %arg10[%c0_87, %c20_88] : memref<256x36xf32, #tpu.memory_space<vmem>>, vector<256x4xf32>
    tpu.vector_store %arg10[%c0_87, %c20_88], %60 {strides = array<i32>} : memref<256x36xf32, #tpu.memory_space<vmem>>, vector<256x4xf32>,
    %c2_89 = arith.constant 2 : index
    %c0_90 = arith.constant 0 : index
    %c0_91 = arith.constant 0 : index
    %62 = vector.load %arg8[%c2_89, %c0_90, %c0_91] : memref<18x18x4xf32, #tpu.memory_space<vmem>>, vector<16x16x4xf32>
    %63 = vector.shape_cast %62 : vector<16x16x4xf32> to vector<256x4xf32>
    %c0_92 = arith.constant 0 : index
    %c24_93 = arith.constant 24 : index
    %64 = vector.load %arg10[%c0_92, %c24_93] : memref<256x36xf32, #tpu.memory_space<vmem>>, vector<256x4xf32>
    tpu.vector_store %arg10[%c0_92, %c24_93], %63 {strides = array<i32>} : memref<256x36xf32, #tpu.memory_space<vmem>>, vector<256x4xf32>,
    %c2_94 = arith.constant 2 : index
    %c1_95 = arith.constant 1 : index
    %c0_96 = arith.constant 0 : index
    %65 = vector.load %arg8[%c2_94, %c1_95, %c0_96] : memref<18x18x4xf32, #tpu.memory_space<vmem>>, vector<16x16x4xf32>
    %66 = vector.shape_cast %65 : vector<16x16x4xf32> to vector<256x4xf32>
    %c0_97 = arith.constant 0 : index
    %c28_98 = arith.constant 28 : index
    %67 = vector.load %arg10[%c0_97, %c28_98] : memref<256x36xf32, #tpu.memory_space<vmem>>, vector<256x4xf32>
    tpu.vector_store %arg10[%c0_97, %c28_98], %66 {strides = array<i32>} : memref<256x36xf32, #tpu.memory_space<vmem>>, vector<256x4xf32>,
    %c2_99 = arith.constant 2 : index
    %c2_100 = arith.constant 2 : index
    %c0_101 = arith.constant 0 : index
    %68 = vector.load %arg8[%c2_99, %c2_100, %c0_101] : memref<18x18x4xf32, #tpu.memory_space<vmem>>, vector<16x16x4xf32>
    %69 = vector.shape_cast %68 : vector<16x16x4xf32> to vector<256x4xf32>
    %c0_102 = arith.constant 0 : index
    %c32_103 = arith.constant 32 : index
    %70 = vector.load %arg10[%c0_102, %c32_103] : memref<256x36xf32, #tpu.memory_space<vmem>>, vector<256x4xf32>
    tpu.vector_store %arg10[%c0_102, %c32_103], %69 {strides = array<i32>} : memref<256x36xf32, #tpu.memory_space<vmem>>, vector<256x4xf32>,
    %c0_104 = arith.constant 0 : index
    %c0_105 = arith.constant 0 : index
    %71 = vector.load %arg10[%c0_104, %c0_105] : memref<256x36xf32, #tpu.memory_space<vmem>>, vector<256x36xf32>
    %c0_106 = arith.constant 0 : index
    %c0_107 = arith.constant 0 : index
    %72 = vector.load %arg4[%c0_106, %c0_107] : memref<36x4xf32, #tpu.memory_space<vmem>>, vector<36x4xf32>
    %cst_108 = arith.constant dense<0.000000e+00> : vector<256x4xf32>
    %73 = tpu.matmul %71, %72, %cst_108 {dimension_numbers = #tpu.dot_dimension_numbers<[1], [0], [0], [1], [0, 0, 1, 1], [], []>} : vector<256x36xf32>, vector<36x4xf32>, vector<256x4xf32> -> vector<256x4xf32>
    %c0_109 = arith.constant 0 : index
    %c0_110 = arith.constant 0 : index
    %74 = vector.load %arg5[%c0_109, %c0_110] : memref<1x4xf32, #tpu.memory_space<vmem>>, vector<1x4xf32>
    %75 = vector.broadcast %74 : vector<1x4xf32> to vector<256x4xf32>
    %76 = arith.addf %73, %75 : vector<256x4xf32>
    %77 = vector.shape_cast %76 : vector<256x4xf32> to vector<16x16x4xf32>
    %c0_111 = arith.constant 0 : index
    %c0_112 = arith.constant 0 : index
    %c0_113 = arith.constant 0 : index
    %c0_114 = arith.constant 0 : index
    %78 = vector.load %arg1[%c0_111, %c0_112, %c0_113, %c0_114] : memref<1x16x16x4xf32, #tpu.memory_space<vmem>>, vector<1x16x16x4xf32>
    %79 = vector.shape_cast %78 : vector<1x16x16x4xf32> to vector<16x16x4xf32>
    %80 = arith.addf %77, %79 : vector<16x16x4xf32>
    %cst_115 = arith.constant 0.000000e+00 : f32
    %81 = vector.broadcast %cst_115 : f32 to vector<16x16x4xf32>
    %82 = arith.maximumf %80, %81 : vector<16x16x4xf32>
    %c0_116 = arith.constant 0 : index
    %c0_117 = arith.constant 0 : index
    %c0_118 = arith.constant 0 : index
    %c0_119 = arith.constant 0 : index
    %83 = vector.load %arg6[%c0_116, %c0_117, %c0_118, %c0_119] : memref<1x16x16x4xf32, #tpu.memory_space<vmem>>, vector<1x16x16x4xf32>
    %84 = vector.shape_cast %83 : vector<1x16x16x4xf32> to vector<16x16x4xf32>
    %85 = vector.shape_cast %82 : vector<16x16x4xf32> to vector<1x16x16x4xf32>
    tpu.vector_store %arg6[%c0_116, %c0_117, %c0_118, %c0_119], %85 {strides = array<i32>} : memref<1x16x16x4xf32, #tpu.memory_space<vmem>>, vector<1x16x16x4xf32>,
    return
  }
  func.func @transform_0(%arg0: i32) -> (i32, i32, i32, i32) {
    %c0_i32 = arith.constant 0 : i32
    %c0_i32_0 = arith.constant 0 : i32
    %c0_i32_1 = arith.constant 0 : i32
    %c0_i32_2 = arith.constant 0 : i32
    return %arg0, %c0_i32, %c0_i32_0, %c0_i32_1 : i32, i32, i32, i32
  }
  func.func @transform_1(%arg0: i32) -> (i32, i32) {
    %c0_i32 = arith.constant 0 : i32
    %c0_i32_0 = arith.constant 0 : i32
    %c0_i32_1 = arith.constant 0 : i32
    return %c0_i32, %c0_i32_0 : i32, i32
  }
  func.func @transform_2(%arg0: i32) -> (i32, i32) {
    %c0_i32 = arith.constant 0 : i32
    %c0_i32_0 = arith.constant 0 : i32
    %c0_i32_1 = arith.constant 0 : i32
    return %c0_i32, %c0_i32_0 : i32, i32
  }
  func.func @transform_3(%arg0: i32) -> (i32, i32) {
    %c0_i32 = arith.constant 0 : i32
    %c0_i32_0 = arith.constant 0 : i32
    %c0_i32_1 = arith.constant 0 : i32
    return %c0_i32, %c0_i32_0 : i32, i32
  }
  func.func @transform_4(%arg0: i32) -> (i32, i32) {
    %c0_i32 = arith.constant 0 : i32
    %c0_i32_0 = arith.constant 0 : i32
    %c0_i32_1 = arith.constant 0 : i32
    return %c0_i32, %c0_i32_0 : i32, i32
  }
  func.func @transform_5(%arg0: i32) -> (i32, i32, i32, i32) {
    %c0_i32 = arith.constant 0 : i32
    %c0_i32_0 = arith.constant 0 : i32
    %c0_i32_1 = arith.constant 0 : i32
    %c0_i32_2 = arith.constant 0 : i32
    return %arg0, %c0_i32, %c0_i32_0, %c0_i32_1 : i32, i32, i32, i32
  }
}

</mosaic_0001>

<llo_original>
// kernel: tpu_custom_call.1
$region0: #{tpu_custom_call.1}
  #allocation0 [shape = 'u32[]', space=smem, size = 0x4, offset = 0x4, fixed_abs, tag = 'smem constant byte address 0x4 - core index']
  #allocation1 [shape = 'u32[144,128]{1,0:T(1,128)}', space=vmem, size = 0x12000, scoped, tag = 'internal scratch']
  #allocation2 [shape = 'f32[18,18,4]{2,1,0:T(8,128)}', space=vmem, size = 0x36000, scoped, tag = 'scratch operand']
  #allocation3 [shape = 'f32[18,18,4]{2,1,0:T(8,128)}', space=vmem, size = 0x36000, scoped, tag = 'scratch operand']
  #allocation4 [shape = 'f32[256,36]{1,0:T(8,128)}', space=vmem, size = 0x20000, scoped, tag = 'scratch operand']
  #allocation5 [shape = 'f32[256,36]{1,0:T(8,128)}', space=vmem, size = 0x20000, scoped, tag = 'scratch operand']
  %s0 = inlined_call_operand.vmem [shape: f32[2,16,16,4], index: 0, kind: input, shape index: {}]
  %s1 = inlined_call_operand.vmem [shape: f32[36,4], index: 1, kind: input, shape index: {}]
  %s2 = inlined_call_operand.vmem [shape: f32[1,4], index: 2, kind: input, shape index: {}]
  %s3 = inlined_call_operand.vmem [shape: f32[36,4], index: 3, kind: input, shape index: {}]
  %s4 = inlined_call_operand.vmem [shape: f32[1,4], index: 4, kind: input, shape index: {}]
  %s5 = inlined_call_operand.vmem [shape: f32[2,16,16,4], index: 5, kind: output, shape index: {}]
  %s6 = sld [smem:[#allocation0]]
  $region53: #{tpu_custom_call.1} parent=0
    _
  %s8 = ssub.s32 1, %s6
  %s9 = scalar_select 0, %s8, %s6
  loop: start=0, step=1, limit=4
  $region2: #{tpu_custom_call.1} parent=0 // loop_pre_header
    _
  $region3: #{tpu_custom_call.1} parent=0 // loop_header
    %s11 = sphi 0, %s15
    %p12 = scmp.ge.s32.totalorder %s11, 4
    %s21 = sphi 0, %s23
    %s24 = sphi 0, %s21
    %s25 = sphi 0, %s24
    %s41 = sphi 0, %s25
    %s45 = sphi 0, %s45
    %s47 = sphi 0, %s45
    %s48 = sphi 0, %s47
    %s62 = sphi 0, %s48
    %s66 = sphi 0, %s66
    %s68 = sphi 0, %s66
    %s69 = sphi 0, %s68
    %s83 = sphi 0, %s69
    %s87 = sphi 0, %s87
    %s89 = sphi 0, %s87
    %s90 = sphi 0, %s89
    %s104 = sphi 0, %s90
    %s108 = sphi 0, %s108
    %s110 = sphi 0, %s108
    %s111 = sphi 0, %s110
    %s125 = sphi 0, %s111
    %s131 = sphi 0, %s133
    %s134 = sphi 0, %s131
    %s135 = sphi 0, %s134
    %s151 = sphi 0, %s135
  $region4: #{tpu_custom_call.1} parent=0 // loop_header_branch
    %14 = sbr.rel (%p12) target = $region8
  $region5: #{tpu_custom_call.1} parent=0 // loop_body
    %s16 = ssub.s32 %s11, 1
    %s17 = ssub.s32 %s11, 2
    %s18 = sadd.s32 %s11, 1
    %s19 = ssub.s32 %s11, %s18
    %p20 = scmp.eq.s32.totalorder %s19, 0
    %s22 = sadd.s32 %s21, 1
    %s23 = scalar_select %p20, %s21, %s22
    %p26 = pneg %p20
    %p27 = scmp.eq.s32.totalorder %s11, 1
    %p28 = por %p26, %p27
    %p29 = scmp.ne.s32.totalorder %s21, %s24
    %p30 = scmp.eq.s32.totalorder %s11, 0
    %p31 = por %p29, %p30
    %p32 = scmp.ne.s32.totalorder %s21, %s24
    %p33 = scmp.eq.s32.totalorder %s16, 1
    %p34 = por %p32, %p33
    %p35 = scmp.ne.s32.totalorder %s24, %s25
    %p36 = scmp.eq.s32.totalorder %s16, 0
    %p37 = por %p35, %p36
    %p38 = scmp.ne.s32.totalorder %s24, %s25
    %p39 = scmp.eq.s32.totalorder %s17, 1
    %p40 = por %p38, %p39
    %p42 = scmp.ne.s32.totalorder %s25, %s41
    %p43 = scmp.eq.s32.totalorder %s17, 0
    %p44 = por %p42, %p43
    %s46 = sadd.s32 %s45, 1
    %p49 = scmp.eq.s32.totalorder %s11, 1
    %p50 = scmp.ne.s32.totalorder %s45, %s47
    %p51 = scmp.eq.s32.totalorder %s11, 0
    %p52 = por %p50, %p51
    %p53 = scmp.ne.s32.totalorder %s45, %s47
    %p54 = scmp.eq.s32.totalorder %s16, 1
    %p55 = por %p53, %p54
    %p56 = scmp.ne.s32.totalorder %s47, %s48
    %p57 = scmp.eq.s32.totalorder %s16, 0
    %p58 = por %p56, %p57
    %p59 = scmp.ne.s32.totalorder %s47, %s48
    %p60 = scmp.eq.s32.totalorder %s17, 1
    %p61 = por %p59, %p60
    %p63 = scmp.ne.s32.totalorder %s48, %s62
    %p64 = scmp.eq.s32.totalorder %s17, 0
    %p65 = por %p63, %p64
    %s67 = sadd.s32 %s66, 1
    %p70 = scmp.eq.s32.totalorder %s11, 1
    %p71 = scmp.ne.s32.totalorder %s66, %s68
    %p72 = scmp.eq.s32.totalorder %s11, 0
    %p73 = por %p71, %p72
    %p74 = scmp.ne.s32.totalorder %s66, %s68
    %p75 = scmp.eq.s32.totalorder %s16, 1
    %p76 = por %p74, %p75
    %p77 = scmp.ne.s32.totalorder %s68, %s69
    %p78 = scmp.eq.s32.totalorder %s16, 0
    %p79 = por %p77, %p78
    %p80 = scmp.ne.s32.totalorder %s68, %s69
    %p81 = scmp.eq.s32.totalorder %s17, 1
    %p82 = por %p80, %p81
    %p84 = scmp.ne.s32.totalorder %s69, %s83
    %p85 = scmp.eq.s32.totalorder %s17, 0
    %p86 = por %p84, %p85
    %s88 = sadd.s32 %s87, 1
    %p91 = scmp.eq.s32.totalorder %s11, 1
    %p92 = scmp.ne.s32.totalorder %s87, %s89
    %p93 = scmp.eq.s32.totalorder %s11, 0
    %p94 = por %p92, %p93
    %p95 = scmp.ne.s32.totalorder %s87, %s89
    %p96 = scmp.eq.s32.totalorder %s16, 1
    %p97 = por %p95, %p96
    %p98 = scmp.ne.s32.totalorder %s89, %s90
    %p99 = scmp.eq.s32.totalorder %s16, 0
    %p100 = por %p98, %p99
    %p101 = scmp.ne.s32.totalorder %s89, %s90
    %p102 = scmp.eq.s32.totalorder %s17, 1
    %p103 = por %p101, %p102
    %p105 = scmp.ne.s32.totalorder %s90, %s104
    %p106 = scmp.eq.s32.totalorder %s17, 0
    %p107 = por %p105, %p106
    %s109 = sadd.s32 %s108, 1
    %p112 = scmp.eq.s32.totalorder %s11, 1
    %p113 = scmp.ne.s32.totalorder %s108, %s110
    %p114 = scmp.eq.s32.totalorder %s11, 0
    %p115 = por %p113, %p114
    %p116 = scmp.ne.s32.totalorder %s108, %s110
    %p117 = scmp.eq.s32.totalorder %s16, 1
    %p118 = por %p116, %p117
    %p119 = scmp.ne.s32.totalorder %s110, %s111
    %p120 = scmp.eq.s32.totalorder %s16, 0
    %p121 = por %p119, %p120
    %p122 = scmp.ne.s32.totalorder %s110, %s111
    %p123 = scmp.eq.s32.totalorder %s17, 1
    %p124 = por %p122, %p123
    %p126 = scmp.ne.s32.totalorder %s111, %s125
    %p127 = scmp.eq.s32.totalorder %s17, 0
    %p128 = por %p126, %p127
    %s129 = ssub.s32 %s11, %s18
    %p130 = scmp.eq.s32.totalorder %s129, 0
    %s132 = sadd.s32 %s131, 1
    %s133 = scalar_select %p130, %s131, %s132
    %p136 = pneg %p130
    %p137 = scmp.eq.s32.totalorder %s11, 1
    %p138 = por %p136, %p137
    %p139 = scmp.ne.s32.totalorder %s131, %s134
    %p140 = scmp.eq.s32.totalorder %s11, 0
    %p141 = por %p139, %p140
    %p142 = scmp.ne.s32.totalorder %s131, %s134
    %p143 = scmp.eq.s32.totalorder %s16, 1
    %p144 = por %p142, %p143
    %p145 = scmp.ne.s32.totalorder %s134, %s135
    %p146 = scmp.eq.s32.totalorder %s16, 0
    %p147 = por %p145, %p146
    %p148 = scmp.ne.s32.totalorder %s134, %s135
    %p149 = scmp.eq.s32.totalorder %s17, 1
    %p150 = por %p148, %p149
    %p152 = scmp.ne.s32.totalorder %s135, %s151
    %p153 = scmp.eq.s32.totalorder %s17, 0
    %p154 = por %p152, %p153
    %p155 = scmp.le.s32.totalorder 1, %s11
    %p156 = scmp.lt.s32.totalorder %s11, 3
    %p157 = pnand %p155, %p156
    %p158 = pneg %p157
    // Predicated region
    $region9: #{tpu_custom_call.1} parent=5 // pred_check
      _
    $region10: #{tpu_custom_call.1} parent=5 // pred_check_branch
      %160 = sbr.rel (%p157) target = $region12
    $region11: #{tpu_custom_call.1} parent=5 // pred_region
      %s161 = ssub.s32 %s11, 1
      // Predicated region
      $region13: #{tpu_custom_call.1} parent=11 // pred_check
        %p162 = pneg %p58
      $region14: #{tpu_custom_call.1} parent=11 // pred_check_branch
        %164 = sbr.rel (%p162) target = $region16
      $region15: #{tpu_custom_call.1} parent=11 // pred_region
        _
      $region16: #{tpu_custom_call.1} parent=11 // pred_fallthru
        _
      // Predicated region
      $region17: #{tpu_custom_call.1} parent=11 // pred_check
        %p165 = pneg %p79
      $region18: #{tpu_custom_call.1} parent=11 // pred_check_branch
        %167 = sbr.rel (%p165) target = $region20
      $region19: #{tpu_custom_call.1} parent=11 // pred_region
        _
      $region20: #{tpu_custom_call.1} parent=11 // pred_fallthru
        _
      // Predicated region
      $region21: #{tpu_custom_call.1} parent=11 // pred_check
        %p168 = pneg %p100
      $region22: #{tpu_custom_call.1} parent=11 // pred_check_branch
        %170 = sbr.rel (%p168) target = $region24
      $region23: #{tpu_custom_call.1} parent=11 // pred_region
        _
      $region24: #{tpu_custom_call.1} parent=11 // pred_fallthru
        _
      // Predicated region
      $region25: #{tpu_custom_call.1} parent=11 // pred_check
        %p171 = pneg %p121
      $region26: #{tpu_custom_call.1} parent=11 // pred_check_branch
        %173 = sbr.rel (%p171) target = $region28
      $region27: #{tpu_custom_call.1} parent=11 // pred_region
        _
      $region28: #{tpu_custom_call.1} parent=11 // pred_fallthru
        _
    $region12: #{tpu_custom_call.1} parent=5 // pred_fallthru
      _
    %p174 = scmp.lt.s32.totalorder %s11, 2
    // Predicated region
    $region29: #{tpu_custom_call.1} parent=5 // pred_check
      %p175 = pneg %p174
    $region30: #{tpu_custom_call.1} parent=5 // pred_check_branch
      %177 = sbr.rel (%p175) target = $region32
    $region31: #{tpu_custom_call.1} parent=5 // pred_region
      // Predicated region
      $region33: #{tpu_custom_call.1} parent=31 // pred_check
        %p178 = pneg %p31
      $region34: #{tpu_custom_call.1} parent=31 // pred_check_branch
        %180 = sbr.rel (%p178) target = $region36
      $region35: #{tpu_custom_call.1} parent=31 // pred_region
        %p181 = scmp.lt.s32.totalorder %s11, 1
        %s182 = scalar_select %p181, %s11, 1
        %s183 = smul.addr %s182, 32
        %s184 = smul.addr %s183, 8
        %s185 = scalar_lea.vmem %s0, %s184
      $region36: #{tpu_custom_call.1} parent=31 // pred_fallthru
        _
    $region32: #{tpu_custom_call.1} parent=5 // pred_fallthru
      _
    %p186 = scmp.le.s32.totalorder 1, %s11
    %p187 = scmp.lt.s32.totalorder %s11, 3
    %p188 = pnand %p186, %p187
    %p189 = pneg %p188
    // Predicated region
    $region37: #{tpu_custom_call.1} parent=5 // pred_check
      _
    $region38: #{tpu_custom_call.1} parent=5 // pred_check_branch
      %191 = sbr.rel (%p188) target = $region40
    $region39: #{tpu_custom_call.1} parent=5 // pred_region
      %s192 = ssub.s32 %s11, 1
      %p193 = scmp.lt.s32.totalorder %s16, 1
      %s194 = scalar_select %p193, %s16, 1
      %s195 = smul.addr %s194, 32
      %s196 = smul.addr %s195, 8
      %s197 = scalar_lea.vmem %s0, %s196
      %p198 = pneg %p37
      %p199 = pneg %p34
      %p200 = pneg %p58
      %p201 = pneg %p55
      %p202 = pneg %p79
      %p203 = pneg %p76
      %p204 = pneg %p100
      %p205 = pneg %p97
      %p206 = pneg %p121
      %p207 = pneg %p118
      %p208 = pneg %p147
      %p209 = pneg %p144
      %p210 = scmp.lt.s32.totalorder %s16, 1
      %s211 = scalar_select %p210, %s16, 1
      %s212 = smul.addr %s211, 32
      %s213 = smul.addr %s212, 8
      %s214 = scalar_lea.vmem %s5, %s213
      %p215 = scmp.lt.s32.totalorder %s16, 1
      %s216 = scalar_select %p215, %s16, 1
      %s217 = smul.addr %s216, 32
      %s218 = smul.addr %s217, 8
      %s219 = scalar_lea.vmem %s0, %s218
      %p220 = scmp.lt.s32.totalorder %s16, 1
      %s221 = scalar_select %p220, %s16, 1
      %s222 = smul.addr %s221, 32
      %s223 = smul.addr %s222, 8
      %s224 = scalar_lea.vmem %s5, %s223
      %vm225 = vcmask 31744
      %226 = vst.msk [vmem:[#allocation2] sm:$0xff] %vm225, 0.0
      %227 = vst.msk [vmem:[#allocation2 + $0x8] sm:$0xff] %vm225, 0.0
      %vm228 = vcmask 25600
      %229 = vst.msk [vmem:[#allocation2 + $0x10] sm:$0x3] %vm228, 0.0
      %230 = vst.msk [vmem:[#allocation2 + $0x18] sm:$0xff] %vm225, 0.0
      %231 = vst.msk [vmem:[#allocation2 + $0x20] sm:$0xff] %vm225, 0.0
      %232 = vst.msk [vmem:[#allocation2 + $0x28] sm:$0x3] %vm228, 0.0
      %233 = vst.msk [vmem:[#allocation2 + $0x30] sm:$0xff] %vm225, 0.0
      %234 = vst.msk [vmem:[#allocation2 + $0x38] sm:$0xff] %vm225, 0.0
      %235 = vst.msk [vmem:[#allocation2 + $0x40] sm:$0x3] %vm228, 0.0
      %236 = vst.msk [vmem:[#allocation2 + $0x48] sm:$0xff] %vm225, 0.0
      %237 = vst.msk [vmem:[#allocation2 + $0x50] sm:$0xff] %vm225, 0.0
      %238 = vst.msk [vmem:[#allocation2 + $0x58] sm:$0x3] %vm228, 0.0
      %239 = vst.msk [vmem:[#allocation2 + $0x60] sm:$0xff] %vm225, 0.0
      %240 = vst.msk [vmem:[#allocation2 + $0x68] sm:$0xff] %vm225, 0.0
      %241 = vst.msk [vmem:[#allocation2 + $0x70] sm:$0x3] %vm228, 0.0
      %242 = vst.msk [vmem:[#allocation2 + $0x78] sm:$0xff] %vm225, 0.0
      %243 = vst.msk [vmem:[#allocation2 + $0x80] sm:$0xff] %vm225, 0.0
      %244 = vst.msk [vmem:[#allocation2 + $0x88] sm:$0x3] %vm228, 0.0
      %245 = vst.msk [vmem:[#allocation2 + $0x90] sm:$0xff] %vm225, 0.0
      %246 = vst.msk [vmem:[#allocation2 + $0x98] sm:$0xff] %vm225, 0.0
      %247 = vst.msk [vmem:[#allocation2 + $0xa0] sm:$0x3] %vm228, 0.0
      %248 = vst.msk [vmem:[#allocation2 + $0xa8] sm:$0xff] %vm225, 0.0
      %249 = vst.msk [vmem:[#allocation2 + $0xb0] sm:$0xff] %vm225, 0.0
      %250 = vst.msk [vmem:[#allocation2 + $0xb8] sm:$0x3] %vm228, 0.0
      %251 = vst.msk [vmem:[#allocation2 + $0xc0] sm:$0xff] %vm225, 0.0
      %252 = vst.msk [vmem:[#allocation2 + $0xc8] sm:$0xff] %vm225, 0.0
      %253 = vst.msk [vmem:[#allocation2 + $0xd0] sm:$0x3] %vm228, 0.0
      %254 = vst.msk [vmem:[#allocation2 + $0xd8] sm:$0xff] %vm225, 0.0
      %255 = vst.msk [vmem:[#allocation2 + $0xe0] sm:$0xff] %vm225, 0.0
      %256 = vst.msk [vmem:[#allocation2 + $0xe8] sm:$0x3] %vm228, 0.0
      %257 = vst.msk [vmem:[#allocation2 + $0xf0] sm:$0xff] %vm225, 0.0
      %258 = vst.msk [vmem:[#allocation2 + $0xf8] sm:$0xff] %vm225, 0.0
      %259 = vst.msk [vmem:[#allocation2 + $0x100] sm:$0x3] %vm228, 0.0
      %260 = vst.msk [vmem:[#allocation2 + $0x108] sm:$0xff] %vm225, 0.0
      %261 = vst.msk [vmem:[#allocation2 + $0x110] sm:$0xff] %vm225, 0.0
      %262 = vst.msk [vmem:[#allocation2 + $0x118] sm:$0x3] %vm228, 0.0
      %263 = vst.msk [vmem:[#allocation2 + $0x120] sm:$0xff] %vm225, 0.0
      %264 = vst.msk [vmem:[#allocation2 + $0x128] sm:$0xff] %vm225, 0.0
      %265 = vst.msk [vmem:[#allocation2 + $0x130] sm:$0x3] %vm228, 0.0
      %266 = vst.msk [vmem:[#allocation2 + $0x138] sm:$0xff] %vm225, 0.0
      %267 = vst.msk [vmem:[#allocation2 + $0x140] sm:$0xff] %vm225, 0.0
      %268 = vst.msk [vmem:[#allocation2 + $0x148] sm:$0x3] %vm228, 0.0
      %269 = vst.msk [vmem:[#allocation2 + $0x150] sm:$0xff] %vm225, 0.0
      %270 = vst.msk [vmem:[#allocation2 + $0x158] sm:$0xff] %vm225, 0.0
      %271 = vst.msk [vmem:[#allocation2 + $0x160] sm:$0x3] %vm228, 0.0
      %272 = vst.msk [vmem:[#allocation2 + $0x168] sm:$0xff] %vm225, 0.0
      %273 = vst.msk [vmem:[#allocation2 + $0x170] sm:$0xff] %vm225, 0.0
      %274 = vst.msk [vmem:[#allocation2 + $0x178] sm:$0x3] %vm228, 0.0
      %275 = vst.msk [vmem:[#allocation2 + $0x180] sm:$0xff] %vm225, 0.0
      %276 = vst.msk [vmem:[#allocation2 + $0x188] sm:$0xff] %vm225, 0.0
      %277 = vst.msk [vmem:[#allocation2 + $0x190] sm:$0x3] %vm228, 0.0
      %278 = vst.msk [vmem:[#allocation2 + $0x198] sm:$0xff] %vm225, 0.0
      %279 = vst.msk [vmem:[#allocation2 + $0x1a0] sm:$0xff] %vm225, 0.0
      %280 = vst.msk [vmem:[#allocation2 + $0x1a8] sm:$0x3] %vm228, 0.0
      %v281 = vld [vmem:[%s219] sm:$0xff]
      %v282 = vld [vmem:[%s219 + $0x8] sm:$0xff]
      %v283 = vld [vmem:[%s219 + $0x10] sm:$0xff]
      %v284 = vld [vmem:[%s219 + $0x18] sm:$0xff]
      %v285 = vld [vmem:[%s219 + $0x20] sm:$0xff]
      %v286 = vld [vmem:[%s219 + $0x28] sm:$0xff]
      %v287 = vld [vmem:[%s219 + $0x30] sm:$0xff]
      %v288 = vld [vmem:[%s219 + $0x38] sm:$0xff]
      %v289 = vld [vmem:[%s219 + $0x40] sm:$0xff]
      %v290 = vld [vmem:[%s219 + $0x48] sm:$0xff]
      %v291 = vld [vmem:[%s219 + $0x50] sm:$0xff]
      %v292 = vld [vmem:[%s219 + $0x58] sm:$0xff]
      %v293 = vld [vmem:[%s219 + $0x60] sm:$0xff]
      %v294 = vld [vmem:[%s219 + $0x68] sm:$0xff]
      %v295 = vld [vmem:[%s219 + $0x70] sm:$0xff]
      %v296 = vld [vmem:[%s219 + $0x78] sm:$0xff]
      %v297 = vld [vmem:[%s219 + $0x80] sm:$0xff]
      %v298 = vld [vmem:[%s219 + $0x88] sm:$0xff]
      %v299 = vld [vmem:[%s219 + $0x90] sm:$0xff]
      %v300 = vld [vmem:[%s219 + $0x98] sm:$0xff]
      %v301 = vld [vmem:[%s219 + $0xa0] sm:$0xff]
      %v302 = vld [vmem:[%s219 + $0xa8] sm:$0xff]
      %v303 = vld [vmem:[%s219 + $0xb0] sm:$0xff]
      %v304 = vld [vmem:[%s219 + $0xb8] sm:$0xff]
      %v305 = vld [vmem:[%s219 + $0xc0] sm:$0xff]
      %v306 = vld [vmem:[%s219 + $0xc8] sm:$0xff]
      %v307 = vld [vmem:[%s219 + $0xd0] sm:$0xff]
      %v308 = vld [vmem:[%s219 + $0xd8] sm:$0xff]
      %v309 = vld [vmem:[%s219 + $0xe0] sm:$0xff]
      %v310 = vld [vmem:[%s219 + $0xe8] sm:$0xff]
      %v311 = vld [vmem:[%s219 + $0xf0] sm:$0xff]
      %v312 = vld [vmem:[%s219 + $0xf8] sm:$0xff]
      %s313 = scalar_lea.vmem [#allocation2], 24
      %314 = vst.msk [vmem:[%s313 + $0x1] sm:$0xff] %vm225, %v281
      %315 = vst.msk [vmem:[%s313 + $0x9] sm:$0xff] %vm225, %v282
      %316 = vst.msk [vmem:[%s313 + $0x19] sm:$0xff] %vm225, %v283
      %317 = vst.msk [vmem:[%s313 + $0x21] sm:$0xff] %vm225, %v284
      %318 = vst.msk [vmem:[%s313 + $0x31] sm:$0xff] %vm225, %v285
      %319 = vst.msk [vmem:[%s313 + $0x39] sm:$0xff] %vm225, %v286
      %320 = vst.msk [vmem:[%s313 + $0x49] sm:$0xff] %vm225, %v287
      %321 = vst.msk [vmem:[%s313 + $0x51] sm:$0xff] %vm225, %v288
      %322 = vst.msk [vmem:[%s313 + $0x61] sm:$0xff] %vm225, %v289
      %323 = vst.msk [vmem:[%s313 + $0x69] sm:$0xff] %vm225, %v290
      %324 = vst.msk [vmem:[%s313 + $0x79] sm:$0xff] %vm225, %v291
      %325 = vst.msk [vmem:[%s313 + $0x81] sm:$0xff] %vm225, %v292
      %326 = vst.msk [vmem:[%s313 + $0x91] sm:$0xff] %vm225, %v293
      %327 = vst.msk [vmem:[%s313 + $0x99] sm:$0xff] %vm225, %v294
      %328 = vst.msk [vmem:[%s313 + $0xa9] sm:$0xff] %vm225, %v295
      %329 = vst.msk [vmem:[%s313 + $0xb1] sm:$0xff] %vm225, %v296
      %330 = vst.msk [vmem:[%s313 + $0xc1] sm:$0xff] %vm225, %v297
      %331 = vst.msk [vmem:[%s313 + $0xc9] sm:$0xff] %vm225, %v298
      %332 = vst.msk [vmem:[%s313 + $0xd9] sm:$0xff] %vm225, %v299
      %333 = vst.msk [vmem:[%s313 + $0xe1] sm:$0xff] %vm225, %v300
      %334 = vst.msk [vmem:[%s313 + $0xf1] sm:$0xff] %vm225, %v301
      %335 = vst.msk [vmem:[%s313 + $0xf9] sm:$0xff] %vm225, %v302
      %336 = vst.msk [vmem:[%s313 + $0x109] sm:$0xff] %vm225, %v303
      %337 = vst.msk [vmem:[%s313 + $0x111] sm:$0xff] %vm225, %v304
      %338 = vst.msk [vmem:[%s313 + $0x121] sm:$0xff] %vm225, %v305
      %339 = vst.msk [vmem:[%s313 + $0x129] sm:$0xff] %vm225, %v306
      %340 = vst.msk [vmem:[%s313 + $0x139] sm:$0xff] %vm225, %v307
      %341 = vst.msk [vmem:[%s313 + $0x141] sm:$0xff] %vm225, %v308
      %342 = vst.msk [vmem:[%s313 + $0x151] sm:$0xff] %vm225, %v309
      %343 = vst.msk [vmem:[%s313 + $0x159] sm:$0xff] %vm225, %v310
      %344 = vst.msk [vmem:[%s313 + $0x169] sm:$0xff] %vm225, %v311
      %345 = vst.msk [vmem:[%s313 + $0x171] sm:$0xff] %vm225, %v312
      %v346 = vld [vmem:[#allocation2] sm:$0xff]
      %v347 = vld [vmem:[#allocation2 + $0x8] sm:$0xff]
      %v348 = vld [vmem:[#allocation2 + $0x18] sm:$0xff]
      %v349 = vld [vmem:[#allocation2 + $0x20] sm:$0xff]
      %v350 = vld [vmem:[#allocation2 + $0x30] sm:$0xff]
      %v351 = vld [vmem:[#allocation2 + $0x38] sm:$0xff]
      %v352 = vld [vmem:[#allocation2 + $0x48] sm:$0xff]
      %v353 = vld [vmem:[#allocation2 + $0x50] sm:$0xff]
      %v354 = vld [vmem:[#allocation2 + $0x60] sm:$0xff]
      %v355 = vld [vmem:[#allocation2 + $0x68] sm:$0xff]
      %v356 = vld [vmem:[#allocation2 + $0x78] sm:$0xff]
      %v357 = vld [vmem:[#allocation2 + $0x80] sm:$0xff]
      %v358 = vld [vmem:[#allocation2 + $0x90] sm:$0xff]
      %v359 = vld [vmem:[#allocation2 + $0x98] sm:$0xff]
      %v360 = vld [vmem:[#allocation2 + $0xa8] sm:$0xff]
      %v361 = vld [vmem:[#allocation2 + $0xb0] sm:$0xff]
      %v362 = vld [vmem:[#allocation2 + $0xc0] sm:$0xff]
      %v363 = vld [vmem:[#allocation2 + $0xc8] sm:$0xff]
      %v364 = vld [vmem:[#allocation2 + $0xd8] sm:$0xff]
      %v365 = vld [vmem:[#allocation2 + $0xe0] sm:$0xff]
      %v366 = vld [vmem:[#allocation2 + $0xf0] sm:$0xff]
      %v367 = vld [vmem:[#allocation2 + $0xf8] sm:$0xff]
      %v368 = vld [vmem:[#allocation2 + $0x108] sm:$0xff]
      %v369 = vld [vmem:[#allocation2 + $0x110] sm:$0xff]
      %v370 = vld [vmem:[#allocation2 + $0x120] sm:$0xff]
      %v371 = vld [vmem:[#allocation2 + $0x128] sm:$0xff]
      %v372 = vld [vmem:[#allocation2 + $0x138] sm:$0xff]
      %v373 = vld [vmem:[#allocation2 + $0x140] sm:$0xff]
      %v374 = vld [vmem:[#allocation2 + $0x150] sm:$0xff]
      %v375 = vld [vmem:[#allocation2 + $0x158] sm:$0xff]
      %v376 = vld [vmem:[#allocation2 + $0x168] sm:$0xff]
      %v377 = vld [vmem:[#allocation2 + $0x170] sm:$0xff]
      %378 = vst.msk [vmem:[#allocation4] sm:$0xff] %vm225, %v346
      %379 = vst.msk [vmem:[#allocation4 + $0x8] sm:$0xff] %vm225, %v347
      %380 = vst.msk [vmem:[#allocation4 + $0x10] sm:$0xff] %vm225, %v348
      %381 = vst.msk [vmem:[#allocation4 + $0x18] sm:$0xff] %vm225, %v349
      %382 = vst.msk [vmem:[#allocation4 + $0x20] sm:$0xff] %vm225, %v350
      %383 = vst.msk [vmem:[#allocation4 + $0x28] sm:$0xff] %vm225, %v351
      %384 = vst.msk [vmem:[#allocation4 + $0x30] sm:$0xff] %vm225, %v352
      %385 = vst.msk [vmem:[#allocation4 + $0x38] sm:$0xff] %vm225, %v353
      %386 = vst.msk [vmem:[#allocation4 + $0x40] sm:$0xff] %vm225, %v354
      %387 = vst.msk [vmem:[#allocation4 + $0x48] sm:$0xff] %vm225, %v355
      %388 = vst.msk [vmem:[#allocation4 + $0x50] sm:$0xff] %vm225, %v356
      %389 = vst.msk [vmem:[#allocation4 + $0x58] sm:$0xff] %vm225, %v357
      %390 = vst.msk [vmem:[#allocation4 + $0x60] sm:$0xff] %vm225, %v358
      %391 = vst.msk [vmem:[#allocation4 + $0x68] sm:$0xff] %vm225, %v359
      %392 = vst.msk [vmem:[#allocation4 + $0x70] sm:$0xff] %vm225, %v360
      %393 = vst.msk [vmem:[#allocation4 + $0x78] sm:$0xff] %vm225, %v361
      %394 = vst.msk [vmem:[#allocation4 + $0x80] sm:$0xff] %vm225, %v362
      %395 = vst.msk [vmem:[#allocation4 + $0x88] sm:$0xff] %vm225, %v363
      %396 = vst.msk [vmem:[#allocation4 + $0x90] sm:$0xff] %vm225, %v364
      %397 = vst.msk [vmem:[#allocation4 + $0x98] sm:$0xff] %vm225, %v365
      %398 = vst.msk [vmem:[#allocation4 + $0xa0] sm:$0xff] %vm225, %v366
      %399 = vst.msk [vmem:[#allocation4 + $0xa8] sm:$0xff] %vm225, %v367
      %400 = vst.msk [vmem:[#allocation4 + $0xb0] sm:$0xff] %vm225, %v368
      %401 = vst.msk [vmem:[#allocation4 + $0xb8] sm:$0xff] %vm225, %v369
      %402 = vst.msk [vmem:[#allocation4 + $0xc0] sm:$0xff] %vm225, %v370
      %403 = vst.msk [vmem:[#allocation4 + $0xc8] sm:$0xff] %vm225, %v371
      %404 = vst.msk [vmem:[#allocation4 + $0xd0] sm:$0xff] %vm225, %v372
      %405 = vst.msk [vmem:[#allocation4 + $0xd8] sm:$0xff] %vm225, %v373
      %406 = vst.msk [vmem:[#allocation4 + $0xe0] sm:$0xff] %vm225, %v374
      %407 = vst.msk [vmem:[#allocation4 + $0xe8] sm:$0xff] %vm225, %v375
      %408 = vst.msk [vmem:[#allocation4 + $0xf0] sm:$0xff] %vm225, %v376
      %409 = vst.msk [vmem:[#allocation4 + $0xf8] sm:$0xff] %vm225, %v377
      %v410 = vld [vmem:[#allocation2 + $0x1] sm:$0xff]
      %v411 = vld [vmem:[#allocation2 + $0x9] sm:$0xff]
      %v412 = vld [vmem:[#allocation2 + $0x19] sm:$0xff]
      %v413 = vld [vmem:[#allocation2 + $0x21] sm:$0xff]
      %v414 = vld [vmem:[#allocation2 + $0x31] sm:$0xff]
      %v415 = vld [vmem:[#allocation2 + $0x39] sm:$0xff]
      %v416 = vld [vmem:[#allocation2 + $0x49] sm:$0xff]
      %v417 = vld [vmem:[#allocation2 + $0x51] sm:$0xff]
      %v418 = vld [vmem:[#allocation2 + $0x61] sm:$0xff]
      %v419 = vld [vmem:[#allocation2 + $0x69] sm:$0xff]
      %v420 = vld [vmem:[#allocation2 + $0x79] sm:$0xff]
      %v421 = vld [vmem:[#allocation2 + $0x81] sm:$0xff]
      %v422 = vld [vmem:[#allocation2 + $0x91] sm:$0xff]
      %v423 = vld [vmem:[#allocation2 + $0x99] sm:$0xff]
      %v424 = vld [vmem:[#allocation2 + $0xa9] sm:$0xff]
      %v425 = vld [vmem:[#allocation2 + $0xb1] sm:$0xff]
      %v426 = vld [vmem:[#allocation2 + $0xc1] sm:$0xff]
      %v427 = vld [vmem:[#allocation2 + $0xc9] sm:$0xff]
      %v428 = vld [vmem:[#allocation2 + $0xd9] sm:$0xff]
      %v429 = vld [vmem:[#allocation2 + $0xe1] sm:$0xff]
      %v430 = vld [vmem:[#allocation2 + $0xf1] sm:$0xff]
      %v431 = vld [vmem:[#allocation2 + $0xf9] sm:$0xff]
      %v432 = vld [vmem:[#allocation2 + $0x109] sm:$0xff]
      %v433 = vld [vmem:[#allocation2 + $0x111] sm:$0xff]
      %v434 = vld [vmem:[#allocation2 + $0x121] sm:$0xff]
      %v435 = vld [vmem:[#allocation2 + $0x129] sm:$0xff]
      %v436 = vld [vmem:[#allocation2 + $0x139] sm:$0xff]
      %v437 = vld [vmem:[#allocation2 + $0x141] sm:$0xff]
      %v438 = vld [vmem:[#allocation2 + $0x151] sm:$0xff]
      %v439 = vld [vmem:[#allocation2 + $0x159] sm:$0xff]
      %v440 = vld [vmem:[#allocation2 + $0x169] sm:$0xff]
      %v441 = vld [vmem:[#allocation2 + $0x171] sm:$0xff]
      %474 = vrot.lane.b32.xlu0 %v410, 4
      %v475 = vpop.permute.xlu0 %474
      %476 = vrot.lane.b32.xlu0 %v411, 4
      %v477 = vpop.permute.xlu0 %476
      %478 = vrot.lane.b32.xlu0 %v412, 4
      %v479 = vpop.permute.xlu0 %478
      %480 = vrot.lane.b32.xlu0 %v413, 4
      %v481 = vpop.permute.xlu0 %480
      %482 = vrot.lane.b32.xlu0 %v414, 4
      %v483 = vpop.permute.xlu0 %482
      %484 = vrot.lane.b32.xlu0 %v415, 4
      %v485 = vpop.permute.xlu0 %484
      %486 = vrot.lane.b32.xlu0 %v416, 4
      %v487 = vpop.permute.xlu0 %486
      %488 = vrot.lane.b32.xlu0 %v417, 4
      %v489 = vpop.permute.xlu0 %488
      %490 = vrot.lane.b32.xlu0 %v418, 4
      %v491 = vpop.permute.xlu0 %490
      %492 = vrot.lane.b32.xlu0 %v419, 4
      %v493 = vpop.permute.xlu0 %492
      %494 = vrot.lane.b32.xlu0 %v420, 4
      %v495 = vpop.permute.xlu0 %494
      %496 = vrot.lane.b32.xlu0 %v421, 4
      %v497 = vpop.permute.xlu0 %496
      %498 = vrot.lane.b32.xlu0 %v422, 4
      %v499 = vpop.permute.xlu0 %498
      %500 = vrot.lane.b32.xlu0 %v423, 4
      %v501 = vpop.permute.xlu0 %500
      %502 = vrot.lane.b32.xlu0 %v424, 4
      %v503 = vpop.permute.xlu0 %502
      %504 = vrot.lane.b32.xlu0 %v425, 4
      %v505 = vpop.permute.xlu0 %504
      %506 = vrot.lane.b32.xlu0 %v426, 4
      %v507 = vpop.permute.xlu0 %506
      %508 = vrot.lane.b32.xlu0 %v427, 4
      %v509 = vpop.permute.xlu0 %508
      %510 = vrot.lane.b32.xlu0 %v428, 4
      %v511 = vpop.permute.xlu0 %510
      %512 = vrot.lane.b32.xlu0 %v429, 4
      %v513 = vpop.permute.xlu0 %512
      %514 = vrot.lane.b32.xlu0 %v430, 4
      %v515 = vpop.permute.xlu0 %514
      %516 = vrot.lane.b32.xlu0 %v431, 4
      %v517 = vpop.permute.xlu0 %516
      %518 = vrot.lane.b32.xlu0 %v432, 4
      %v519 = vpop.permute.xlu0 %518
      %520 = vrot.lane.b32.xlu0 %v433, 4
      %v521 = vpop.permute.xlu0 %520
      %522 = vrot.lane.b32.xlu0 %v434, 4
      %v523 = vpop.permute.xlu0 %522
      %524 = vrot.lane.b32.xlu0 %v435, 4
      %v525 = vpop.permute.xlu0 %524
      %526 = vrot.lane.b32.xlu0 %v436, 4
      %v527 = vpop.permute.xlu0 %526
      %528 = vrot.lane.b32.xlu0 %v437, 4
      %v529 = vpop.permute.xlu0 %528
      %530 = vrot.lane.b32.xlu0 %v438, 4
      %v531 = vpop.permute.xlu0 %530
      %532 = vrot.lane.b32.xlu0 %v439, 4
      %v533 = vpop.permute.xlu0 %532
      %534 = vrot.lane.b32.xlu0 %v440, 4
      %v535 = vpop.permute.xlu0 %534
      %536 = vrot.lane.b32.xlu0 %v441, 4
      %v537 = vpop.permute.xlu0 %536
      %vm570 = vcmask 64544
      %571 = vst.msk [vmem:[#allocation4] sm:$0xff] %vm570, %v475
      %572 = vst.msk [vmem:[#allocation4 + $0x8] sm:$0xff] %vm570, %v477
      %573 = vst.msk [vmem:[#allocation4 + $0x10] sm:$0xff] %vm570, %v479
      %574 = vst.msk [vmem:[#allocation4 + $0x18] sm:$0xff] %vm570, %v481
      %575 = vst.msk [vmem:[#allocation4 + $0x20] sm:$0xff] %vm570, %v483
      %576 = vst.msk [vmem:[#allocation4 + $0x28] sm:$0xff] %vm570, %v485
      %577 = vst.msk [vmem:[#allocation4 + $0x30] sm:$0xff] %vm570, %v487
      %578 = vst.msk [vmem:[#allocation4 + $0x38] sm:$0xff] %vm570, %v489
      %579 = vst.msk [vmem:[#allocation4 + $0x40] sm:$0xff] %vm570, %v491
      %580 = vst.msk [vmem:[#allocation4 + $0x48] sm:$0xff] %vm570, %v493
      %581 = vst.msk [vmem:[#allocation4 + $0x50] sm:$0xff] %vm570, %v495
      %582 = vst.msk [vmem:[#allocation4 + $0x58] sm:$0xff] %vm570, %v497
      %583 = vst.msk [vmem:[#allocation4 + $0x60] sm:$0xff] %vm570, %v499
      %584 = vst.msk [vmem:[#allocation4 + $0x68] sm:$0xff] %vm570, %v501
      %585 = vst.msk [vmem:[#allocation4 + $0x70] sm:$0xff] %vm570, %v503
      %586 = vst.msk [vmem:[#allocation4 + $0x78] sm:$0xff] %vm570, %v505
      %587 = vst.msk [vmem:[#allocation4 + $0x80] sm:$0xff] %vm570, %v507
      %588 = vst.msk [vmem:[#allocation4 + $0x88] sm:$0xff] %vm570, %v509
      %589 = vst.msk [vmem:[#allocation4 + $0x90] sm:$0xff] %vm570, %v511
      %590 = vst.msk [vmem:[#allocation4 + $0x98] sm:$0xff] %vm570, %v513
      %591 = vst.msk [vmem:[#allocation4 + $0xa0] sm:$0xff] %vm570, %v515
      %592 = vst.msk [vmem:[#allocation4 + $0xa8] sm:$0xff] %vm570, %v517
      %593 = vst.msk [vmem:[#allocation4 + $0xb0] sm:$0xff] %vm570, %v519
      %594 = vst.msk [vmem:[#allocation4 + $0xb8] sm:$0xff] %vm570, %v521
      %595 = vst.msk [vmem:[#allocation4 + $0xc0] sm:$0xff] %vm570, %v523
      %596 = vst.msk [vmem:[#allocation4 + $0xc8] sm:$0xff] %vm570, %v525
      %597 = vst.msk [vmem:[#allocation4 + $0xd0] sm:$0xff] %vm570, %v527
      %598 = vst.msk [vmem:[#allocation4 + $0xd8] sm:$0xff] %vm570, %v529
      %599 = vst.msk [vmem:[#allocation4 + $0xe0] sm:$0xff] %vm570, %v531
      %600 = vst.msk [vmem:[#allocation4 + $0xe8] sm:$0xff] %vm570, %v533
      %601 = vst.msk [vmem:[#allocation4 + $0xf0] sm:$0xff] %vm570, %v535
      %602 = vst.msk [vmem:[#allocation4 + $0xf8] sm:$0xff] %vm570, %v537
      %v603 = vld [vmem:[#allocation2 + $0x2] sm:$0xff]
      %v604 = vld [vmem:[#allocation2 + $0xa] sm:$0xff]
      %v605 = vld [vmem:[#allocation2 + $0x1a] sm:$0xff]
      %v606 = vld [vmem:[#allocation2 + $0x22] sm:$0xff]
      %v607 = vld [vmem:[#allocation2 + $0x32] sm:$0xff]
      %v608 = vld [vmem:[#allocation2 + $0x3a] sm:$0xff]
      %v609 = vld [vmem:[#allocation2 + $0x4a] sm:$0xff]
      %v610 = vld [vmem:[#allocation2 + $0x52] sm:$0xff]
      %v611 = vld [vmem:[#allocation2 + $0x62] sm:$0xff]
      %v612 = vld [vmem:[#allocation2 + $0x6a] sm:$0xff]
      %v613 = vld [vmem:[#allocation2 + $0x7a] sm:$0xff]
      %v614 = vld [vmem:[#allocation2 + $0x82] sm:$0xff]
      %v615 = vld [vmem:[#allocation2 + $0x92] sm:$0xff]
      %v616 = vld [vmem:[#allocation2 + $0x9a] sm:$0xff]
      %v617 = vld [vmem:[#allocation2 + $0xaa] sm:$0xff]
      %v618 = vld [vmem:[#allocation2 + $0xb2] sm:$0xff]
      %v619 = vld [vmem:[#allocation2 + $0xc2] sm:$0xff]
      %v620 = vld [vmem:[#allocation2 + $0xca] sm:$0xff]
      %v621 = vld [vmem:[#allocation2 + $0xda] sm:$0xff]
      %v622 = vld [vmem:[#allocation2 + $0xe2] sm:$0xff]
      %v623 = vld [vmem:[#allocation2 + $0xf2] sm:$0xff]
      %v624 = vld [vmem:[#allocation2 + $0xfa] sm:$0xff]
      %v625 = vld [vmem:[#allocation2 + $0x10a] sm:$0xff]
      %v626 = vld [vmem:[#allocation2 + $0x112] sm:$0xff]
      %v627 = vld [vmem:[#allocation2 + $0x122] sm:$0xff]
      %v628 = vld [vmem:[#allocation2 + $0x12a] sm:$0xff]
      %v629 = vld [vmem:[#allocation2 + $0x13a] sm:$0xff]
      %v630 = vld [vmem:[#allocation2 + $0x142] sm:$0xff]
      %v631 = vld [vmem:[#allocation2 + $0x152] sm:$0xff]
      %v632 = vld [vmem:[#allocation2 + $0x15a] sm:$0xff]
      %v633 = vld [vmem:[#allocation2 + $0x16a] sm:$0xff]
      %v634 = vld [vmem:[#allocation2 + $0x172] sm:$0xff]
      %667 = vrot.lane.b32.xlu0 %v603, 8
      %v668 = vpop.permute.xlu0 %667
      %669 = vrot.lane.b32.xlu0 %v604, 8
      %v670 = vpop.permute.xlu0 %669
      %671 = vrot.lane.b32.xlu0 %v605, 8
      %v672 = vpop.permute.xlu0 %671
      %673 = vrot.lane.b32.xlu0 %v606, 8
      %v674 = vpop.permute.xlu0 %673
      %675 = vrot.lane.b32.xlu0 %v607, 8
      %v676 = vpop.permute.xlu0 %675
      %677 = vrot.lane.b32.xlu0 %v608, 8
      %v678 = vpop.permute.xlu0 %677
      %679 = vrot.lane.b32.xlu0 %v609, 8
      %v680 = vpop.permute.xlu0 %679
      %681 = vrot.lane.b32.xlu0 %v610, 8
      %v682 = vpop.permute.xlu0 %681
      %683 = vrot.lane.b32.xlu0 %v611, 8
      %v684 = vpop.permute.xlu0 %683
      %685 = vrot.lane.b32.xlu0 %v612, 8
      %v686 = vpop.permute.xlu0 %685
      %687 = vrot.lane.b32.xlu0 %v613, 8
      %v688 = vpop.permute.xlu0 %687
      %689 = vrot.lane.b32.xlu0 %v614, 8
      %v690 = vpop.permute.xlu0 %689
      %691 = vrot.lane.b32.xlu0 %v615, 8
      %v692 = vpop.permute.xlu0 %691
      %693 = vrot.lane.b32.xlu0 %v616, 8
      %v694 = vpop.permute.xlu0 %693
      %695 = vrot.lane.b32.xlu0 %v617, 8
      %v696 = vpop.permute.xlu0 %695
      %697 = vrot.lane.b32.xlu0 %v618, 8
      %v698 = vpop.permute.xlu0 %697
      %699 = vrot.lane.b32.xlu0 %v619, 8
      %v700 = vpop.permute.xlu0 %699
      %701 = vrot.lane.b32.xlu0 %v620, 8
      %v702 = vpop.permute.xlu0 %701
      %703 = vrot.lane.b32.xlu0 %v621, 8
      %v704 = vpop.permute.xlu0 %703
      %705 = vrot.lane.b32.xlu0 %v622, 8
      %v706 = vpop.permute.xlu0 %705
      %707 = vrot.lane.b32.xlu0 %v623, 8
      %v708 = vpop.permute.xlu0 %707
      %709 = vrot.lane.b32.xlu0 %v624, 8
      %v710 = vpop.permute.xlu0 %709
      %711 = vrot.lane.b32.xlu0 %v625, 8
      %v712 = vpop.permute.xlu0 %711
      %713 = vrot.lane.b32.xlu0 %v626, 8
      %v714 = vpop.permute.xlu0 %713
      %715 = vrot.lane.b32.xlu0 %v627, 8
      %v716 = vpop.permute.xlu0 %715
      %717 = vrot.lane.b32.xlu0 %v628, 8
      %v718 = vpop.permute.xlu0 %717
      %719 = vrot.lane.b32.xlu0 %v629, 8
      %v720 = vpop.permute.xlu0 %719
      %721 = vrot.lane.b32.xlu0 %v630, 8
      %v722 = vpop.permute.xlu0 %721
      %723 = vrot.lane.b32.xlu0 %v631, 8
      %v724 = vpop.permute.xlu0 %723
      %725 = vrot.lane.b32.xlu0 %v632, 8
      %v726 = vpop.permute.xlu0 %725
      %727 = vrot.lane.b32.xlu0 %v633, 8
      %v728 = vpop.permute.xlu0 %727
      %729 = vrot.lane.b32.xlu0 %v634, 8
      %v730 = vpop.permute.xlu0 %729
      %vm763 = vcmask 97344
      %764 = vst.msk [vmem:[#allocation4] sm:$0xff] %vm763, %v668
      %765 = vst.msk [vmem:[#allocation4 + $0x8] sm:$0xff] %vm763, %v670
      %766 = vst.msk [vmem:[#allocation4 + $0x10] sm:$0xff] %vm763, %v672
      %767 = vst.msk [vmem:[#allocation4 + $0x18] sm:$0xff] %vm763, %v674
      %768 = vst.msk [vmem:[#allocation4 + $0x20] sm:$0xff] %vm763, %v676
      %769 = vst.msk [vmem:[#allocation4 + $0x28] sm:$0xff] %vm763, %v678
      %770 = vst.msk [vmem:[#allocation4 + $0x30] sm:$0xff] %vm763, %v680
      %771 = vst.msk [vmem:[#allocation4 + $0x38] sm:$0xff] %vm763, %v682
      %772 = vst.msk [vmem:[#allocation4 + $0x40] sm:$0xff] %vm763, %v684
      %773 = vst.msk [vmem:[#allocation4 + $0x48] sm:$0xff] %vm763, %v686
      %774 = vst.msk [vmem:[#allocation4 + $0x50] sm:$0xff] %vm763, %v688
      %775 = vst.msk [vmem:[#allocation4 + $0x58] sm:$0xff] %vm763, %v690
      %776 = vst.msk [vmem:[#allocation4 + $0x60] sm:$0xff] %vm763, %v692
      %777 = vst.msk [vmem:[#allocation4 + $0x68] sm:$0xff] %vm763, %v694
      %778 = vst.msk [vmem:[#allocation4 + $0x70] sm:$0xff] %vm763, %v696
      %779 = vst.msk [vmem:[#allocation4 + $0x78] sm:$0xff] %vm763, %v698
      %780 = vst.msk [vmem:[#allocation4 + $0x80] sm:$0xff] %vm763, %v700
      %781 = vst.msk [vmem:[#allocation4 + $0x88] sm:$0xff] %vm763, %v702
      %782 = vst.msk [vmem:[#allocation4 + $0x90] sm:$0xff] %vm763, %v704
      %783 = vst.msk [vmem:[#allocation4 + $0x98] sm:$0xff] %vm763, %v706
      %784 = vst.msk [vmem:[#allocation4 + $0xa0] sm:$0xff] %vm763, %v708
      %785 = vst.msk [vmem:[#allocation4 + $0xa8] sm:$0xff] %vm763, %v710
      %786 = vst.msk [vmem:[#allocation4 + $0xb0] sm:$0xff] %vm763, %v712
      %787 = vst.msk [vmem:[#allocation4 + $0xb8] sm:$0xff] %vm763, %v714
      %788 = vst.msk [vmem:[#allocation4 + $0xc0] sm:$0xff] %vm763, %v716
      %789 = vst.msk [vmem:[#allocation4 + $0xc8] sm:$0xff] %vm763, %v718
      %790 = vst.msk [vmem:[#allocation4 + $0xd0] sm:$0xff] %vm763, %v720
      %791 = vst.msk [vmem:[#allocation4 + $0xd8] sm:$0xff] %vm763, %v722
      %792 = vst.msk [vmem:[#allocation4 + $0xe0] sm:$0xff] %vm763, %v724
      %793 = vst.msk [vmem:[#allocation4 + $0xe8] sm:$0xff] %vm763, %v726
      %794 = vst.msk [vmem:[#allocation4 + $0xf0] sm:$0xff] %vm763, %v728
      %795 = vst.msk [vmem:[#allocation4 + $0xf8] sm:$0xff] %vm763, %v730
      %v796 = vld [vmem:[%s313] sm:$0xff]
      %v797 = vld [vmem:[%s313 + $0x8] sm:$0xff]
      %v798 = vld [vmem:[%s313 + $0x18] sm:$0xff]
      %v799 = vld [vmem:[%s313 + $0x20] sm:$0xff]
      %v800 = vld [vmem:[%s313 + $0x30] sm:$0xff]
      %v801 = vld [vmem:[%s313 + $0x38] sm:$0xff]
      %v802 = vld [vmem:[%s313 + $0x48] sm:$0xff]
      %v803 = vld [vmem:[%s313 + $0x50] sm:$0xff]
      %v804 = vld [vmem:[%s313 + $0x60] sm:$0xff]
      %v805 = vld [vmem:[%s313 + $0x68] sm:$0xff]
      %v806 = vld [vmem:[%s313 + $0x78] sm:$0xff]
      %v807 = vld [vmem:[%s313 + $0x80] sm:$0xff]
      %v808 = vld [vmem:[%s313 + $0x90] sm:$0xff]
      %v809 = vld [vmem:[%s313 + $0x98] sm:$0xff]
      %v810 = vld [vmem:[%s313 + $0xa8] sm:$0xff]
      %v811 = vld [vmem:[%s313 + $0xb0] sm:$0xff]
      %v812 = vld [vmem:[%s313 + $0xc0] sm:$0xff]
      %v813 = vld [vmem:[%s313 + $0xc8] sm:$0xff]
      %v814 = vld [vmem:[%s313 + $0xd8] sm:$0xff]
      %v815 = vld [vmem:[%s313 + $0xe0] sm:$0xff]
      %v816 = vld [vmem:[%s313 + $0xf0] sm:$0xff]
      %v817 = vld [vmem:[%s313 + $0xf8] sm:$0xff]
      %v818 = vld [vmem:[%s313 + $0x108] sm:$0xff]
      %v819 = vld [vmem:[%s313 + $0x110] sm:$0xff]
      %v820 = vld [vmem:[%s313 + $0x120] sm:$0xff]
      %v821 = vld [vmem:[%s313 + $0x128] sm:$0xff]
      %v822 = vld [vmem:[%s313 + $0x138] sm:$0xff]
      %v823 = vld [vmem:[%s313 + $0x140] sm:$0xff]
      %v824 = vld [vmem:[%s313 + $0x150] sm:$0xff]
      %v825 = vld [vmem:[%s313 + $0x158] sm:$0xff]
      %v826 = vld [vmem:[%s313 + $0x168] sm:$0xff]
      %v827 = vld [vmem:[%s313 + $0x170] sm:$0xff]
      %860 = vrot.lane.b32.xlu0 %v796, 12
      %v861 = vpop.permute.xlu0 %860
      %862 = vrot.lane.b32.xlu0 %v797, 12
      %v863 = vpop.permute.xlu0 %862
      %864 = vrot.lane.b32.xlu0 %v798, 12
      %v865 = vpop.permute.xlu0 %864
      %866 = vrot.lane.b32.xlu0 %v799, 12
      %v867 = vpop.permute.xlu0 %866
      %868 = vrot.lane.b32.xlu0 %v800, 12
      %v869 = vpop.permute.xlu0 %868
      %870 = vrot.lane.b32.xlu0 %v801, 12
      %v871 = vpop.permute.xlu0 %870
      %872 = vrot.lane.b32.xlu0 %v802, 12
      %v873 = vpop.permute.xlu0 %872
      %874 = vrot.lane.b32.xlu0 %v803, 12
      %v875 = vpop.permute.xlu0 %874
      %876 = vrot.lane.b32.xlu0 %v804, 12
      %v877 = vpop.permute.xlu0 %876
      %878 = vrot.lane.b32.xlu0 %v805, 12
      %v879 = vpop.permute.xlu0 %878
      %880 = vrot.lane.b32.xlu0 %v806, 12
      %v881 = vpop.permute.xlu0 %880
      %882 = vrot.lane.b32.xlu0 %v807, 12
      %v883 = vpop.permute.xlu0 %882
      %884 = vrot.lane.b32.xlu0 %v808, 12
      %v885 = vpop.permute.xlu0 %884
      %886 = vrot.lane.b32.xlu0 %v809, 12
      %v887 = vpop.permute.xlu0 %886
      %888 = vrot.lane.b32.xlu0 %v810, 12
      %v889 = vpop.permute.xlu0 %888
      %890 = vrot.lane.b32.xlu0 %v811, 12
      %v891 = vpop.permute.xlu0 %890
      %892 = vrot.lane.b32.xlu0 %v812, 12
      %v893 = vpop.permute.xlu0 %892
      %894 = vrot.lane.b32.xlu0 %v813, 12
      %v895 = vpop.permute.xlu0 %894
      %896 = vrot.lane.b32.xlu0 %v814, 12
      %v897 = vpop.permute.xlu0 %896
      %898 = vrot.lane.b32.xlu0 %v815, 12
      %v899 = vpop.permute.xlu0 %898
      %900 = vrot.lane.b32.xlu0 %v816, 12
      %v901 = vpop.permute.xlu0 %900
      %902 = vrot.lane.b32.xlu0 %v817, 12
      %v903 = vpop.permute.xlu0 %902
      %904 = vrot.lane.b32.xlu0 %v818, 12
      %v905 = vpop.permute.xlu0 %904
      %906 = vrot.lane.b32.xlu0 %v819, 12
      %v907 = vpop.permute.xlu0 %906
      %908 = vrot.lane.b32.xlu0 %v820, 12
      %v909 = vpop.permute.xlu0 %908
      %910 = vrot.lane.b32.xlu0 %v821, 12
      %v911 = vpop.permute.xlu0 %910
      %912 = vrot.lane.b32.xlu0 %v822, 12
      %v913 = vpop.permute.xlu0 %912
      %914 = vrot.lane.b32.xlu0 %v823, 12
      %v915 = vpop.permute.xlu0 %914
      %916 = vrot.lane.b32.xlu0 %v824, 12
      %v917 = vpop.permute.xlu0 %916
      %918 = vrot.lane.b32.xlu0 %v825, 12
      %v919 = vpop.permute.xlu0 %918
      %920 = vrot.lane.b32.xlu0 %v826, 12
      %v921 = vpop.permute.xlu0 %920
      %922 = vrot.lane.b32.xlu0 %v827, 12
      %v923 = vpop.permute.xlu0 %922
      %vm956 = vcmask 130144
      %957 = vst.msk [vmem:[#allocation4] sm:$0xff] %vm956, %v861
      %958 = vst.msk [vmem:[#allocation4 + $0x8] sm:$0xff] %vm956, %v863
      %959 = vst.msk [vmem:[#allocation4 + $0x10] sm:$0xff] %vm956, %v865
      %960 = vst.msk [vmem:[#allocation4 + $0x18] sm:$0xff] %vm956, %v867
      %961 = vst.msk [vmem:[#allocation4 + $0x20] sm:$0xff] %vm956, %v869
      %962 = vst.msk [vmem:[#allocation4 + $0x28] sm:$0xff] %vm956, %v871
      %963 = vst.msk [vmem:[#allocation4 + $0x30] sm:$0xff] %vm956, %v873
      %964 = vst.msk [vmem:[#allocation4 + $0x38] sm:$0xff] %vm956, %v875
      %965 = vst.msk [vmem:[#allocation4 + $0x40] sm:$0xff] %vm956, %v877
      %966 = vst.msk [vmem:[#allocation4 + $0x48] sm:$0xff] %vm956, %v879
      %967 = vst.msk [vmem:[#allocation4 + $0x50] sm:$0xff] %vm956, %v881
      %968 = vst.msk [vmem:[#allocation4 + $0x58] sm:$0xff] %vm956, %v883
      %969 = vst.msk [vmem:[#allocation4 + $0x60] sm:$0xff] %vm956, %v885
      %970 = vst.msk [vmem:[#allocation4 + $0x68] sm:$0xff] %vm956, %v887
      %971 = vst.msk [vmem:[#allocation4 + $0x70] sm:$0xff] %vm956, %v889
      %972 = vst.msk [vmem:[#allocation4 + $0x78] sm:$0xff] %vm956, %v891
      %973 = vst.msk [vmem:[#allocation4 + $0x80] sm:$0xff] %vm956, %v893
      %974 = vst.msk [vmem:[#allocation4 + $0x88] sm:$0xff] %vm956, %v895
      %975 = vst.msk [vmem:[#allocation4 + $0x90] sm:$0xff] %vm956, %v897
      %976 = vst.msk [vmem:[#allocation4 + $0x98] sm:$0xff] %vm956, %v899
      %977 = vst.msk [vmem:[#allocation4 + $0xa0] sm:$0xff] %vm956, %v901
      %978 = vst.msk [vmem:[#allocation4 + $0xa8] sm:$0xff] %vm956, %v903
      %979 = vst.msk [vmem:[#allocation4 + $0xb0] sm:$0xff] %vm956, %v905
      %980 = vst.msk [vmem:[#allocation4 + $0xb8] sm:$0xff] %vm956, %v907
      %981 = vst.msk [vmem:[#allocation4 + $0xc0] sm:$0xff] %vm956, %v909
      %982 = vst.msk [vmem:[#allocation4 + $0xc8] sm:$0xff] %vm956, %v911
      %983 = vst.msk [vmem:[#allocation4 + $0xd0] sm:$0xff] %vm956, %v913
      %984 = vst.msk [vmem:[#allocation4 + $0xd8] sm:$0xff] %vm956, %v915
      %985 = vst.msk [vmem:[#allocation4 + $0xe0] sm:$0xff] %vm956, %v917
      %986 = vst.msk [vmem:[#allocation4 + $0xe8] sm:$0xff] %vm956, %v919
      %987 = vst.msk [vmem:[#allocation4 + $0xf0] sm:$0xff] %vm956, %v921
      %988 = vst.msk [vmem:[#allocation4 + $0xf8] sm:$0xff] %vm956, %v923
      %v989 = vld [vmem:[%s313 + $0x1] sm:$0xff]
      %v990 = vld [vmem:[%s313 + $0x9] sm:$0xff]
      %v991 = vld [vmem:[%s313 + $0x19] sm:$0xff]
      %v992 = vld [vmem:[%s313 + $0x21] sm:$0xff]
      %v993 = vld [vmem:[%s313 + $0x31] sm:$0xff]
      %v994 = vld [vmem:[%s313 + $0x39] sm:$0xff]
      %v995 = vld [vmem:[%s313 + $0x49] sm:$0xff]
      %v996 = vld [vmem:[%s313 + $0x51] sm:$0xff]
      %v997 = vld [vmem:[%s313 + $0x61] sm:$0xff]
      %v998 = vld [vmem:[%s313 + $0x69] sm:$0xff]
      %v999 = vld [vmem:[%s313 + $0x79] sm:$0xff]
      %v1000 = vld [vmem:[%s313 + $0x81] sm:$0xff]
      %v1001 = vld [vmem:[%s313 + $0x91] sm:$0xff]
      %v1002 = vld [vmem:[%s313 + $0x99] sm:$0xff]
      %v1003 = vld [vmem:[%s313 + $0xa9] sm:$0xff]
      %v1004 = vld [vmem:[%s313 + $0xb1] sm:$0xff]
      %v1005 = vld [vmem:[%s313 + $0xc1] sm:$0xff]
      %v1006 = vld [vmem:[%s313 + $0xc9] sm:$0xff]
      %v1007 = vld [vmem:[%s313 + $0xd9] sm:$0xff]
      %v1008 = vld [vmem:[%s313 + $0xe1] sm:$0xff]
      %v1009 = vld [vmem:[%s313 + $0xf1] sm:$0xff]
      %v1010 = vld [vmem:[%s313 + $0xf9] sm:$0xff]
      %v1011 = vld [vmem:[%s313 + $0x109] sm:$0xff]
      %v1012 = vld [vmem:[%s313 + $0x111] sm:$0xff]
      %v1013 = vld [vmem:[%s313 + $0x121] sm:$0xff]
      %v1014 = vld [vmem:[%s313 + $0x129] sm:$0xff]
      %v1015 = vld [vmem:[%s313 + $0x139] sm:$0xff]
      %v1016 = vld [vmem:[%s313 + $0x141] sm:$0xff]
      %v1017 = vld [vmem:[%s313 + $0x151] sm:$0xff]
      %v1018 = vld [vmem:[%s313 + $0x159] sm:$0xff]
      %v1019 = vld [vmem:[%s313 + $0x169] sm:$0xff]
      %v1020 = vld [vmem:[%s313 + $0x171] sm:$0xff]
      %1053 = vrot.lane.b32.xlu0 %v989, 16
      %v1054 = vpop.permute.xlu0 %1053
      %1055 = vrot.lane.b32.xlu0 %v990, 16
      %v1056 = vpop.permute.xlu0 %1055
      %1057 = vrot.lane.b32.xlu0 %v991, 16
      %v1058 = vpop.permute.xlu0 %1057
      %1059 = vrot.lane.b32.xlu0 %v992, 16
      %v1060 = vpop.permute.xlu0 %1059
      %1061 = vrot.lane.b32.xlu0 %v993, 16
      %v1062 = vpop.permute.xlu0 %1061
      %1063 = vrot.lane.b32.xlu0 %v994, 16
      %v1064 = vpop.permute.xlu0 %1063
      %1065 = vrot.lane.b32.xlu0 %v995, 16
      %v1066 = vpop.permute.xlu0 %1065
      %1067 = vrot.lane.b32.xlu0 %v996, 16
      %v1068 = vpop.permute.xlu0 %1067
      %1069 = vrot.lane.b32.xlu0 %v997, 16
      %v1070 = vpop.permute.xlu0 %1069
      %1071 = vrot.lane.b32.xlu0 %v998, 16
      %v1072 = vpop.permute.xlu0 %1071
      %1073 = vrot.lane.b32.xlu0 %v999, 16
      %v1074 = vpop.permute.xlu0 %1073
      %1075 = vrot.lane.b32.xlu0 %v1000, 16
      %v1076 = vpop.permute.xlu0 %1075
      %1077 = vrot.lane.b32.xlu0 %v1001, 16
      %v1078 = vpop.permute.xlu0 %1077
      %1079 = vrot.lane.b32.xlu0 %v1002, 16
      %v1080 = vpop.permute.xlu0 %1079
      %1081 = vrot.lane.b32.xlu0 %v1003, 16
      %v1082 = vpop.permute.xlu0 %1081
      %1083 = vrot.lane.b32.xlu0 %v1004, 16
      %v1084 = vpop.permute.xlu0 %1083
      %1085 = vrot.lane.b32.xlu0 %v1005, 16
      %v1086 = vpop.permute.xlu0 %1085
      %1087 = vrot.lane.b32.xlu0 %v1006, 16
      %v1088 = vpop.permute.xlu0 %1087
      %1089 = vrot.lane.b32.xlu0 %v1007, 16
      %v1090 = vpop.permute.xlu0 %1089
      %1091 = vrot.lane.b32.xlu0 %v1008, 16
      %v1092 = vpop.permute.xlu0 %1091
      %1093 = vrot.lane.b32.xlu0 %v1009, 16
      %v1094 = vpop.permute.xlu0 %1093
      %1095 = vrot.lane.b32.xlu0 %v1010, 16
      %v1096 = vpop.permute.xlu0 %1095
      %1097 = vrot.lane.b32.xlu0 %v1011, 16
      %v1098 = vpop.permute.xlu0 %1097
      %1099 = vrot.lane.b32.xlu0 %v1012, 16
      %v1100 = vpop.permute.xlu0 %1099
      %1101 = vrot.lane.b32.xlu0 %v1013, 16
      %v1102 = vpop.permute.xlu0 %1101
      %1103 = vrot.lane.b32.xlu0 %v1014, 16
      %v1104 = vpop.permute.xlu0 %1103
      %1105 = vrot.lane.b32.xlu0 %v1015, 16
      %v1106 = vpop.permute.xlu0 %1105
      %1107 = vrot.lane.b32.xlu0 %v1016, 16
      %v1108 = vpop.permute.xlu0 %1107
      %1109 = vrot.lane.b32.xlu0 %v1017, 16
      %v1110 = vpop.permute.xlu0 %1109
      %1111 = vrot.lane.b32.xlu0 %v1018, 16
      %v1112 = vpop.permute.xlu0 %1111
      %1113 = vrot.lane.b32.xlu0 %v1019, 16
      %v1114 = vpop.permute.xlu0 %1113
      %1115 = vrot.lane.b32.xlu0 %v1020, 16
      %v1116 = vpop.permute.xlu0 %1115
      %vm1149 = vcmask 162944
      %1150 = vst.msk [vmem:[#allocation4] sm:$0xff] %vm1149, %v1054
      %1151 = vst.msk [vmem:[#allocation4 + $0x8] sm:$0xff] %vm1149, %v1056
      %1152 = vst.msk [vmem:[#allocation4 + $0x10] sm:$0xff] %vm1149, %v1058
      %1153 = vst.msk [vmem:[#allocation4 + $0x18] sm:$0xff] %vm1149, %v1060
      %1154 = vst.msk [vmem:[#allocation4 + $0x20] sm:$0xff] %vm1149, %v1062
      %1155 = vst.msk [vmem:[#allocation4 + $0x28] sm:$0xff] %vm1149, %v1064
      %1156 = vst.msk [vmem:[#allocation4 + $0x30] sm:$0xff] %vm1149, %v1066
      %1157 = vst.msk [vmem:[#allocation4 + $0x38] sm:$0xff] %vm1149, %v1068
      %1158 = vst.msk [vmem:[#allocation4 + $0x40] sm:$0xff] %vm1149, %v1070
      %1159 = vst.msk [vmem:[#allocation4 + $0x48] sm:$0xff] %vm1149, %v1072
      %1160 = vst.msk [vmem:[#allocation4 + $0x50] sm:$0xff] %vm1149, %v1074
      %1161 = vst.msk [vmem:[#allocation4 + $0x58] sm:$0xff] %vm1149, %v1076
      %1162 = vst.msk [vmem:[#allocation4 + $0x60] sm:$0xff] %vm1149, %v1078
      %1163 = vst.msk [vmem:[#allocation4 + $0x68] sm:$0xff] %vm1149, %v1080
      %1164 = vst.msk [vmem:[#allocation4 + $0x70] sm:$0xff] %vm1149, %v1082
      %1165 = vst.msk [vmem:[#allocation4 + $0x78] sm:$0xff] %vm1149, %v1084
      %1166 = vst.msk [vmem:[#allocation4 + $0x80] sm:$0xff] %vm1149, %v1086
      %1167 = vst.msk [vmem:[#allocation4 + $0x88] sm:$0xff] %vm1149, %v1088
      %1168 = vst.msk [vmem:[#allocation4 + $0x90] sm:$0xff] %vm1149, %v1090
      %1169 = vst.msk [vmem:[#allocation4 + $0x98] sm:$0xff] %vm1149, %v1092
      %1170 = vst.msk [vmem:[#allocation4 + $0xa0] sm:$0xff] %vm1149, %v1094
      %1171 = vst.msk [vmem:[#allocation4 + $0xa8] sm:$0xff] %vm1149, %v1096
      %1172 = vst.msk [vmem:[#allocation4 + $0xb0] sm:$0xff] %vm1149, %v1098
      %1173 = vst.msk [vmem:[#allocation4 + $0xb8] sm:$0xff] %vm1149, %v1100
      %1174 = vst.msk [vmem:[#allocation4 + $0xc0] sm:$0xff] %vm1149, %v1102
      %1175 = vst.msk [vmem:[#allocation4 + $0xc8] sm:$0xff] %vm1149, %v1104
      %1176 = vst.msk [vmem:[#allocation4 + $0xd0] sm:$0xff] %vm1149, %v1106
      %1177 = vst.msk [vmem:[#allocation4 + $0xd8] sm:$0xff] %vm1149, %v1108
      %1178 = vst.msk [vmem:[#allocation4 + $0xe0] sm:$0xff] %vm1149, %v1110
      %1179 = vst.msk [vmem:[#allocation4 + $0xe8] sm:$0xff] %vm1149, %v1112
      %1180 = vst.msk [vmem:[#allocation4 + $0xf0] sm:$0xff] %vm1149, %v1114
      %1181 = vst.msk [vmem:[#allocation4 + $0xf8] sm:$0xff] %vm1149, %v1116
      %v1182 = vld [vmem:[%s313 + $0x2] sm:$0xff]
      %v1183 = vld [vmem:[%s313 + $0xa] sm:$0xff]
      %v1184 = vld [vmem:[%s313 + $0x1a] sm:$0xff]
      %v1185 = vld [vmem:[%s313 + $0x22] sm:$0xff]
      %v1186 = vld [vmem:[%s313 + $0x32] sm:$0xff]
      %v1187 = vld [vmem:[%s313 + $0x3a] sm:$0xff]
      %v1188 = vld [vmem:[%s313 + $0x4a] sm:$0xff]
      %v1189 = vld [vmem:[%s313 + $0x52] sm:$0xff]
      %v1190 = vld [vmem:[%s313 + $0x62] sm:$0xff]
      %v1191 = vld [vmem:[%s313 + $0x6a] sm:$0xff]
      %v1192 = vld [vmem:[%s313 + $0x7a] sm:$0xff]
      %v1193 = vld [vmem:[%s313 + $0x82] sm:$0xff]
      %v1194 = vld [vmem:[%s313 + $0x92] sm:$0xff]
      %v1195 = vld [vmem:[%s313 + $0x9a] sm:$0xff]
      %v1196 = vld [vmem:[%s313 + $0xaa] sm:$0xff]
      %v1197 = vld [vmem:[%s313 + $0xb2] sm:$0xff]
      %v1198 = vld [vmem:[%s313 + $0xc2] sm:$0xff]
      %v1199 = vld [vmem:[%s313 + $0xca] sm:$0xff]
      %v1200 = vld [vmem:[%s313 + $0xda] sm:$0xff]
      %v1201 = vld [vmem:[%s313 + $0xe2] sm:$0xff]
      %v1202 = vld [vmem:[%s313 + $0xf2] sm:$0xff]
      %v1203 = vld [vmem:[%s313 + $0xfa] sm:$0xff]
      %v1204 = vld [vmem:[%s313 + $0x10a] sm:$0xff]
      %v1205 = vld [vmem:[%s313 + $0x112] sm:$0xff]
      %v1206 = vld [vmem:[%s313 + $0x122] sm:$0xff]
      %v1207 = vld [vmem:[%s313 + $0x12a] sm:$0xff]
      %v1208 = vld [vmem:[%s313 + $0x13a] sm:$0xff]
      %v1209 = vld [vmem:[%s313 + $0x142] sm:$0xff]
      %v1210 = vld [vmem:[%s313 + $0x152] sm:$0xff]
      %v1211 = vld [vmem:[%s313 + $0x15a] sm:$0xff]
      %v1212 = vld [vmem:[%s313 + $0x16a] sm:$0xff]
      %v1213 = vld [vmem:[%s313 + $0x172] sm:$0xff]
      %1246 = vrot.lane.b32.xlu0 %v1182, 20
      %v1247 = vpop.permute.xlu0 %1246
      %1248 = vrot.lane.b32.xlu0 %v1183, 20
      %v1249 = vpop.permute.xlu0 %1248
      %1250 = vrot.lane.b32.xlu0 %v1184, 20
      %v1251 = vpop.permute.xlu0 %1250
      %1252 = vrot.lane.b32.xlu0 %v1185, 20
      %v1253 = vpop.permute.xlu0 %1252
      %1254 = vrot.lane.b32.xlu0 %v1186, 20
      %v1255 = vpop.permute.xlu0 %1254
      %1256 = vrot.lane.b32.xlu0 %v1187, 20
      %v1257 = vpop.permute.xlu0 %1256
      %1258 = vrot.lane.b32.xlu0 %v1188, 20
      %v1259 = vpop.permute.xlu0 %1258
      %1260 = vrot.lane.b32.xlu0 %v1189, 20
      %v1261 = vpop.permute.xlu0 %1260
      %1262 = vrot.lane.b32.xlu0 %v1190, 20
      %v1263 = vpop.permute.xlu0 %1262
      %1264 = vrot.lane.b32.xlu0 %v1191, 20
      %v1265 = vpop.permute.xlu0 %1264
      %1266 = vrot.lane.b32.xlu0 %v1192, 20
      %v1267 = vpop.permute.xlu0 %1266
      %1268 = vrot.lane.b32.xlu0 %v1193, 20
      %v1269 = vpop.permute.xlu0 %1268
      %1270 = vrot.lane.b32.xlu0 %v1194, 20
      %v1271 = vpop.permute.xlu0 %1270
      %1272 = vrot.lane.b32.xlu0 %v1195, 20
      %v1273 = vpop.permute.xlu0 %1272
      %1274 = vrot.lane.b32.xlu0 %v1196, 20
      %v1275 = vpop.permute.xlu0 %1274
      %1276 = vrot.lane.b32.xlu0 %v1197, 20
      %v1277 = vpop.permute.xlu0 %1276
      %1278 = vrot.lane.b32.xlu0 %v1198, 20
      %v1279 = vpop.permute.xlu0 %1278
      %1280 = vrot.lane.b32.xlu0 %v1199, 20
      %v1281 = vpop.permute.xlu0 %1280
      %1282 = vrot.lane.b32.xlu0 %v1200, 20
      %v1283 = vpop.permute.xlu0 %1282
      %1284 = vrot.lane.b32.xlu0 %v1201, 20
      %v1285 = vpop.permute.xlu0 %1284
      %1286 = vrot.lane.b32.xlu0 %v1202, 20
      %v1287 = vpop.permute.xlu0 %1286
      %1288 = vrot.lane.b32.xlu0 %v1203, 20
      %v1289 = vpop.permute.xlu0 %1288
      %1290 = vrot.lane.b32.xlu0 %v1204, 20
      %v1291 = vpop.permute.xlu0 %1290
      %1292 = vrot.lane.b32.xlu0 %v1205, 20
      %v1293 = vpop.permute.xlu0 %1292
      %1294 = vrot.lane.b32.xlu0 %v1206, 20
      %v1295 = vpop.permute.xlu0 %1294
      %1296 = vrot.lane.b32.xlu0 %v1207, 20
      %v1297 = vpop.permute.xlu0 %1296
      %1298 = vrot.lane.b32.xlu0 %v1208, 20
      %v1299 = vpop.permute.xlu0 %1298
      %1300 = vrot.lane.b32.xlu0 %v1209, 20
      %v1301 = vpop.permute.xlu0 %1300
      %1302 = vrot.lane.b32.xlu0 %v1210, 20
      %v1303 = vpop.permute.xlu0 %1302
      %1304 = vrot.lane.b32.xlu0 %v1211, 20
      %v1305 = vpop.permute.xlu0 %1304
      %1306 = vrot.lane.b32.xlu0 %v1212, 20
      %v1307 = vpop.permute.xlu0 %1306
      %1308 = vrot.lane.b32.xlu0 %v1213, 20
      %v1309 = vpop.permute.xlu0 %1308
      %vm1342 = vcmask 195744
      %1343 = vst.msk [vmem:[#allocation4] sm:$0xff] %vm1342, %v1247
      %1344 = vst.msk [vmem:[#allocation4 + $0x8] sm:$0xff] %vm1342, %v1249
      %1345 = vst.msk [vmem:[#allocation4 + $0x10] sm:$0xff] %vm1342, %v1251
      %1346 = vst.msk [vmem:[#allocation4 + $0x18] sm:$0xff] %vm1342, %v1253
      %1347 = vst.msk [vmem:[#allocation4 + $0x20] sm:$0xff] %vm1342, %v1255
      %1348 = vst.msk [vmem:[#allocation4 + $0x28] sm:$0xff] %vm1342, %v1257
      %1349 = vst.msk [vmem:[#allocation4 + $0x30] sm:$0xff] %vm1342, %v1259
      %1350 = vst.msk [vmem:[#allocation4 + $0x38] sm:$0xff] %vm1342, %v1261
      %1351 = vst.msk [vmem:[#allocation4 + $0x40] sm:$0xff] %vm1342, %v1263
      %1352 = vst.msk [vmem:[#allocation4 + $0x48] sm:$0xff] %vm1342, %v1265
      %1353 = vst.msk [vmem:[#allocation4 + $0x50] sm:$0xff] %vm1342, %v1267
      %1354 = vst.msk [vmem:[#allocation4 + $0x58] sm:$0xff] %vm1342, %v1269
      %1355 = vst.msk [vmem:[#allocation4 + $0x60] sm:$0xff] %vm1342, %v1271
      %1356 = vst.msk [vmem:[#allocation4 + $0x68] sm:$0xff] %vm1342, %v1273
      %1357 = vst.msk [vmem:[#allocation4 + $0x70] sm:$0xff] %vm1342, %v1275
      %1358 = vst.msk [vmem:[#allocation4 + $0x78] sm:$0xff] %vm1342, %v1277
      %1359 = vst.msk [vmem:[#allocation4 + $0x80] sm:$0xff] %vm1342, %v1279
      %1360 = vst.msk [vmem:[#allocation4 + $0x88] sm:$0xff] %vm1342, %v1281
      %1361 = vst.msk [vmem:[#allocation4 + $0x90] sm:$0xff] %vm1342, %v1283
      %1362 = vst.msk [vmem:[#allocation4 + $0x98] sm:$0xff] %vm1342, %v1285
      %1363 = vst.msk [vmem:[#allocation4 + $0xa0] sm:$0xff] %vm1342, %v1287
      %1364 = vst.msk [vmem:[#allocation4 + $0xa8] sm:$0xff] %vm1342, %v1289
      %1365 = vst.msk [vmem:[#allocation4 + $0xb0] sm:$0xff] %vm1342, %v1291
      %1366 = vst.msk [vmem:[#allocation4 + $0xb8] sm:$0xff] %vm1342, %v1293
      %1367 = vst.msk [vmem:[#allocation4 + $0xc0] sm:$0xff] %vm1342, %v1295
      %1368 = vst.msk [vmem:[#allocation4 + $0xc8] sm:$0xff] %vm1342, %v1297
      %1369 = vst.msk [vmem:[#allocation4 + $0xd0] sm:$0xff] %vm1342, %v1299
      %1370 = vst.msk [vmem:[#allocation4 + $0xd8] sm:$0xff] %vm1342, %v1301
      %1371 = vst.msk [vmem:[#allocation4 + $0xe0] sm:$0xff] %vm1342, %v1303
      %1372 = vst.msk [vmem:[#allocation4 + $0xe8] sm:$0xff] %vm1342, %v1305
      %1373 = vst.msk [vmem:[#allocation4 + $0xf0] sm:$0xff] %vm1342, %v1307
      %1374 = vst.msk [vmem:[#allocation4 + $0xf8] sm:$0xff] %vm1342, %v1309
      %s1375 = scalar_lea.vmem [#allocation2], 48
      %v1376 = vld [vmem:[%s1375] sm:$0xff]
      %v1377 = vld [vmem:[%s1375 + $0x8] sm:$0xff]
      %v1378 = vld [vmem:[%s1375 + $0x18] sm:$0xff]
      %v1379 = vld [vmem:[%s1375 + $0x20] sm:$0xff]
      %v1380 = vld [vmem:[%s1375 + $0x30] sm:$0xff]
      %v1381 = vld [vmem:[%s1375 + $0x38] sm:$0xff]
      %v1382 = vld [vmem:[%s1375 + $0x48] sm:$0xff]
      %v1383 = vld [vmem:[%s1375 + $0x50] sm:$0xff]
      %v1384 = vld [vmem:[%s1375 + $0x60] sm:$0xff]
      %v1385 = vld [vmem:[%s1375 + $0x68] sm:$0xff]
      %v1386 = vld [vmem:[%s1375 + $0x78] sm:$0xff]
      %v1387 = vld [vmem:[%s1375 + $0x80] sm:$0xff]
      %v1388 = vld [vmem:[%s1375 + $0x90] sm:$0xff]
      %v1389 = vld [vmem:[%s1375 + $0x98] sm:$0xff]
      %v1390 = vld [vmem:[%s1375 + $0xa8] sm:$0xff]
      %v1391 = vld [vmem:[%s1375 + $0xb0] sm:$0xff]
      %v1392 = vld [vmem:[%s1375 + $0xc0] sm:$0xff]
      %v1393 = vld [vmem:[%s1375 + $0xc8] sm:$0xff]
      %v1394 = vld [vmem:[%s1375 + $0xd8] sm:$0xff]
      %v1395 = vld [vmem:[%s1375 + $0xe0] sm:$0xff]
      %v1396 = vld [vmem:[%s1375 + $0xf0] sm:$0xff]
      %v1397 = vld [vmem:[%s1375 + $0xf8] sm:$0xff]
      %v1398 = vld [vmem:[%s1375 + $0x108] sm:$0xff]
      %v1399 = vld [vmem:[%s1375 + $0x110] sm:$0xff]
      %v1400 = vld [vmem:[%s1375 + $0x120] sm:$0xff]
      %v1401 = vld [vmem:[%s1375 + $0x128] sm:$0xff]
      %v1402 = vld [vmem:[%s1375 + $0x138] sm:$0xff]
      %v1403 = vld [vmem:[%s1375 + $0x140] sm:$0xff]
      %v1404 = vld [vmem:[%s1375 + $0x150] sm:$0xff]
      %v1405 = vld [vmem:[%s1375 + $0x158] sm:$0xff]
      %v1406 = vld [vmem:[%s1375 + $0x168] sm:$0xff]
      %v1407 = vld [vmem:[%s1375 + $0x170] sm:$0xff]
      %1440 = vrot.lane.b32.xlu0 %v1376, 24
      %v1441 = vpop.permute.xlu0 %1440
      %1442 = vrot.lane.b32.xlu0 %v1377, 24
      %v1443 = vpop.permute.xlu0 %1442
      %1444 = vrot.lane.b32.xlu0 %v1378, 24
      %v1445 = vpop.permute.xlu0 %1444
      %1446 = vrot.lane.b32.xlu0 %v1379, 24
      %v1447 = vpop.permute.xlu0 %1446
      %1448 = vrot.lane.b32.xlu0 %v1380, 24
      %v1449 = vpop.permute.xlu0 %1448
      %1450 = vrot.lane.b32.xlu0 %v1381, 24
      %v1451 = vpop.permute.xlu0 %1450
      %1452 = vrot.lane.b32.xlu0 %v1382, 24
      %v1453 = vpop.permute.xlu0 %1452
      %1454 = vrot.lane.b32.xlu0 %v1383, 24
      %v1455 = vpop.permute.xlu0 %1454
      %1456 = vrot.lane.b32.xlu0 %v1384, 24
      %v1457 = vpop.permute.xlu0 %1456
      %1458 = vrot.lane.b32.xlu0 %v1385, 24
      %v1459 = vpop.permute.xlu0 %1458
      %1460 = vrot.lane.b32.xlu0 %v1386, 24
      %v1461 = vpop.permute.xlu0 %1460
      %1462 = vrot.lane.b32.xlu0 %v1387, 24
      %v1463 = vpop.permute.xlu0 %1462
      %1464 = vrot.lane.b32.xlu0 %v1388, 24
      %v1465 = vpop.permute.xlu0 %1464
      %1466 = vrot.lane.b32.xlu0 %v1389, 24
      %v1467 = vpop.permute.xlu0 %1466
      %1468 = vrot.lane.b32.xlu0 %v1390, 24
      %v1469 = vpop.permute.xlu0 %1468
      %1470 = vrot.lane.b32.xlu0 %v1391, 24
      %v1471 = vpop.permute.xlu0 %1470
      %1472 = vrot.lane.b32.xlu0 %v1392, 24
      %v1473 = vpop.permute.xlu0 %1472
      %1474 = vrot.lane.b32.xlu0 %v1393, 24
      %v1475 = vpop.permute.xlu0 %1474
      %1476 = vrot.lane.b32.xlu0 %v1394, 24
      %v1477 = vpop.permute.xlu0 %1476
      %1478 = vrot.lane.b32.xlu0 %v1395, 24
      %v1479 = vpop.permute.xlu0 %1478
      %1480 = vrot.lane.b32.xlu0 %v1396, 24
      %v1481 = vpop.permute.xlu0 %1480
      %1482 = vrot.lane.b32.xlu0 %v1397, 24
      %v1483 = vpop.permute.xlu0 %1482
      %1484 = vrot.lane.b32.xlu0 %v1398, 24
      %v1485 = vpop.permute.xlu0 %1484
      %1486 = vrot.lane.b32.xlu0 %v1399, 24
      %v1487 = vpop.permute.xlu0 %1486
      %1488 = vrot.lane.b32.xlu0 %v1400, 24
      %v1489 = vpop.permute.xlu0 %1488
      %1490 = vrot.lane.b32.xlu0 %v1401, 24
      %v1491 = vpop.permute.xlu0 %1490
      %1492 = vrot.lane.b32.xlu0 %v1402, 24
      %v1493 = vpop.permute.xlu0 %1492
      %1494 = vrot.lane.b32.xlu0 %v1403, 24
      %v1495 = vpop.permute.xlu0 %1494
      %1496 = vrot.lane.b32.xlu0 %v1404, 24
      %v1497 = vpop.permute.xlu0 %1496
      %1498 = vrot.lane.b32.xlu0 %v1405, 24
      %v1499 = vpop.permute.xlu0 %1498
      %1500 = vrot.lane.b32.xlu0 %v1406, 24
      %v1501 = vpop.permute.xlu0 %1500
      %1502 = vrot.lane.b32.xlu0 %v1407, 24
      %v1503 = vpop.permute.xlu0 %1502
      %vm1536 = vcmask 228544
      %1537 = vst.msk [vmem:[#allocation4] sm:$0xff] %vm1536, %v1441
      %1538 = vst.msk [vmem:[#allocation4 + $0x8] sm:$0xff] %vm1536, %v1443
      %1539 = vst.msk [vmem:[#allocation4 + $0x10] sm:$0xff] %vm1536, %v1445
      %1540 = vst.msk [vmem:[#allocation4 + $0x18] sm:$0xff] %vm1536, %v1447
      %1541 = vst.msk [vmem:[#allocation4 + $0x20] sm:$0xff] %vm1536, %v1449
      %1542 = vst.msk [vmem:[#allocation4 + $0x28] sm:$0xff] %vm1536, %v1451
      %1543 = vst.msk [vmem:[#allocation4 + $0x30] sm:$0xff] %vm1536, %v1453
      %1544 = vst.msk [vmem:[#allocation4 + $0x38] sm:$0xff] %vm1536, %v1455
      %1545 = vst.msk [vmem:[#allocation4 + $0x40] sm:$0xff] %vm1536, %v1457
      %1546 = vst.msk [vmem:[#allocation4 + $0x48] sm:$0xff] %vm1536, %v1459
      %1547 = vst.msk [vmem:[#allocation4 + $0x50] sm:$0xff] %vm1536, %v1461
      %1548 = vst.msk [vmem:[#allocation4 + $0x58] sm:$0xff] %vm1536, %v1463
      %1549 = vst.msk [vmem:[#allocation4 + $0x60] sm:$0xff] %vm1536, %v1465
      %1550 = vst.msk [vmem:[#allocation4 + $0x68] sm:$0xff] %vm1536, %v1467
      %1551 = vst.msk [vmem:[#allocation4 + $0x70] sm:$0xff] %vm1536, %v1469
      %1552 = vst.msk [vmem:[#allocation4 + $0x78] sm:$0xff] %vm1536, %v1471
      %1553 = vst.msk [vmem:[#allocation4 + $0x80] sm:$0xff] %vm1536, %v1473
      %1554 = vst.msk [vmem:[#allocation4 + $0x88] sm:$0xff] %vm1536, %v1475
      %1555 = vst.msk [vmem:[#allocation4 + $0x90] sm:$0xff] %vm1536, %v1477
      %1556 = vst.msk [vmem:[#allocation4 + $0x98] sm:$0xff] %vm1536, %v1479
      %1557 = vst.msk [vmem:[#allocation4 + $0xa0] sm:$0xff] %vm1536, %v1481
      %1558 = vst.msk [vmem:[#allocation4 + $0xa8] sm:$0xff] %vm1536, %v1483
      %1559 = vst.msk [vmem:[#allocation4 + $0xb0] sm:$0xff] %vm1536, %v1485
      %1560 = vst.msk [vmem:[#allocation4 + $0xb8] sm:$0xff] %vm1536, %v1487
      %1561 = vst.msk [vmem:[#allocation4 + $0xc0] sm:$0xff] %vm1536, %v1489
      %1562 = vst.msk [vmem:[#allocation4 + $0xc8] sm:$0xff] %vm1536, %v1491
      %1563 = vst.msk [vmem:[#allocation4 + $0xd0] sm:$0xff] %vm1536, %v1493
      %1564 = vst.msk [vmem:[#allocation4 + $0xd8] sm:$0xff] %vm1536, %v1495
      %1565 = vst.msk [vmem:[#allocation4 + $0xe0] sm:$0xff] %vm1536, %v1497
      %1566 = vst.msk [vmem:[#allocation4 + $0xe8] sm:$0xff] %vm1536, %v1499
      %1567 = vst.msk [vmem:[#allocation4 + $0xf0] sm:$0xff] %vm1536, %v1501
      %1568 = vst.msk [vmem:[#allocation4 + $0xf8] sm:$0xff] %vm1536, %v1503
      %v1569 = vld [vmem:[%s1375 + $0x1] sm:$0xff]
      %v1570 = vld [vmem:[%s1375 + $0x9] sm:$0xff]
      %v1571 = vld [vmem:[%s1375 + $0x19] sm:$0xff]
      %v1572 = vld [vmem:[%s1375 + $0x21] sm:$0xff]
      %v1573 = vld [vmem:[%s1375 + $0x31] sm:$0xff]
      %v1574 = vld [vmem:[%s1375 + $0x39] sm:$0xff]
      %v1575 = vld [vmem:[%s1375 + $0x49] sm:$0xff]
      %v1576 = vld [vmem:[%s1375 + $0x51] sm:$0xff]
      %v1577 = vld [vmem:[%s1375 + $0x61] sm:$0xff]
      %v1578 = vld [vmem:[%s1375 + $0x69] sm:$0xff]
      %v1579 = vld [vmem:[%s1375 + $0x79] sm:$0xff]
      %v1580 = vld [vmem:[%s1375 + $0x81] sm:$0xff]
      %v1581 = vld [vmem:[%s1375 + $0x91] sm:$0xff]
      %v1582 = vld [vmem:[%s1375 + $0x99] sm:$0xff]
      %v1583 = vld [vmem:[%s1375 + $0xa9] sm:$0xff]
      %v1584 = vld [vmem:[%s1375 + $0xb1] sm:$0xff]
      %v1585 = vld [vmem:[%s1375 + $0xc1] sm:$0xff]
      %v1586 = vld [vmem:[%s1375 + $0xc9] sm:$0xff]
      %v1587 = vld [vmem:[%s1375 + $0xd9] sm:$0xff]
      %v1588 = vld [vmem:[%s1375 + $0xe1] sm:$0xff]
      %v1589 = vld [vmem:[%s1375 + $0xf1] sm:$0xff]
      %v1590 = vld [vmem:[%s1375 + $0xf9] sm:$0xff]
      %v1591 = vld [vmem:[%s1375 + $0x109] sm:$0xff]
      %v1592 = vld [vmem:[%s1375 + $0x111] sm:$0xff]
      %v1593 = vld [vmem:[%s1375 + $0x121] sm:$0xff]
      %v1594 = vld [vmem:[%s1375 + $0x129] sm:$0xff]
      %v1595 = vld [vmem:[%s1375 + $0x139] sm:$0xff]
      %v1596 = vld [vmem:[%s1375 + $0x141] sm:$0xff]
      %v1597 = vld [vmem:[%s1375 + $0x151] sm:$0xff]
      %v1598 = vld [vmem:[%s1375 + $0x159] sm:$0xff]
      %v1599 = vld [vmem:[%s1375 + $0x169] sm:$0xff]
      %v1600 = vld [vmem:[%s1375 + $0x171] sm:$0xff]
      %1633 = vrot.lane.b32.xlu0 %v1569, 28
      %v1634 = vpop.permute.xlu0 %1633
      %1635 = vrot.lane.b32.xlu0 %v1570, 28
      %v1636 = vpop.permute.xlu0 %1635
      %1637 = vrot.lane.b32.xlu0 %v1571, 28
      %v1638 = vpop.permute.xlu0 %1637
      %1639 = vrot.lane.b32.xlu0 %v1572, 28
      %v1640 = vpop.permute.xlu0 %1639
      %1641 = vrot.lane.b32.xlu0 %v1573, 28
      %v1642 = vpop.permute.xlu0 %1641
      %1643 = vrot.lane.b32.xlu0 %v1574, 28
      %v1644 = vpop.permute.xlu0 %1643
      %1645 = vrot.lane.b32.xlu0 %v1575, 28
      %v1646 = vpop.permute.xlu0 %1645
      %1647 = vrot.lane.b32.xlu0 %v1576, 28
      %v1648 = vpop.permute.xlu0 %1647
      %1649 = vrot.lane.b32.xlu0 %v1577, 28
      %v1650 = vpop.permute.xlu0 %1649
      %1651 = vrot.lane.b32.xlu0 %v1578, 28
      %v1652 = vpop.permute.xlu0 %1651
      %1653 = vrot.lane.b32.xlu0 %v1579, 28
      %v1654 = vpop.permute.xlu0 %1653
      %1655 = vrot.lane.b32.xlu0 %v1580, 28
      %v1656 = vpop.permute.xlu0 %1655
      %1657 = vrot.lane.b32.xlu0 %v1581, 28
      %v1658 = vpop.permute.xlu0 %1657
      %1659 = vrot.lane.b32.xlu0 %v1582, 28
      %v1660 = vpop.permute.xlu0 %1659
      %1661 = vrot.lane.b32.xlu0 %v1583, 28
      %v1662 = vpop.permute.xlu0 %1661
      %1663 = vrot.lane.b32.xlu0 %v1584, 28
      %v1664 = vpop.permute.xlu0 %1663
      %1665 = vrot.lane.b32.xlu0 %v1585, 28
      %v1666 = vpop.permute.xlu0 %1665
      %1667 = vrot.lane.b32.xlu0 %v1586, 28
      %v1668 = vpop.permute.xlu0 %1667
      %1669 = vrot.lane.b32.xlu0 %v1587, 28
      %v1670 = vpop.permute.xlu0 %1669
      %1671 = vrot.lane.b32.xlu0 %v1588, 28
      %v1672 = vpop.permute.xlu0 %1671
      %1673 = vrot.lane.b32.xlu0 %v1589, 28
      %v1674 = vpop.permute.xlu0 %1673
      %1675 = vrot.lane.b32.xlu0 %v1590, 28
      %v1676 = vpop.permute.xlu0 %1675
      %1677 = vrot.lane.b32.xlu0 %v1591, 28
      %v1678 = vpop.permute.xlu0 %1677
      %1679 = vrot.lane.b32.xlu0 %v1592, 28
      %v1680 = vpop.permute.xlu0 %1679
      %1681 = vrot.lane.b32.xlu0 %v1593, 28
      %v1682 = vpop.permute.xlu0 %1681
      %1683 = vrot.lane.b32.xlu0 %v1594, 28
      %v1684 = vpop.permute.xlu0 %1683
      %1685 = vrot.lane.b32.xlu0 %v1595, 28
      %v1686 = vpop.permute.xlu0 %1685
      %1687 = vrot.lane.b32.xlu0 %v1596, 28
      %v1688 = vpop.permute.xlu0 %1687
      %1689 = vrot.lane.b32.xlu0 %v1597, 28
      %v1690 = vpop.permute.xlu0 %1689
      %1691 = vrot.lane.b32.xlu0 %v1598, 28
      %v1692 = vpop.permute.xlu0 %1691
      %1693 = vrot.lane.b32.xlu0 %v1599, 28
      %v1694 = vpop.permute.xlu0 %1693
      %1695 = vrot.lane.b32.xlu0 %v1600, 28
      %v1696 = vpop.permute.xlu0 %1695
      %vm1729 = vcmask 261344
      %1730 = vst.msk [vmem:[#allocation4] sm:$0xff] %vm1729, %v1634
      %1731 = vst.msk [vmem:[#allocation4 + $0x8] sm:$0xff] %vm1729, %v1636
      %1732 = vst.msk [vmem:[#allocation4 + $0x10] sm:$0xff] %vm1729, %v1638
      %1733 = vst.msk [vmem:[#allocation4 + $0x18] sm:$0xff] %vm1729, %v1640
      %1734 = vst.msk [vmem:[#allocation4 + $0x20] sm:$0xff] %vm1729, %v1642
      %1735 = vst.msk [vmem:[#allocation4 + $0x28] sm:$0xff] %vm1729, %v1644
      %1736 = vst.msk [vmem:[#allocation4 + $0x30] sm:$0xff] %vm1729, %v1646
      %1737 = vst.msk [vmem:[#allocation4 + $0x38] sm:$0xff] %vm1729, %v1648
      %1738 = vst.msk [vmem:[#allocation4 + $0x40] sm:$0xff] %vm1729, %v1650
      %1739 = vst.msk [vmem:[#allocation4 + $0x48] sm:$0xff] %vm1729, %v1652
      %1740 = vst.msk [vmem:[#allocation4 + $0x50] sm:$0xff] %vm1729, %v1654
      %1741 = vst.msk [vmem:[#allocation4 + $0x58] sm:$0xff] %vm1729, %v1656
      %1742 = vst.msk [vmem:[#allocation4 + $0x60] sm:$0xff] %vm1729, %v1658
      %1743 = vst.msk [vmem:[#allocation4 + $0x68] sm:$0xff] %vm1729, %v1660
      %1744 = vst.msk [vmem:[#allocation4 + $0x70] sm:$0xff] %vm1729, %v1662
      %1745 = vst.msk [vmem:[#allocation4 + $0x78] sm:$0xff] %vm1729, %v1664
      %1746 = vst.msk [vmem:[#allocation4 + $0x80] sm:$0xff] %vm1729, %v1666
      %1747 = vst.msk [vmem:[#allocation4 + $0x88] sm:$0xff] %vm1729, %v1668
      %1748 = vst.msk [vmem:[#allocation4 + $0x90] sm:$0xff] %vm1729, %v1670
      %1749 = vst.msk [vmem:[#allocation4 + $0x98] sm:$0xff] %vm1729, %v1672
      %1750 = vst.msk [vmem:[#allocation4 + $0xa0] sm:$0xff] %vm1729, %v1674
      %1751 = vst.msk [vmem:[#allocation4 + $0xa8] sm:$0xff] %vm1729, %v1676
      %1752 = vst.msk [vmem:[#allocation4 + $0xb0] sm:$0xff] %vm1729, %v1678
      %1753 = vst.msk [vmem:[#allocation4 + $0xb8] sm:$0xff] %vm1729, %v1680
      %1754 = vst.msk [vmem:[#allocation4 + $0xc0] sm:$0xff] %vm1729, %v1682
      %1755 = vst.msk [vmem:[#allocation4 + $0xc8] sm:$0xff] %vm1729, %v1684
      %1756 = vst.msk [vmem:[#allocation4 + $0xd0] sm:$0xff] %vm1729, %v1686
      %1757 = vst.msk [vmem:[#allocation4 + $0xd8] sm:$0xff] %vm1729, %v1688
      %1758 = vst.msk [vmem:[#allocation4 + $0xe0] sm:$0xff] %vm1729, %v1690
      %1759 = vst.msk [vmem:[#allocation4 + $0xe8] sm:$0xff] %vm1729, %v1692
      %1760 = vst.msk [vmem:[#allocation4 + $0xf0] sm:$0xff] %vm1729, %v1694
      %1761 = vst.msk [vmem:[#allocation4 + $0xf8] sm:$0xff] %vm1729, %v1696
      %v1762 = vld [vmem:[%s1375 + $0x2] sm:$0xff]
      %v1763 = vld [vmem:[%s1375 + $0xa] sm:$0xff]
      %v1764 = vld [vmem:[%s1375 + $0x1a] sm:$0xff]
      %v1765 = vld [vmem:[%s1375 + $0x22] sm:$0xff]
      %v1766 = vld [vmem:[%s1375 + $0x32] sm:$0xff]
      %v1767 = vld [vmem:[%s1375 + $0x3a] sm:$0xff]
      %v1768 = vld [vmem:[%s1375 + $0x4a] sm:$0xff]
      %v1769 = vld [vmem:[%s1375 + $0x52] sm:$0xff]
      %v1770 = vld [vmem:[%s1375 + $0x62] sm:$0xff]
      %v1771 = vld [vmem:[%s1375 + $0x6a] sm:$0xff]
      %v1772 = vld [vmem:[%s1375 + $0x7a] sm:$0xff]
      %v1773 = vld [vmem:[%s1375 + $0x82] sm:$0xff]
      %v1774 = vld [vmem:[%s1375 + $0x92] sm:$0xff]
      %v1775 = vld [vmem:[%s1375 + $0x9a] sm:$0xff]
      %v1776 = vld [vmem:[%s1375 + $0xaa] sm:$0xff]
      %v1777 = vld [vmem:[%s1375 + $0xb2] sm:$0xff]
      %v1778 = vld [vmem:[%s1375 + $0xc2] sm:$0xff]
      %v1779 = vld [vmem:[%s1375 + $0xca] sm:$0xff]
      %v1780 = vld [vmem:[%s1375 + $0xda] sm:$0xff]
      %v1781 = vld [vmem:[%s1375 + $0xe2] sm:$0xff]
      %v1782 = vld [vmem:[%s1375 + $0xf2] sm:$0xff]
      %v1783 = vld [vmem:[%s1375 + $0xfa] sm:$0xff]
      %v1784 = vld [vmem:[%s1375 + $0x10a] sm:$0xff]
      %v1785 = vld [vmem:[%s1375 + $0x112] sm:$0xff]
      %v1786 = vld [vmem:[%s1375 + $0x122] sm:$0xff]
      %v1787 = vld [vmem:[%s1375 + $0x12a] sm:$0xff]
      %v1788 = vld [vmem:[%s1375 + $0x13a] sm:$0xff]
      %v1789 = vld [vmem:[%s1375 + $0x142] sm:$0xff]
      %v1790 = vld [vmem:[%s1375 + $0x152] sm:$0xff]
      %v1791 = vld [vmem:[%s1375 + $0x15a] sm:$0xff]
      %v1792 = vld [vmem:[%s1375 + $0x16a] sm:$0xff]
      %v1793 = vld [vmem:[%s1375 + $0x172] sm:$0xff]
      %1826 = vrot.lane.b32.xlu0 %v1762, 32
      %v1827 = vpop.permute.xlu0 %1826
      %1828 = vrot.lane.b32.xlu0 %v1763, 32
      %v1829 = vpop.permute.xlu0 %1828
      %1830 = vrot.lane.b32.xlu0 %v1764, 32
      %v1831 = vpop.permute.xlu0 %1830
      %1832 = vrot.lane.b32.xlu0 %v1765, 32
      %v1833 = vpop.permute.xlu0 %1832
      %1834 = vrot.lane.b32.xlu0 %v1766, 32
      %v1835 = vpop.permute.xlu0 %1834
      %1836 = vrot.lane.b32.xlu0 %v1767, 32
      %v1837 = vpop.permute.xlu0 %1836
      %1838 = vrot.lane.b32.xlu0 %v1768, 32
      %v1839 = vpop.permute.xlu0 %1838
      %1840 = vrot.lane.b32.xlu0 %v1769, 32
      %v1841 = vpop.permute.xlu0 %1840
      %1842 = vrot.lane.b32.xlu0 %v1770, 32
      %v1843 = vpop.permute.xlu0 %1842
      %1844 = vrot.lane.b32.xlu0 %v1771, 32
      %v1845 = vpop.permute.xlu0 %1844
      %1846 = vrot.lane.b32.xlu0 %v1772, 32
      %v1847 = vpop.permute.xlu0 %1846
      %1848 = vrot.lane.b32.xlu0 %v1773, 32
      %v1849 = vpop.permute.xlu0 %1848
      %1850 = vrot.lane.b32.xlu0 %v1774, 32
      %v1851 = vpop.permute.xlu0 %1850
      %1852 = vrot.lane.b32.xlu0 %v1775, 32
      %v1853 = vpop.permute.xlu0 %1852
      %1854 = vrot.lane.b32.xlu0 %v1776, 32
      %v1855 = vpop.permute.xlu0 %1854
      %1856 = vrot.lane.b32.xlu0 %v1777, 32
      %v1857 = vpop.permute.xlu0 %1856
      %1858 = vrot.lane.b32.xlu0 %v1778, 32
      %v1859 = vpop.permute.xlu0 %1858
      %1860 = vrot.lane.b32.xlu0 %v1779, 32
      %v1861 = vpop.permute.xlu0 %1860
      %1862 = vrot.lane.b32.xlu0 %v1780, 32
      %v1863 = vpop.permute.xlu0 %1862
      %1864 = vrot.lane.b32.xlu0 %v1781, 32
      %v1865 = vpop.permute.xlu0 %1864
      %1866 = vrot.lane.b32.xlu0 %v1782, 32
      %v1867 = vpop.permute.xlu0 %1866
      %1868 = vrot.lane.b32.xlu0 %v1783, 32
      %v1869 = vpop.permute.xlu0 %1868
      %1870 = vrot.lane.b32.xlu0 %v1784, 32
      %v1871 = vpop.permute.xlu0 %1870
      %1872 = vrot.lane.b32.xlu0 %v1785, 32
      %v1873 = vpop.permute.xlu0 %1872
      %1874 = vrot.lane.b32.xlu0 %v1786, 32
      %v1875 = vpop.permute.xlu0 %1874
      %1876 = vrot.lane.b32.xlu0 %v1787, 32
      %v1877 = vpop.permute.xlu0 %1876
      %1878 = vrot.lane.b32.xlu0 %v1788, 32
      %v1879 = vpop.permute.xlu0 %1878
      %1880 = vrot.lane.b32.xlu0 %v1789, 32
      %v1881 = vpop.permute.xlu0 %1880
      %1882 = vrot.lane.b32.xlu0 %v1790, 32
      %v1883 = vpop.permute.xlu0 %1882
      %1884 = vrot.lane.b32.xlu0 %v1791, 32
      %v1885 = vpop.permute.xlu0 %1884
      %1886 = vrot.lane.b32.xlu0 %v1792, 32
      %v1887 = vpop.permute.xlu0 %1886
      %1888 = vrot.lane.b32.xlu0 %v1793, 32
      %v1889 = vpop.permute.xlu0 %1888
      %vm1922 = vcmask 294144
      %1923 = vst.msk [vmem:[#allocation4] sm:$0xff] %vm1922, %v1827
      %1924 = vst.msk [vmem:[#allocation4 + $0x8] sm:$0xff] %vm1922, %v1829
      %1925 = vst.msk [vmem:[#allocation4 + $0x10] sm:$0xff] %vm1922, %v1831
      %1926 = vst.msk [vmem:[#allocation4 + $0x18] sm:$0xff] %vm1922, %v1833
      %1927 = vst.msk [vmem:[#allocation4 + $0x20] sm:$0xff] %vm1922, %v1835
      %1928 = vst.msk [vmem:[#allocation4 + $0x28] sm:$0xff] %vm1922, %v1837
      %1929 = vst.msk [vmem:[#allocation4 + $0x30] sm:$0xff] %vm1922, %v1839
      %1930 = vst.msk [vmem:[#allocation4 + $0x38] sm:$0xff] %vm1922, %v1841
      %1931 = vst.msk [vmem:[#allocation4 + $0x40] sm:$0xff] %vm1922, %v1843
      %1932 = vst.msk [vmem:[#allocation4 + $0x48] sm:$0xff] %vm1922, %v1845
      %1933 = vst.msk [vmem:[#allocation4 + $0x50] sm:$0xff] %vm1922, %v1847
      %1934 = vst.msk [vmem:[#allocation4 + $0x58] sm:$0xff] %vm1922, %v1849
      %1935 = vst.msk [vmem:[#allocation4 + $0x60] sm:$0xff] %vm1922, %v1851
      %1936 = vst.msk [vmem:[#allocation4 + $0x68] sm:$0xff] %vm1922, %v1853
      %1937 = vst.msk [vmem:[#allocation4 + $0x70] sm:$0xff] %vm1922, %v1855
      %1938 = vst.msk [vmem:[#allocation4 + $0x78] sm:$0xff] %vm1922, %v1857
      %1939 = vst.msk [vmem:[#allocation4 + $0x80] sm:$0xff] %vm1922, %v1859
      %1940 = vst.msk [vmem:[#allocation4 + $0x88] sm:$0xff] %vm1922, %v1861
      %1941 = vst.msk [vmem:[#allocation4 + $0x90] sm:$0xff] %vm1922, %v1863
      %1942 = vst.msk [vmem:[#allocation4 + $0x98] sm:$0xff] %vm1922, %v1865
      %1943 = vst.msk [vmem:[#allocation4 + $0xa0] sm:$0xff] %vm1922, %v1867
      %1944 = vst.msk [vmem:[#allocation4 + $0xa8] sm:$0xff] %vm1922, %v1869
      %1945 = vst.msk [vmem:[#allocation4 + $0xb0] sm:$0xff] %vm1922, %v1871
      %1946 = vst.msk [vmem:[#allocation4 + $0xb8] sm:$0xff] %vm1922, %v1873
      %1947 = vst.msk [vmem:[#allocation4 + $0xc0] sm:$0xff] %vm1922, %v1875
      %1948 = vst.msk [vmem:[#allocation4 + $0xc8] sm:$0xff] %vm1922, %v1877
      %1949 = vst.msk [vmem:[#allocation4 + $0xd0] sm:$0xff] %vm1922, %v1879
      %1950 = vst.msk [vmem:[#allocation4 + $0xd8] sm:$0xff] %vm1922, %v1881
      %1951 = vst.msk [vmem:[#allocation4 + $0xe0] sm:$0xff] %vm1922, %v1883
      %1952 = vst.msk [vmem:[#allocation4 + $0xe8] sm:$0xff] %vm1922, %v1885
      %1953 = vst.msk [vmem:[#allocation4 + $0xf0] sm:$0xff] %vm1922, %v1887
      %1954 = vst.msk [vmem:[#allocation4 + $0xf8] sm:$0xff] %vm1922, %v1889
      %v1955 = vld [vmem:[#allocation4] sm:$0xff]
      %v1956 = vld [vmem:[#allocation4 + $0x8] sm:$0xff]
      %v1957 = vld [vmem:[#allocation4 + $0x10] sm:$0xff]
      %v1958 = vld [vmem:[#allocation4 + $0x18] sm:$0xff]
      %v1959 = vld [vmem:[#allocation4 + $0x20] sm:$0xff]
      %v1960 = vld [vmem:[#allocation4 + $0x28] sm:$0xff]
      %v1961 = vld [vmem:[#allocation4 + $0x30] sm:$0xff]
      %v1962 = vld [vmem:[#allocation4 + $0x38] sm:$0xff]
      %v1963 = vld [vmem:[#allocation4 + $0x40] sm:$0xff]
      %v1964 = vld [vmem:[#allocation4 + $0x48] sm:$0xff]
      %v1965 = vld [vmem:[#allocation4 + $0x50] sm:$0xff]
      %v1966 = vld [vmem:[#allocation4 + $0x58] sm:$0xff]
      %v1967 = vld [vmem:[#allocation4 + $0x60] sm:$0xff]
      %v1968 = vld [vmem:[#allocation4 + $0x68] sm:$0xff]
      %v1969 = vld [vmem:[#allocation4 + $0x70] sm:$0xff]
      %v1970 = vld [vmem:[#allocation4 + $0x78] sm:$0xff]
      %v1971 = vld [vmem:[#allocation4 + $0x80] sm:$0xff]
      %v1972 = vld [vmem:[#allocation4 + $0x88] sm:$0xff]
      %v1973 = vld [vmem:[#allocation4 + $0x90] sm:$0xff]
      %v1974 = vld [vmem:[#allocation4 + $0x98] sm:$0xff]
      %v1975 = vld [vmem:[#allocation4 + $0xa0] sm:$0xff]
      %v1976 = vld [vmem:[#allocation4 + $0xa8] sm:$0xff]
      %v1977 = vld [vmem:[#allocation4 + $0xb0] sm:$0xff]
      %v1978 = vld [vmem:[#allocation4 + $0xb8] sm:$0xff]
      %v1979 = vld [vmem:[#allocation4 + $0xc0] sm:$0xff]
      %v1980 = vld [vmem:[#allocation4 + $0xc8] sm:$0xff]
      %v1981 = vld [vmem:[#allocation4 + $0xd0] sm:$0xff]
      %v1982 = vld [vmem:[#allocation4 + $0xd8] sm:$0xff]
      %v1983 = vld [vmem:[#allocation4 + $0xe0] sm:$0xff]
      %v1984 = vld [vmem:[#allocation4 + $0xe8] sm:$0xff]
      %v1985 = vld [vmem:[#allocation4 + $0xf0] sm:$0xff]
      %v1986 = vld [vmem:[#allocation4 + $0xf8] sm:$0xff]
      %v1987 = vld [vmem:[%s1] sm:$0xff]
      %v1988 = vld [vmem:[%s1 + $0x8] sm:$0xff]
      %v1989 = vld [vmem:[%s1 + $0x10] sm:$0xff]
      %v1990 = vld [vmem:[%s1 + $0x18] sm:$0xff]
      %v1991 = vld [vmem:[%s1 + $0x20] sm:$0xf]
      %v1992 = vld [vmem:[%s2] sm:$0x1]
      %v1994 = vlaneseq
      %v1995 = vshrl.u32 %v1994, 7
      %v1996 = vsub.s32 0, %v1995
      %v1997 = vrot.slane %v1992, %v1996
      %vm1999 = vcmask 293888
      %v2001 = vsel %vm1999, %v1955, 0
      %v2004 = vsel %vm1999, %v1956, 0
      %v2007 = vsel %vm1999, %v1957, 0
      %v2010 = vsel %vm1999, %v1958, 0
      %v2013 = vsel %vm1999, %v1959, 0
      %v2016 = vsel %vm1999, %v1960, 0
      %v2019 = vsel %vm1999, %v1961, 0
      %v2022 = vsel %vm1999, %v1962, 0
      %v2025 = vsel %vm1999, %v1963, 0
      %v2028 = vsel %vm1999, %v1964, 0
      %v2031 = vsel %vm1999, %v1965, 0
      %v2034 = vsel %vm1999, %v1966, 0
      %v2037 = vsel %vm1999, %v1967, 0
      %v2040 = vsel %vm1999, %v1968, 0
      %v2043 = vsel %vm1999, %v1969, 0
      %v2046 = vsel %vm1999, %v1970, 0
      %v2049 = vsel %vm1999, %v1971, 0
      %v2052 = vsel %vm1999, %v1972, 0
      %v2055 = vsel %vm1999, %v1973, 0
      %v2058 = vsel %vm1999, %v1974, 0
      %v2061 = vsel %vm1999, %v1975, 0
      %v2064 = vsel %vm1999, %v1976, 0
      %v2067 = vsel %vm1999, %v1977, 0
      %v2070 = vsel %vm1999, %v1978, 0
      %v2073 = vsel %vm1999, %v1979, 0
      %v2076 = vsel %vm1999, %v1980, 0
      %v2079 = vsel %vm1999, %v1981, 0
      %v2082 = vsel %vm1999, %v1982, 0
      %v2085 = vsel %vm1999, %v1983, 0
      %v2088 = vsel %vm1999, %v1984, 0
      %v2091 = vsel %vm1999, %v1985, 0
      %v2094 = vsel %vm1999, %v1986, 0
      %vm2096 = vcmask 1043456
      %v2098 = vsel %vm2096, %v1991, 0
      %2100 = vmatprep.subr.mxu0 0.0
      %2101 = vmatpush1.msra.mxu0 %v1987
      %2102 = vmatprep.subr.mxu0 0.0
      %2103 = vmatpush1.msra.mxu0 %v1988
      %2104 = vmatprep.subr.mxu0 0.0
      %2105 = vmatpush1.msra.mxu0 %v1989
      %2106 = vmatprep.subr.mxu0 0.0
      %2107 = vmatpush1.msra.mxu0 %v1990
      %2108 = vmatprep.subr.mxu0 0.0
      %2109 = vmatpush1.msra.mxu0 %v2098
      %2110 = vmatprep.subr.mxu0 0.0
      %2111 = vmatpush1.msra.mxu0 0.0
      %2112 = vmatprep.subr.mxu0 0.0
      %2113 = vmatpush1.msra.mxu0 0.0
      %2114 = vmatprep.subr.mxu0 0.0
      %2115 = vmatpush1.msra.mxu0 0.0
      %2116 = vmatprep.subr.mxu0 0.0
      %2117 = vmatpush1.msra.mxu0 0.0
      %2118 = vmatprep.subr.mxu0 0.0
      %2119 = vmatpush1.msra.mxu0 0.0
      %2120 = vmatprep.subr.mxu0 0.0
      %2121 = vmatpush1.msra.mxu0 0.0
      %2122 = vmatprep.subr.mxu0 0.0
      %2123 = vmatpush1.msra.mxu0 0.0
      %2124 = vmatprep.subr.mxu0 0.0
      %2125 = vmatpush1.msra.mxu0 0.0
      %2126 = vmatprep.subr.mxu0 0.0
      %2127 = vmatpush1.msra.mxu0 0.0
      %2128 = vmatprep.subr.mxu0 0.0
      %2129 = vmatpush1.msra.mxu0 0.0
      %2130 = vmatprep.subr.mxu0 0.0
      %2131 = vmatpush1.msra.mxu0 0.0
      %2132 = vmatprep.subr.mxu0 0.0
      %2133 = vmatpush1.msra.mxu0 0.0
      %2134 = vmatprep.subr.mxu0 0.0
      %2135 = vmatpush1.msra.mxu0 0.0
      %2136 = vmatprep.subr.mxu0 0.0
      %2137 = vmatpush1.msra.mxu0 0.0
      %2138 = vmatprep.subr.mxu0 0.0
      %2139 = vmatpush1.msra.mxu0 0.0
      %2140 = vmatprep.subr.mxu0 0.0
      %2141 = vmatpush1.msra.mxu0 0.0
      %2142 = vmatprep.subr.mxu0 0.0
      %2143 = vmatpush1.msra.mxu0 0.0
      %2144 = vmatprep.subr.mxu0 0.0
      %2145 = vmatpush1.msra.mxu0 0.0
      %2146 = vmatprep.subr.mxu0 0.0
      %2147 = vmatpush1.msra.mxu0 0.0
      %2148 = vmatprep.subr.mxu0 0.0
      %2149 = vmatpush1.msra.mxu0 0.0
      %2150 = vmatprep.subr.mxu0 0.0
      %2151 = vmatpush1.msra.mxu0 0.0
      %2152 = vmatprep.subr.mxu0 0.0
      %2153 = vmatpush1.msra.mxu0 0.0
      %2154 = vmatprep.subr.mxu0 0.0
      %2155 = vmatpush1.msra.mxu0 0.0
      %2156 = vmatprep.subr.mxu0 0.0
      %2157 = vmatpush1.msra.mxu0 0.0
      %2158 = vmatprep.subr.mxu0 0.0
      %2159 = vmatpush1.msra.mxu0 0.0
      %2160 = vmatprep.subr.mxu0 0.0
      %2161 = vmatpush1.msra.mxu0 0.0
      %2162 = vmatprep.subr.mxu0 0.0
      %2163 = vmatpush1.msra.mxu0 0.0
      %2164 = vmatprep.mubr.f32.mxu0 0.0
      %2165 = vmatmul.mubr.f32.gmra.mrb[0].mxu0 %v2001
      %v2166 = vpop.f32.mrb[0].mxu0
      %v2167 = vadd.f32 %v1997, %v2166
      %v2168 = vpop.f32.mrb[0].mxu0
      %2169 = vmatprep.mubr.f32.mxu0 0.0
      %2170 = vmatmul.mubr.f32.gmra.mrb[0].mxu0 %v2004
      %v2171 = vpop.f32.mrb[0].mxu0
      %v2172 = vadd.f32 %v1997, %v2171
      %v2173 = vpop.f32.mrb[0].mxu0
      %2174 = vmatprep.mubr.f32.mxu0 0.0
      %2175 = vmatmul.mubr.f32.gmra.mrb[0].mxu0 %v2007
      %v2176 = vpop.f32.mrb[0].mxu0
      %v2177 = vadd.f32 %v1997, %v2176
      %v2178 = vpop.f32.mrb[0].mxu0
      %2179 = vmatprep.mubr.f32.mxu0 0.0
      %2180 = vmatmul.mubr.f32.gmra.mrb[0].mxu0 %v2010
      %v2181 = vpop.f32.mrb[0].mxu0
      %v2182 = vadd.f32 %v1997, %v2181
      %v2183 = vpop.f32.mrb[0].mxu0
      %2184 = vmatprep.mubr.f32.mxu0 0.0
      %2185 = vmatmul.mubr.f32.gmra.mrb[0].mxu0 %v2013
      %v2186 = vpop.f32.mrb[0].mxu0
      %v2187 = vadd.f32 %v1997, %v2186
      %v2188 = vpop.f32.mrb[0].mxu0
      %2189 = vmatprep.mubr.f32.mxu0 0.0
      %2190 = vmatmul.mubr.f32.gmra.mrb[0].mxu0 %v2016
      %v2191 = vpop.f32.mrb[0].mxu0
      %v2192 = vadd.f32 %v1997, %v2191
      %v2193 = vpop.f32.mrb[0].mxu0
      %2194 = vmatprep.mubr.f32.mxu0 0.0
      %2195 = vmatmul.mubr.f32.gmra.mrb[0].mxu0 %v2019
      %v2196 = vpop.f32.mrb[0].mxu0
      %v2197 = vadd.f32 %v1997, %v2196
      %v2198 = vpop.f32.mrb[0].mxu0
      %2199 = vmatprep.mubr.f32.mxu0 0.0
      %2200 = vmatmul.mubr.f32.gmra.mrb[0].mxu0 %v2022
      %v2201 = vpop.f32.mrb[0].mxu0
      %v2202 = vadd.f32 %v1997, %v2201
      %v2203 = vpop.f32.mrb[0].mxu0
      %2204 = vmatprep.mubr.f32.mxu0 0.0
      %2205 = vmatmul.mubr.f32.gmra.mrb[0].mxu0 %v2025
      %v2206 = vpop.f32.mrb[0].mxu0
      %v2207 = vadd.f32 %v1997, %v2206
      %v2208 = vpop.f32.mrb[0].mxu0
      %2209 = vmatprep.mubr.f32.mxu0 0.0
      %2210 = vmatmul.mubr.f32.gmra.mrb[0].mxu0 %v2028
      %v2211 = vpop.f32.mrb[0].mxu0
      %v2212 = vadd.f32 %v1997, %v2211
      %v2213 = vpop.f32.mrb[0].mxu0
      %2214 = vmatprep.mubr.f32.mxu0 0.0
      %2215 = vmatmul.mubr.f32.gmra.mrb[0].mxu0 %v2031
      %v2216 = vpop.f32.mrb[0].mxu0
      %v2217 = vadd.f32 %v1997, %v2216
      %v2218 = vpop.f32.mrb[0].mxu0
      %2219 = vmatprep.mubr.f32.mxu0 0.0
      %2220 = vmatmul.mubr.f32.gmra.mrb[0].mxu0 %v2034
      %v2221 = vpop.f32.mrb[0].mxu0
      %v2222 = vadd.f32 %v1997, %v2221
      %v2223 = vpop.f32.mrb[0].mxu0
      %2224 = vmatprep.mubr.f32.mxu0 0.0
      %2225 = vmatmul.mubr.f32.gmra.mrb[0].mxu0 %v2037
      %v2226 = vpop.f32.mrb[0].mxu0
      %v2227 = vadd.f32 %v1997, %v2226
      %v2228 = vpop.f32.mrb[0].mxu0
      %2229 = vmatprep.mubr.f32.mxu0 0.0
      %2230 = vmatmul.mubr.f32.gmra.mrb[0].mxu0 %v2040
      %v2231 = vpop.f32.mrb[0].mxu0
      %v2232 = vadd.f32 %v1997, %v2231
      %v2233 = vpop.f32.mrb[0].mxu0
      %2234 = vmatprep.mubr.f32.mxu0 0.0
      %2235 = vmatmul.mubr.f32.gmra.mrb[0].mxu0 %v2043
      %v2236 = vpop.f32.mrb[0].mxu0
      %v2237 = vadd.f32 %v1997, %v2236
      %v2238 = vpop.f32.mrb[0].mxu0
      %2239 = vmatprep.mubr.f32.mxu0 0.0
      %2240 = vmatmul.mubr.f32.gmra.mrb[0].mxu0 %v2046
      %v2241 = vpop.f32.mrb[0].mxu0
      %v2242 = vadd.f32 %v1997, %v2241
      %v2243 = vpop.f32.mrb[0].mxu0
      %2244 = vmatprep.mubr.f32.mxu0 0.0
      %2245 = vmatmul.mubr.f32.gmra.mrb[0].mxu0 %v2049
      %v2246 = vpop.f32.mrb[0].mxu0
      %v2247 = vadd.f32 %v1997, %v2246
      %v2248 = vpop.f32.mrb[0].mxu0
      %2249 = vmatprep.mubr.f32.mxu0 0.0
      %2250 = vmatmul.mubr.f32.gmra.mrb[0].mxu0 %v2052
      %v2251 = vpop.f32.mrb[0].mxu0
      %v2252 = vadd.f32 %v1997, %v2251
      %v2253 = vpop.f32.mrb[0].mxu0
      %2254 = vmatprep.mubr.f32.mxu0 0.0
      %2255 = vmatmul.mubr.f32.gmra.mrb[0].mxu0 %v2055
      %v2256 = vpop.f32.mrb[0].mxu0
      %v2257 = vadd.f32 %v1997, %v2256
      %v2258 = vpop.f32.mrb[0].mxu0
      %2259 = vmatprep.mubr.f32.mxu0 0.0
      %2260 = vmatmul.mubr.f32.gmra.mrb[0].mxu0 %v2058
      %v2261 = vpop.f32.mrb[0].mxu0
      %v2262 = vadd.f32 %v1997, %v2261
      %v2263 = vpop.f32.mrb[0].mxu0
      %2264 = vmatprep.mubr.f32.mxu0 0.0
      %2265 = vmatmul.mubr.f32.gmra.mrb[0].mxu0 %v2061
      %v2266 = vpop.f32.mrb[0].mxu0
      %v2267 = vadd.f32 %v1997, %v2266
      %v2268 = vpop.f32.mrb[0].mxu0
      %2269 = vmatprep.mubr.f32.mxu0 0.0
      %2270 = vmatmul.mubr.f32.gmra.mrb[0].mxu0 %v2064
      %v2271 = vpop.f32.mrb[0].mxu0
      %v2272 = vadd.f32 %v1997, %v2271
      %v2273 = vpop.f32.mrb[0].mxu0
      %2274 = vmatprep.mubr.f32.mxu0 0.0
      %2275 = vmatmul.mubr.f32.gmra.mrb[0].mxu0 %v2067
      %v2276 = vpop.f32.mrb[0].mxu0
      %v2277 = vadd.f32 %v1997, %v2276
      %v2278 = vpop.f32.mrb[0].mxu0
      %2279 = vmatprep.mubr.f32.mxu0 0.0
      %2280 = vmatmul.mubr.f32.gmra.mrb[0].mxu0 %v2070
      %v2281 = vpop.f32.mrb[0].mxu0
      %v2282 = vadd.f32 %v1997, %v2281
      %v2283 = vpop.f32.mrb[0].mxu0
      %2284 = vmatprep.mubr.f32.mxu0 0.0
      %2285 = vmatmul.mubr.f32.gmra.mrb[0].mxu0 %v2073
      %v2286 = vpop.f32.mrb[0].mxu0
      %v2287 = vadd.f32 %v1997, %v2286
      %v2288 = vpop.f32.mrb[0].mxu0
      %2289 = vmatprep.mubr.f32.mxu0 0.0
      %2290 = vmatmul.mubr.f32.gmra.mrb[0].mxu0 %v2076
      %v2291 = vpop.f32.mrb[0].mxu0
      %v2292 = vadd.f32 %v1997, %v2291
      %v2293 = vpop.f32.mrb[0].mxu0
      %2294 = vmatprep.mubr.f32.mxu0 0.0
      %2295 = vmatmul.mubr.f32.gmra.mrb[0].mxu0 %v2079
      %v2296 = vpop.f32.mrb[0].mxu0
      %v2297 = vadd.f32 %v1997, %v2296
      %v2298 = vpop.f32.mrb[0].mxu0
      %2299 = vmatprep.mubr.f32.mxu0 0.0
      %2300 = vmatmul.mubr.f32.gmra.mrb[0].mxu0 %v2082
      %v2301 = vpop.f32.mrb[0].mxu0
      %v2302 = vadd.f32 %v1997, %v2301
      %v2303 = vpop.f32.mrb[0].mxu0
      %2304 = vmatprep.mubr.f32.mxu0 0.0
      %2305 = vmatmul.mubr.f32.gmra.mrb[0].mxu0 %v2085
      %v2306 = vpop.f32.mrb[0].mxu0
      %v2307 = vadd.f32 %v1997, %v2306
      %v2308 = vpop.f32.mrb[0].mxu0
      %2309 = vmatprep.mubr.f32.mxu0 0.0
      %2310 = vmatmul.mubr.f32.gmra.mrb[0].mxu0 %v2088
      %v2311 = vpop.f32.mrb[0].mxu0
      %v2312 = vadd.f32 %v1997, %v2311
      %v2313 = vpop.f32.mrb[0].mxu0
      %2314 = vmatprep.mubr.f32.mxu0 0.0
      %2315 = vmatmul.mubr.f32.gmra.mrb[0].mxu0 %v2091
      %v2316 = vpop.f32.mrb[0].mxu0
      %v2317 = vadd.f32 %v1997, %v2316
      %v2318 = vpop.f32.mrb[0].mxu0
      %2319 = vmatprep.mubr.f32.mxu0 0.0
      %2320 = vmatmul.mubr.f32.gmra.mrb[0].mxu0 %v2094
      %v2321 = vpop.f32.mrb[0].mxu0
      %v2322 = vadd.f32 %v1997, %v2321
      %v2323 = vpop.f32.mrb[0].mxu0
      %2324 = vdwg.mxu0
      %v2325 = vmax.f32 %v2167, 0.0
      %v2326 = vmax.f32 %v2172, 0.0
      %v2327 = vmax.f32 %v2177, 0.0
      %v2328 = vmax.f32 %v2182, 0.0
      %v2329 = vmax.f32 %v2187, 0.0
      %v2330 = vmax.f32 %v2192, 0.0
      %v2331 = vmax.f32 %v2197, 0.0
      %v2332 = vmax.f32 %v2202, 0.0
      %v2333 = vmax.f32 %v2207, 0.0
      %v2334 = vmax.f32 %v2212, 0.0
      %v2335 = vmax.f32 %v2217, 0.0
      %v2336 = vmax.f32 %v2222, 0.0
      %v2337 = vmax.f32 %v2227, 0.0
      %v2338 = vmax.f32 %v2232, 0.0
      %v2339 = vmax.f32 %v2237, 0.0
      %v2340 = vmax.f32 %v2242, 0.0
      %v2341 = vmax.f32 %v2247, 0.0
      %v2342 = vmax.f32 %v2252, 0.0
      %v2343 = vmax.f32 %v2257, 0.0
      %v2344 = vmax.f32 %v2262, 0.0
      %v2345 = vmax.f32 %v2267, 0.0
      %v2346 = vmax.f32 %v2272, 0.0
      %v2347 = vmax.f32 %v2277, 0.0
      %v2348 = vmax.f32 %v2282, 0.0
      %v2349 = vmax.f32 %v2287, 0.0
      %v2350 = vmax.f32 %v2292, 0.0
      %v2351 = vmax.f32 %v2297, 0.0
      %v2352 = vmax.f32 %v2302, 0.0
      %v2353 = vmax.f32 %v2307, 0.0
      %v2354 = vmax.f32 %v2312, 0.0
      %v2355 = vmax.f32 %v2317, 0.0
      %v2356 = vmax.f32 %v2322, 0.0
      %2357 = vst.msk [vmem:[#allocation3] sm:$0xff] %vm225, 0.0
      %2358 = vst.msk [vmem:[#allocation3 + $0x8] sm:$0xff] %vm225, 0.0
      %2359 = vst.msk [vmem:[#allocation3 + $0x10] sm:$0x3] %vm228, 0.0
      %2360 = vst.msk [vmem:[#allocation3 + $0x18] sm:$0xff] %vm225, 0.0
      %2361 = vst.msk [vmem:[#allocation3 + $0x20] sm:$0xff] %vm225, 0.0
      %2362 = vst.msk [vmem:[#allocation3 + $0x28] sm:$0x3] %vm228, 0.0
      %2363 = vst.msk [vmem:[#allocation3 + $0x30] sm:$0xff] %vm225, 0.0
      %2364 = vst.msk [vmem:[#allocation3 + $0x38] sm:$0xff] %vm225, 0.0
      %2365 = vst.msk [vmem:[#allocation3 + $0x40] sm:$0x3] %vm228, 0.0
      %2366 = vst.msk [vmem:[#allocation3 + $0x48] sm:$0xff] %vm225, 0.0
      %2367 = vst.msk [vmem:[#allocation3 + $0x50] sm:$0xff] %vm225, 0.0
      %2368 = vst.msk [vmem:[#allocation3 + $0x58] sm:$0x3] %vm228, 0.0
      %2369 = vst.msk [vmem:[#allocation3 + $0x60] sm:$0xff] %vm225, 0.0
      %2370 = vst.msk [vmem:[#allocation3 + $0x68] sm:$0xff] %vm225, 0.0
      %2371 = vst.msk [vmem:[#allocation3 + $0x70] sm:$0x3] %vm228, 0.0
      %2372 = vst.msk [vmem:[#allocation3 + $0x78] sm:$0xff] %vm225, 0.0
      %2373 = vst.msk [vmem:[#allocation3 + $0x80] sm:$0xff] %vm225, 0.0
      %2374 = vst.msk [vmem:[#allocation3 + $0x88] sm:$0x3] %vm228, 0.0
      %2375 = vst.msk [vmem:[#allocation3 + $0x90] sm:$0xff] %vm225, 0.0
      %2376 = vst.msk [vmem:[#allocation3 + $0x98] sm:$0xff] %vm225, 0.0
      %2377 = vst.msk [vmem:[#allocation3 + $0xa0] sm:$0x3] %vm228, 0.0
      %2378 = vst.msk [vmem:[#allocation3 + $0xa8] sm:$0xff] %vm225, 0.0
      %2379 = vst.msk [vmem:[#allocation3 + $0xb0] sm:$0xff] %vm225, 0.0
      %2380 = vst.msk [vmem:[#allocation3 + $0xb8] sm:$0x3] %vm228, 0.0
      %2381 = vst.msk [vmem:[#allocation3 + $0xc0] sm:$0xff] %vm225, 0.0
      %2382 = vst.msk [vmem:[#allocation3 + $0xc8] sm:$0xff] %vm225, 0.0
      %2383 = vst.msk [vmem:[#allocation3 + $0xd0] sm:$0x3] %vm228, 0.0
      %2384 = vst.msk [vmem:[#allocation3 + $0xd8] sm:$0xff] %vm225, 0.0
      %2385 = vst.msk [vmem:[#allocation3 + $0xe0] sm:$0xff] %vm225, 0.0
      %2386 = vst.msk [vmem:[#allocation3 + $0xe8] sm:$0x3] %vm228, 0.0
      %2387 = vst.msk [vmem:[#allocation3 + $0xf0] sm:$0xff] %vm225, 0.0
      %2388 = vst.msk [vmem:[#allocation3 + $0xf8] sm:$0xff] %vm225, 0.0
      %2389 = vst.msk [vmem:[#allocation3 + $0x100] sm:$0x3] %vm228, 0.0
      %2390 = vst.msk [vmem:[#allocation3 + $0x108] sm:$0xff] %vm225, 0.0
      %2391 = vst.msk [vmem:[#allocation3 + $0x110] sm:$0xff] %vm225, 0.0
      %2392 = vst.msk [vmem:[#allocation3 + $0x118] sm:$0x3] %vm228, 0.0
      %2393 = vst.msk [vmem:[#allocation3 + $0x120] sm:$0xff] %vm225, 0.0
      %2394 = vst.msk [vmem:[#allocation3 + $0x128] sm:$0xff] %vm225, 0.0
      %2395 = vst.msk [vmem:[#allocation3 + $0x130] sm:$0x3] %vm228, 0.0
      %2396 = vst.msk [vmem:[#allocation3 + $0x138] sm:$0xff] %vm225, 0.0
      %2397 = vst.msk [vmem:[#allocation3 + $0x140] sm:$0xff] %vm225, 0.0
      %2398 = vst.msk [vmem:[#allocation3 + $0x148] sm:$0x3] %vm228, 0.0
      %2399 = vst.msk [vmem:[#allocation3 + $0x150] sm:$0xff] %vm225, 0.0
      %2400 = vst.msk [vmem:[#allocation3 + $0x158] sm:$0xff] %vm225, 0.0
      %2401 = vst.msk [vmem:[#allocation3 + $0x160] sm:$0x3] %vm228, 0.0
      %2402 = vst.msk [vmem:[#allocation3 + $0x168] sm:$0xff] %vm225, 0.0
      %2403 = vst.msk [vmem:[#allocation3 + $0x170] sm:$0xff] %vm225, 0.0
      %2404 = vst.msk [vmem:[#allocation3 + $0x178] sm:$0x3] %vm228, 0.0
      %2405 = vst.msk [vmem:[#allocation3 + $0x180] sm:$0xff] %vm225, 0.0
      %2406 = vst.msk [vmem:[#allocation3 + $0x188] sm:$0xff] %vm225, 0.0
      %2407 = vst.msk [vmem:[#allocation3 + $0x190] sm:$0x3] %vm228, 0.0
      %2408 = vst.msk [vmem:[#allocation3 + $0x198] sm:$0xff] %vm225, 0.0
      %2409 = vst.msk [vmem:[#allocation3 + $0x1a0] sm:$0xff] %vm225, 0.0
      %2410 = vst.msk [vmem:[#allocation3 + $0x1a8] sm:$0x3] %vm228, 0.0
      %s2411 = scalar_lea.vmem [#allocation3], 24
      %2412 = vst.msk [vmem:[%s2411 + $0x1] sm:$0xff] %vm225, %v2325
      %2413 = vst.msk [vmem:[%s2411 + $0x9] sm:$0xff] %vm225, %v2326
      %2414 = vst.msk [vmem:[%s2411 + $0x19] sm:$0xff] %vm225, %v2327
      %2415 = vst.msk [vmem:[%s2411 + $0x21] sm:$0xff] %vm225, %v2328
      %2416 = vst.msk [vmem:[%s2411 + $0x31] sm:$0xff] %vm225, %v2329
      %2417 = vst.msk [vmem:[%s2411 + $0x39] sm:$0xff] %vm225, %v2330
      %2418 = vst.msk [vmem:[%s2411 + $0x49] sm:$0xff] %vm225, %v2331
      %2419 = vst.msk [vmem:[%s2411 + $0x51] sm:$0xff] %vm225, %v2332
      %2420 = vst.msk [vmem:[%s2411 + $0x61] sm:$0xff] %vm225, %v2333
      %2421 = vst.msk [vmem:[%s2411 + $0x69] sm:$0xff] %vm225, %v2334
      %2422 = vst.msk [vmem:[%s2411 + $0x79] sm:$0xff] %vm225, %v2335
      %2423 = vst.msk [vmem:[%s2411 + $0x81] sm:$0xff] %vm225, %v2336
      %2424 = vst.msk [vmem:[%s2411 + $0x91] sm:$0xff] %vm225, %v2337
      %2425 = vst.msk [vmem:[%s2411 + $0x99] sm:$0xff] %vm225, %v2338
      %2426 = vst.msk [vmem:[%s2411 + $0xa9] sm:$0xff] %vm225, %v2339
      %2427 = vst.msk [vmem:[%s2411 + $0xb1] sm:$0xff] %vm225, %v2340
      %2428 = vst.msk [vmem:[%s2411 + $0xc1] sm:$0xff] %vm225, %v2341
      %2429 = vst.msk [vmem:[%s2411 + $0xc9] sm:$0xff] %vm225, %v2342
      %2430 = vst.msk [vmem:[%s2411 + $0xd9] sm:$0xff] %vm225, %v2343
      %2431 = vst.msk [vmem:[%s2411 + $0xe1] sm:$0xff] %vm225, %v2344
      %2432 = vst.msk [vmem:[%s2411 + $0xf1] sm:$0xff] %vm225, %v2345
      %2433 = vst.msk [vmem:[%s2411 + $0xf9] sm:$0xff] %vm225, %v2346
      %2434 = vst.msk [vmem:[%s2411 + $0x109] sm:$0xff] %vm225, %v2347
      %2435 = vst.msk [vmem:[%s2411 + $0x111] sm:$0xff] %vm225, %v2348
      %2436 = vst.msk [vmem:[%s2411 + $0x121] sm:$0xff] %vm225, %v2349
      %2437 = vst.msk [vmem:[%s2411 + $0x129] sm:$0xff] %vm225, %v2350
      %2438 = vst.msk [vmem:[%s2411 + $0x139] sm:$0xff] %vm225, %v2351
      %2439 = vst.msk [vmem:[%s2411 + $0x141] sm:$0xff] %vm225, %v2352
      %2440 = vst.msk [vmem:[%s2411 + $0x151] sm:$0xff] %vm225, %v2353
      %2441 = vst.msk [vmem:[%s2411 + $0x159] sm:$0xff] %vm225, %v2354
      %2442 = vst.msk [vmem:[%s2411 + $0x169] sm:$0xff] %vm225, %v2355
      %2443 = vst.msk [vmem:[%s2411 + $0x171] sm:$0xff] %vm225, %v2356
      %v2444 = vld [vmem:[#allocation3] sm:$0xff]
      %v2445 = vld [vmem:[#allocation3 + $0x8] sm:$0xff]
      %v2446 = vld [vmem:[#allocation3 + $0x18] sm:$0xff]
      %v2447 = vld [vmem:[#allocation3 + $0x20] sm:$0xff]
      %v2448 = vld [vmem:[#allocation3 + $0x30] sm:$0xff]
      %v2449 = vld [vmem:[#allocation3 + $0x38] sm:$0xff]
      %v2450 = vld [vmem:[#allocation3 + $0x48] sm:$0xff]
      %v2451 = vld [vmem:[#allocation3 + $0x50] sm:$0xff]
      %v2452 = vld [vmem:[#allocation3 + $0x60] sm:$0xff]
      %v2453 = vld [vmem:[#allocation3 + $0x68] sm:$0xff]
      %v2454 = vld [vmem:[#allocation3 + $0x78] sm:$0xff]
      %v2455 = vld [vmem:[#allocation3 + $0x80] sm:$0xff]
      %v2456 = vld [vmem:[#allocation3 + $0x90] sm:$0xff]
      %v2457 = vld [vmem:[#allocation3 + $0x98] sm:$0xff]
      %v2458 = vld [vmem:[#allocation3 + $0xa8] sm:$0xff]
      %v2459 = vld [vmem:[#allocation3 + $0xb0] sm:$0xff]
      %v2460 = vld [vmem:[#allocation3 + $0xc0] sm:$0xff]
      %v2461 = vld [vmem:[#allocation3 + $0xc8] sm:$0xff]
      %v2462 = vld [vmem:[#allocation3 + $0xd8] sm:$0xff]
      %v2463 = vld [vmem:[#allocation3 + $0xe0] sm:$0xff]
      %v2464 = vld [vmem:[#allocation3 + $0xf0] sm:$0xff]
      %v2465 = vld [vmem:[#allocation3 + $0xf8] sm:$0xff]
      %v2466 = vld [vmem:[#allocation3 + $0x108] sm:$0xff]
      %v2467 = vld [vmem:[#allocation3 + $0x110] sm:$0xff]
      %v2468 = vld [vmem:[#allocation3 + $0x120] sm:$0xff]
      %v2469 = vld [vmem:[#allocation3 + $0x128] sm:$0xff]
      %v2470 = vld [vmem:[#allocation3 + $0x138] sm:$0xff]
      %v2471 = vld [vmem:[#allocation3 + $0x140] sm:$0xff]
      %v2472 = vld [vmem:[#allocation3 + $0x150] sm:$0xff]
      %v2473 = vld [vmem:[#allocation3 + $0x158] sm:$0xff]
      %v2474 = vld [vmem:[#allocation3 + $0x168] sm:$0xff]
      %v2475 = vld [vmem:[#allocation3 + $0x170] sm:$0xff]
      %2476 = vst.msk [vmem:[#allocation5] sm:$0xff] %vm225, %v2444
      %2477 = vst.msk [vmem:[#allocation5 + $0x8] sm:$0xff] %vm225, %v2445
      %2478 = vst.msk [vmem:[#allocation5 + $0x10] sm:$0xff] %vm225, %v2446
      %2479 = vst.msk [vmem:[#allocation5 + $0x18] sm:$0xff] %vm225, %v2447
      %2480 = vst.msk [vmem:[#allocation5 + $0x20] sm:$0xff] %vm225, %v2448
      %2481 = vst.msk [vmem:[#allocation5 + $0x28] sm:$0xff] %vm225, %v2449
      %2482 = vst.msk [vmem:[#allocation5 + $0x30] sm:$0xff] %vm225, %v2450
      %2483 = vst.msk [vmem:[#allocation5 + $0x38] sm:$0xff] %vm225, %v2451
      %2484 = vst.msk [vmem:[#allocation5 + $0x40] sm:$0xff] %vm225, %v2452
      %2485 = vst.msk [vmem:[#allocation5 + $0x48] sm:$0xff] %vm225, %v2453
      %2486 = vst.msk [vmem:[#allocation5 + $0x50] sm:$0xff] %vm225, %v2454
      %2487 = vst.msk [vmem:[#allocation5 + $0x58] sm:$0xff] %vm225, %v2455
      %2488 = vst.msk [vmem:[#allocation5 + $0x60] sm:$0xff] %vm225, %v2456
      %2489 = vst.msk [vmem:[#allocation5 + $0x68] sm:$0xff] %vm225, %v2457
      %2490 = vst.msk [vmem:[#allocation5 + $0x70] sm:$0xff] %vm225, %v2458
      %2491 = vst.msk [vmem:[#allocation5 + $0x78] sm:$0xff] %vm225, %v2459
      %2492 = vst.msk [vmem:[#allocation5 + $0x80] sm:$0xff] %vm225, %v2460
      %2493 = vst.msk [vmem:[#allocation5 + $0x88] sm:$0xff] %vm225, %v2461
      %2494 = vst.msk [vmem:[#allocation5 + $0x90] sm:$0xff] %vm225, %v2462
      %2495 = vst.msk [vmem:[#allocation5 + $0x98] sm:$0xff] %vm225, %v2463
      %2496 = vst.msk [vmem:[#allocation5 + $0xa0] sm:$0xff] %vm225, %v2464
      %2497 = vst.msk [vmem:[#allocation5 + $0xa8] sm:$0xff] %vm225, %v2465
      %2498 = vst.msk [vmem:[#allocation5 + $0xb0] sm:$0xff] %vm225, %v2466
      %2499 = vst.msk [vmem:[#allocation5 + $0xb8] sm:$0xff] %vm225, %v2467
      %2500 = vst.msk [vmem:[#allocation5 + $0xc0] sm:$0xff] %vm225, %v2468
      %2501 = vst.msk [vmem:[#allocation5 + $0xc8] sm:$0xff] %vm225, %v2469
      %2502 = vst.msk [vmem:[#allocation5 + $0xd0] sm:$0xff] %vm225, %v2470
      %2503 = vst.msk [vmem:[#allocation5 + $0xd8] sm:$0xff] %vm225, %v2471
      %2504 = vst.msk [vmem:[#allocation5 + $0xe0] sm:$0xff] %vm225, %v2472
      %2505 = vst.msk [vmem:[#allocation5 + $0xe8] sm:$0xff] %vm225, %v2473
      %2506 = vst.msk [vmem:[#allocation5 + $0xf0] sm:$0xff] %vm225, %v2474
      %2507 = vst.msk [vmem:[#allocation5 + $0xf8] sm:$0xff] %vm225, %v2475
      %v2508 = vld [vmem:[#allocation3 + $0x1] sm:$0xff]
      %v2509 = vld [vmem:[#allocation3 + $0x9] sm:$0xff]
      %v2510 = vld [vmem:[#allocation3 + $0x19] sm:$0xff]
      %v2511 = vld [vmem:[#allocation3 + $0x21] sm:$0xff]
      %v2512 = vld [vmem:[#allocation3 + $0x31] sm:$0xff]
      %v2513 = vld [vmem:[#allocation3 + $0x39] sm:$0xff]
      %v2514 = vld [vmem:[#allocation3 + $0x49] sm:$0xff]
      %v2515 = vld [vmem:[#allocation3 + $0x51] sm:$0xff]
      %v2516 = vld [vmem:[#allocation3 + $0x61] sm:$0xff]
      %v2517 = vld [vmem:[#allocation3 + $0x69] sm:$0xff]
      %v2518 = vld [vmem:[#allocation3 + $0x79] sm:$0xff]
      %v2519 = vld [vmem:[#allocation3 + $0x81] sm:$0xff]
      %v2520 = vld [vmem:[#allocation3 + $0x91] sm:$0xff]
      %v2521 = vld [vmem:[#allocation3 + $0x99] sm:$0xff]
      %v2522 = vld [vmem:[#allocation3 + $0xa9] sm:$0xff]
      %v2523 = vld [vmem:[#allocation3 + $0xb1] sm:$0xff]
      %v2524 = vld [vmem:[#allocation3 + $0xc1] sm:$0xff]
      %v2525 = vld [vmem:[#allocation3 + $0xc9] sm:$0xff]
      %v2526 = vld [vmem:[#allocation3 + $0xd9] sm:$0xff]
      %v2527 = vld [vmem:[#allocation3 + $0xe1] sm:$0xff]
      %v2528 = vld [vmem:[#allocation3 + $0xf1] sm:$0xff]
      %v2529 = vld [vmem:[#allocation3 + $0xf9] sm:$0xff]
      %v2530 = vld [vmem:[#allocation3 + $0x109] sm:$0xff]
      %v2531 = vld [vmem:[#allocation3 + $0x111] sm:$0xff]
      %v2532 = vld [vmem:[#allocation3 + $0x121] sm:$0xff]
      %v2533 = vld [vmem:[#allocation3 + $0x129] sm:$0xff]
      %v2534 = vld [vmem:[#allocation3 + $0x139] sm:$0xff]
      %v2535 = vld [vmem:[#allocation3 + $0x141] sm:$0xff]
      %v2536 = vld [vmem:[#allocation3 + $0x151] sm:$0xff]
      %v2537 = vld [vmem:[#allocation3 + $0x159] sm:$0xff]
      %v2538 = vld [vmem:[#allocation3 + $0x169] sm:$0xff]
      %v2539 = vld [vmem:[#allocation3 + $0x171] sm:$0xff]
      %2572 = vrot.lane.b32.xlu0 %v2508, 4
      %v2573 = vpop.permute.xlu0 %2572
      %2574 = vrot.lane.b32.xlu0 %v2509, 4
      %v2575 = vpop.permute.xlu0 %2574
      %2576 = vrot.lane.b32.xlu0 %v2510, 4
      %v2577 = vpop.permute.xlu0 %2576
      %2578 = vrot.lane.b32.xlu0 %v2511, 4
      %v2579 = vpop.permute.xlu0 %2578
      %2580 = vrot.lane.b32.xlu0 %v2512, 4
      %v2581 = vpop.permute.xlu0 %2580
      %2582 = vrot.lane.b32.xlu0 %v2513, 4
      %v2583 = vpop.permute.xlu0 %2582
      %2584 = vrot.lane.b32.xlu0 %v2514, 4
      %v2585 = vpop.permute.xlu0 %2584
      %2586 = vrot.lane.b32.xlu0 %v2515, 4
      %v2587 = vpop.permute.xlu0 %2586
      %2588 = vrot.lane.b32.xlu0 %v2516, 4
      %v2589 = vpop.permute.xlu0 %2588
      %2590 = vrot.lane.b32.xlu0 %v2517, 4
      %v2591 = vpop.permute.xlu0 %2590
      %2592 = vrot.lane.b32.xlu0 %v2518, 4
      %v2593 = vpop.permute.xlu0 %2592
      %2594 = vrot.lane.b32.xlu0 %v2519, 4
      %v2595 = vpop.permute.xlu0 %2594
      %2596 = vrot.lane.b32.xlu0 %v2520, 4
      %v2597 = vpop.permute.xlu0 %2596
      %2598 = vrot.lane.b32.xlu0 %v2521, 4
      %v2599 = vpop.permute.xlu0 %2598
      %2600 = vrot.lane.b32.xlu0 %v2522, 4
      %v2601 = vpop.permute.xlu0 %2600
      %2602 = vrot.lane.b32.xlu0 %v2523, 4
      %v2603 = vpop.permute.xlu0 %2602
      %2604 = vrot.lane.b32.xlu0 %v2524, 4
      %v2605 = vpop.permute.xlu0 %2604
      %2606 = vrot.lane.b32.xlu0 %v2525, 4
      %v2607 = vpop.permute.xlu0 %2606
      %2608 = vrot.lane.b32.xlu0 %v2526, 4
      %v2609 = vpop.permute.xlu0 %2608
      %2610 = vrot.lane.b32.xlu0 %v2527, 4
      %v2611 = vpop.permute.xlu0 %2610
      %2612 = vrot.lane.b32.xlu0 %v2528, 4
      %v2613 = vpop.permute.xlu0 %2612
      %2614 = vrot.lane.b32.xlu0 %v2529, 4
      %v2615 = vpop.permute.xlu0 %2614
      %2616 = vrot.lane.b32.xlu0 %v2530, 4
      %v2617 = vpop.permute.xlu0 %2616
      %2618 = vrot.lane.b32.xlu0 %v2531, 4
      %v2619 = vpop.permute.xlu0 %2618
      %2620 = vrot.lane.b32.xlu0 %v2532, 4
      %v2621 = vpop.permute.xlu0 %2620
      %2622 = vrot.lane.b32.xlu0 %v2533, 4
      %v2623 = vpop.permute.xlu0 %2622
      %2624 = vrot.lane.b32.xlu0 %v2534, 4
      %v2625 = vpop.permute.xlu0 %2624
      %2626 = vrot.lane.b32.xlu0 %v2535, 4
      %v2627 = vpop.permute.xlu0 %2626
      %2628 = vrot.lane.b32.xlu0 %v2536, 4
      %v2629 = vpop.permute.xlu0 %2628
      %2630 = vrot.lane.b32.xlu0 %v2537, 4
      %v2631 = vpop.permute.xlu0 %2630
      %2632 = vrot.lane.b32.xlu0 %v2538, 4
      %v2633 = vpop.permute.xlu0 %2632
      %2634 = vrot.lane.b32.xlu0 %v2539, 4
      %v2635 = vpop.permute.xlu0 %2634
      %2668 = vst.msk [vmem:[#allocation5] sm:$0xff] %vm570, %v2573
      %2669 = vst.msk [vmem:[#allocation5 + $0x8] sm:$0xff] %vm570, %v2575
      %2670 = vst.msk [vmem:[#allocation5 + $0x10] sm:$0xff] %vm570, %v2577
      %2671 = vst.msk [vmem:[#allocation5 + $0x18] sm:$0xff] %vm570, %v2579
      %2672 = vst.msk [vmem:[#allocation5 + $0x20] sm:$0xff] %vm570, %v2581
      %2673 = vst.msk [vmem:[#allocation5 + $0x28] sm:$0xff] %vm570, %v2583
      %2674 = vst.msk [vmem:[#allocation5 + $0x30] sm:$0xff] %vm570, %v2585
      %2675 = vst.msk [vmem:[#allocation5 + $0x38] sm:$0xff] %vm570, %v2587
      %2676 = vst.msk [vmem:[#allocation5 + $0x40] sm:$0xff] %vm570, %v2589
      %2677 = vst.msk [vmem:[#allocation5 + $0x48] sm:$0xff] %vm570, %v2591
      %2678 = vst.msk [vmem:[#allocation5 + $0x50] sm:$0xff] %vm570, %v2593
      %2679 = vst.msk [vmem:[#allocation5 + $0x58] sm:$0xff] %vm570, %v2595
      %2680 = vst.msk [vmem:[#allocation5 + $0x60] sm:$0xff] %vm570, %v2597
      %2681 = vst.msk [vmem:[#allocation5 + $0x68] sm:$0xff] %vm570, %v2599
      %2682 = vst.msk [vmem:[#allocation5 + $0x70] sm:$0xff] %vm570, %v2601
      %2683 = vst.msk [vmem:[#allocation5 + $0x78] sm:$0xff] %vm570, %v2603
      %2684 = vst.msk [vmem:[#allocation5 + $0x80] sm:$0xff] %vm570, %v2605
      %2685 = vst.msk [vmem:[#allocation5 + $0x88] sm:$0xff] %vm570, %v2607
      %2686 = vst.msk [vmem:[#allocation5 + $0x90] sm:$0xff] %vm570, %v2609
      %2687 = vst.msk [vmem:[#allocation5 + $0x98] sm:$0xff] %vm570, %v2611
      %2688 = vst.msk [vmem:[#allocation5 + $0xa0] sm:$0xff] %vm570, %v2613
      %2689 = vst.msk [vmem:[#allocation5 + $0xa8] sm:$0xff] %vm570, %v2615
      %2690 = vst.msk [vmem:[#allocation5 + $0xb0] sm:$0xff] %vm570, %v2617
      %2691 = vst.msk [vmem:[#allocation5 + $0xb8] sm:$0xff] %vm570, %v2619
      %2692 = vst.msk [vmem:[#allocation5 + $0xc0] sm:$0xff] %vm570, %v2621
      %2693 = vst.msk [vmem:[#allocation5 + $0xc8] sm:$0xff] %vm570, %v2623
      %2694 = vst.msk [vmem:[#allocation5 + $0xd0] sm:$0xff] %vm570, %v2625
      %2695 = vst.msk [vmem:[#allocation5 + $0xd8] sm:$0xff] %vm570, %v2627
      %2696 = vst.msk [vmem:[#allocation5 + $0xe0] sm:$0xff] %vm570, %v2629
      %2697 = vst.msk [vmem:[#allocation5 + $0xe8] sm:$0xff] %vm570, %v2631
      %2698 = vst.msk [vmem:[#allocation5 + $0xf0] sm:$0xff] %vm570, %v2633
      %2699 = vst.msk [vmem:[#allocation5 + $0xf8] sm:$0xff] %vm570, %v2635
      %v2700 = vld [vmem:[#allocation3 + $0x2] sm:$0xff]
      %v2701 = vld [vmem:[#allocation3 + $0xa] sm:$0xff]
      %v2702 = vld [vmem:[#allocation3 + $0x1a] sm:$0xff]
      %v2703 = vld [vmem:[#allocation3 + $0x22] sm:$0xff]
      %v2704 = vld [vmem:[#allocation3 + $0x32] sm:$0xff]
      %v2705 = vld [vmem:[#allocation3 + $0x3a] sm:$0xff]
      %v2706 = vld [vmem:[#allocation3 + $0x4a] sm:$0xff]
      %v2707 = vld [vmem:[#allocation3 + $0x52] sm:$0xff]
      %v2708 = vld [vmem:[#allocation3 + $0x62] sm:$0xff]
      %v2709 = vld [vmem:[#allocation3 + $0x6a] sm:$0xff]
      %v2710 = vld [vmem:[#allocation3 + $0x7a] sm:$0xff]
      %v2711 = vld [vmem:[#allocation3 + $0x82] sm:$0xff]
      %v2712 = vld [vmem:[#allocation3 + $0x92] sm:$0xff]
      %v2713 = vld [vmem:[#allocation3 + $0x9a] sm:$0xff]
      %v2714 = vld [vmem:[#allocation3 + $0xaa] sm:$0xff]
      %v2715 = vld [vmem:[#allocation3 + $0xb2] sm:$0xff]
      %v2716 = vld [vmem:[#allocation3 + $0xc2] sm:$0xff]
      %v2717 = vld [vmem:[#allocation3 + $0xca] sm:$0xff]
      %v2718 = vld [vmem:[#allocation3 + $0xda] sm:$0xff]
      %v2719 = vld [vmem:[#allocation3 + $0xe2] sm:$0xff]
      %v2720 = vld [vmem:[#allocation3 + $0xf2] sm:$0xff]
      %v2721 = vld [vmem:[#allocation3 + $0xfa] sm:$0xff]
      %v2722 = vld [vmem:[#allocation3 + $0x10a] sm:$0xff]
      %v2723 = vld [vmem:[#allocation3 + $0x112] sm:$0xff]
      %v2724 = vld [vmem:[#allocation3 + $0x122] sm:$0xff]
      %v2725 = vld [vmem:[#allocation3 + $0x12a] sm:$0xff]
      %v2726 = vld [vmem:[#allocation3 + $0x13a] sm:$0xff]
      %v2727 = vld [vmem:[#allocation3 + $0x142] sm:$0xff]
      %v2728 = vld [vmem:[#allocation3 + $0x152] sm:$0xff]
      %v2729 = vld [vmem:[#allocation3 + $0x15a] sm:$0xff]
      %v2730 = vld [vmem:[#allocation3 + $0x16a] sm:$0xff]
      %v2731 = vld [vmem:[#allocation3 + $0x172] sm:$0xff]
      %2764 = vrot.lane.b32.xlu0 %v2700, 8
      %v2765 = vpop.permute.xlu0 %2764
      %2766 = vrot.lane.b32.xlu0 %v2701, 8
      %v2767 = vpop.permute.xlu0 %2766
      %2768 = vrot.lane.b32.xlu0 %v2702, 8
      %v2769 = vpop.permute.xlu0 %2768
      %2770 = vrot.lane.b32.xlu0 %v2703, 8
      %v2771 = vpop.permute.xlu0 %2770
      %2772 = vrot.lane.b32.xlu0 %v2704, 8
      %v2773 = vpop.permute.xlu0 %2772
      %2774 = vrot.lane.b32.xlu0 %v2705, 8
      %v2775 = vpop.permute.xlu0 %2774
      %2776 = vrot.lane.b32.xlu0 %v2706, 8
      %v2777 = vpop.permute.xlu0 %2776
      %2778 = vrot.lane.b32.xlu0 %v2707, 8
      %v2779 = vpop.permute.xlu0 %2778
      %2780 = vrot.lane.b32.xlu0 %v2708, 8
      %v2781 = vpop.permute.xlu0 %2780
      %2782 = vrot.lane.b32.xlu0 %v2709, 8
      %v2783 = vpop.permute.xlu0 %2782
      %2784 = vrot.lane.b32.xlu0 %v2710, 8
      %v2785 = vpop.permute.xlu0 %2784
      %2786 = vrot.lane.b32.xlu0 %v2711, 8
      %v2787 = vpop.permute.xlu0 %2786
      %2788 = vrot.lane.b32.xlu0 %v2712, 8
      %v2789 = vpop.permute.xlu0 %2788
      %2790 = vrot.lane.b32.xlu0 %v2713, 8
      %v2791 = vpop.permute.xlu0 %2790
      %2792 = vrot.lane.b32.xlu0 %v2714, 8
      %v2793 = vpop.permute.xlu0 %2792
      %2794 = vrot.lane.b32.xlu0 %v2715, 8
      %v2795 = vpop.permute.xlu0 %2794
      %2796 = vrot.lane.b32.xlu0 %v2716, 8
      %v2797 = vpop.permute.xlu0 %2796
      %2798 = vrot.lane.b32.xlu0 %v2717, 8
      %v2799 = vpop.permute.xlu0 %2798
      %2800 = vrot.lane.b32.xlu0 %v2718, 8
      %v2801 = vpop.permute.xlu0 %2800
      %2802 = vrot.lane.b32.xlu0 %v2719, 8
      %v2803 = vpop.permute.xlu0 %2802
      %2804 = vrot.lane.b32.xlu0 %v2720, 8
      %v2805 = vpop.permute.xlu0 %2804
      %2806 = vrot.lane.b32.xlu0 %v2721, 8
      %v2807 = vpop.permute.xlu0 %2806
      %2808 = vrot.lane.b32.xlu0 %v2722, 8
      %v2809 = vpop.permute.xlu0 %2808
      %2810 = vrot.lane.b32.xlu0 %v2723, 8
      %v2811 = vpop.permute.xlu0 %2810
      %2812 = vrot.lane.b32.xlu0 %v2724, 8
      %v2813 = vpop.permute.xlu0 %2812
      %2814 = vrot.lane.b32.xlu0 %v2725, 8
      %v2815 = vpop.permute.xlu0 %2814
      %2816 = vrot.lane.b32.xlu0 %v2726, 8
      %v2817 = vpop.permute.xlu0 %2816
      %2818 = vrot.lane.b32.xlu0 %v2727, 8
      %v2819 = vpop.permute.xlu0 %2818
      %2820 = vrot.lane.b32.xlu0 %v2728, 8
      %v2821 = vpop.permute.xlu0 %2820
      %2822 = vrot.lane.b32.xlu0 %v2729, 8
      %v2823 = vpop.permute.xlu0 %2822
      %2824 = vrot.lane.b32.xlu0 %v2730, 8
      %v2825 = vpop.permute.xlu0 %2824
      %2826 = vrot.lane.b32.xlu0 %v2731, 8
      %v2827 = vpop.permute.xlu0 %2826
      %2860 = vst.msk [vmem:[#allocation5] sm:$0xff] %vm763, %v2765
      %2861 = vst.msk [vmem:[#allocation5 + $0x8] sm:$0xff] %vm763, %v2767
      %2862 = vst.msk [vmem:[#allocation5 + $0x10] sm:$0xff] %vm763, %v2769
      %2863 = vst.msk [vmem:[#allocation5 + $0x18] sm:$0xff] %vm763, %v2771
      %2864 = vst.msk [vmem:[#allocation5 + $0x20] sm:$0xff] %vm763, %v2773
      %2865 = vst.msk [vmem:[#allocation5 + $0x28] sm:$0xff] %vm763, %v2775
      %2866 = vst.msk [vmem:[#allocation5 + $0x30] sm:$0xff] %vm763, %v2777
      %2867 = vst.msk [vmem:[#allocation5 + $0x38] sm:$0xff] %vm763, %v2779
      %2868 = vst.msk [vmem:[#allocation5 + $0x40] sm:$0xff] %vm763, %v2781
      %2869 = vst.msk [vmem:[#allocation5 + $0x48] sm:$0xff] %vm763, %v2783
      %2870 = vst.msk [vmem:[#allocation5 + $0x50] sm:$0xff] %vm763, %v2785
      %2871 = vst.msk [vmem:[#allocation5 + $0x58] sm:$0xff] %vm763, %v2787
      %2872 = vst.msk [vmem:[#allocation5 + $0x60] sm:$0xff] %vm763, %v2789
      %2873 = vst.msk [vmem:[#allocation5 + $0x68] sm:$0xff] %vm763, %v2791
      %2874 = vst.msk [vmem:[#allocation5 + $0x70] sm:$0xff] %vm763, %v2793
      %2875 = vst.msk [vmem:[#allocation5 + $0x78] sm:$0xff] %vm763, %v2795
      %2876 = vst.msk [vmem:[#allocation5 + $0x80] sm:$0xff] %vm763, %v2797
      %2877 = vst.msk [vmem:[#allocation5 + $0x88] sm:$0xff] %vm763, %v2799
      %2878 = vst.msk [vmem:[#allocation5 + $0x90] sm:$0xff] %vm763, %v2801
      %2879 = vst.msk [vmem:[#allocation5 + $0x98] sm:$0xff] %vm763, %v2803
      %2880 = vst.msk [vmem:[#allocation5 + $0xa0] sm:$0xff] %vm763, %v2805
      %2881 = vst.msk [vmem:[#allocation5 + $0xa8] sm:$0xff] %vm763, %v2807
      %2882 = vst.msk [vmem:[#allocation5 + $0xb0] sm:$0xff] %vm763, %v2809
      %2883 = vst.msk [vmem:[#allocation5 + $0xb8] sm:$0xff] %vm763, %v2811
      %2884 = vst.msk [vmem:[#allocation5 + $0xc0] sm:$0xff] %vm763, %v2813
      %2885 = vst.msk [vmem:[#allocation5 + $0xc8] sm:$0xff] %vm763, %v2815
      %2886 = vst.msk [vmem:[#allocation5 + $0xd0] sm:$0xff] %vm763, %v2817
      %2887 = vst.msk [vmem:[#allocation5 + $0xd8] sm:$0xff] %vm763, %v2819
      %2888 = vst.msk [vmem:[#allocation5 + $0xe0] sm:$0xff] %vm763, %v2821
      %2889 = vst.msk [vmem:[#allocation5 + $0xe8] sm:$0xff] %vm763, %v2823
      %2890 = vst.msk [vmem:[#allocation5 + $0xf0] sm:$0xff] %vm763, %v2825
      %2891 = vst.msk [vmem:[#allocation5 + $0xf8] sm:$0xff] %vm763, %v2827
      %v2892 = vld [vmem:[%s2411] sm:$0xff]
      %v2893 = vld [vmem:[%s2411 + $0x8] sm:$0xff]
      %v2894 = vld [vmem:[%s2411 + $0x18] sm:$0xff]
      %v2895 = vld [vmem:[%s2411 + $0x20] sm:$0xff]
      %v2896 = vld [vmem:[%s2411 + $0x30] sm:$0xff]
      %v2897 = vld [vmem:[%s2411 + $0x38] sm:$0xff]
      %v2898 = vld [vmem:[%s2411 + $0x48] sm:$0xff]
      %v2899 = vld [vmem:[%s2411 + $0x50] sm:$0xff]
      %v2900 = vld [vmem:[%s2411 + $0x60] sm:$0xff]
      %v2901 = vld [vmem:[%s2411 + $0x68] sm:$0xff]
      %v2902 = vld [vmem:[%s2411 + $0x78] sm:$0xff]
      %v2903 = vld [vmem:[%s2411 + $0x80] sm:$0xff]
      %v2904 = vld [vmem:[%s2411 + $0x90] sm:$0xff]
      %v2905 = vld [vmem:[%s2411 + $0x98] sm:$0xff]
      %v2906 = vld [vmem:[%s2411 + $0xa8] sm:$0xff]
      %v2907 = vld [vmem:[%s2411 + $0xb0] sm:$0xff]
      %v2908 = vld [vmem:[%s2411 + $0xc0] sm:$0xff]
      %v2909 = vld [vmem:[%s2411 + $0xc8] sm:$0xff]
      %v2910 = vld [vmem:[%s2411 + $0xd8] sm:$0xff]
      %v2911 = vld [vmem:[%s2411 + $0xe0] sm:$0xff]
      %v2912 = vld [vmem:[%s2411 + $0xf0] sm:$0xff]
      %v2913 = vld [vmem:[%s2411 + $0xf8] sm:$0xff]
      %v2914 = vld [vmem:[%s2411 + $0x108] sm:$0xff]
      %v2915 = vld [vmem:[%s2411 + $0x110] sm:$0xff]
      %v2916 = vld [vmem:[%s2411 + $0x120] sm:$0xff]
      %v2917 = vld [vmem:[%s2411 + $0x128] sm:$0xff]
      %v2918 = vld [vmem:[%s2411 + $0x138] sm:$0xff]
      %v2919 = vld [vmem:[%s2411 + $0x140] sm:$0xff]
      %v2920 = vld [vmem:[%s2411 + $0x150] sm:$0xff]
      %v2921 = vld [vmem:[%s2411 + $0x158] sm:$0xff]
      %v2922 = vld [vmem:[%s2411 + $0x168] sm:$0xff]
      %v2923 = vld [vmem:[%s2411 + $0x170] sm:$0xff]
      %2956 = vrot.lane.b32.xlu0 %v2892, 12
      %v2957 = vpop.permute.xlu0 %2956
      %2958 = vrot.lane.b32.xlu0 %v2893, 12
      %v2959 = vpop.permute.xlu0 %2958
      %2960 = vrot.lane.b32.xlu0 %v2894, 12
      %v2961 = vpop.permute.xlu0 %2960
      %2962 = vrot.lane.b32.xlu0 %v2895, 12
      %v2963 = vpop.permute.xlu0 %2962
      %2964 = vrot.lane.b32.xlu0 %v2896, 12
      %v2965 = vpop.permute.xlu0 %2964
      %2966 = vrot.lane.b32.xlu0 %v2897, 12
      %v2967 = vpop.permute.xlu0 %2966
      %2968 = vrot.lane.b32.xlu0 %v2898, 12
      %v2969 = vpop.permute.xlu0 %2968
      %2970 = vrot.lane.b32.xlu0 %v2899, 12
      %v2971 = vpop.permute.xlu0 %2970
      %2972 = vrot.lane.b32.xlu0 %v2900, 12
      %v2973 = vpop.permute.xlu0 %2972
      %2974 = vrot.lane.b32.xlu0 %v2901, 12
      %v2975 = vpop.permute.xlu0 %2974
      %2976 = vrot.lane.b32.xlu0 %v2902, 12
      %v2977 = vpop.permute.xlu0 %2976
      %2978 = vrot.lane.b32.xlu0 %v2903, 12
      %v2979 = vpop.permute.xlu0 %2978
      %2980 = vrot.lane.b32.xlu0 %v2904, 12
      %v2981 = vpop.permute.xlu0 %2980
      %2982 = vrot.lane.b32.xlu0 %v2905, 12
      %v2983 = vpop.permute.xlu0 %2982
      %2984 = vrot.lane.b32.xlu0 %v2906, 12
      %v2985 = vpop.permute.xlu0 %2984
      %2986 = vrot.lane.b32.xlu0 %v2907, 12
      %v2987 = vpop.permute.xlu0 %2986
      %2988 = vrot.lane.b32.xlu0 %v2908, 12
      %v2989 = vpop.permute.xlu0 %2988
      %2990 = vrot.lane.b32.xlu0 %v2909, 12
      %v2991 = vpop.permute.xlu0 %2990
      %2992 = vrot.lane.b32.xlu0 %v2910, 12
      %v2993 = vpop.permute.xlu0 %2992
      %2994 = vrot.lane.b32.xlu0 %v2911, 12
      %v2995 = vpop.permute.xlu0 %2994
      %2996 = vrot.lane.b32.xlu0 %v2912, 12
      %v2997 = vpop.permute.xlu0 %2996
      %2998 = vrot.lane.b32.xlu0 %v2913, 12
      %v2999 = vpop.permute.xlu0 %2998
      %3000 = vrot.lane.b32.xlu0 %v2914, 12
      %v3001 = vpop.permute.xlu0 %3000
      %3002 = vrot.lane.b32.xlu0 %v2915, 12
      %v3003 = vpop.permute.xlu0 %3002
      %3004 = vrot.lane.b32.xlu0 %v2916, 12
      %v3005 = vpop.permute.xlu0 %3004
      %3006 = vrot.lane.b32.xlu0 %v2917, 12
      %v3007 = vpop.permute.xlu0 %3006
      %3008 = vrot.lane.b32.xlu0 %v2918, 12
      %v3009 = vpop.permute.xlu0 %3008
      %3010 = vrot.lane.b32.xlu0 %v2919, 12
      %v3011 = vpop.permute.xlu0 %3010
      %3012 = vrot.lane.b32.xlu0 %v2920, 12
      %v3013 = vpop.permute.xlu0 %3012
      %3014 = vrot.lane.b32.xlu0 %v2921, 12
      %v3015 = vpop.permute.xlu0 %3014
      %3016 = vrot.lane.b32.xlu0 %v2922, 12
      %v3017 = vpop.permute.xlu0 %3016
      %3018 = vrot.lane.b32.xlu0 %v2923, 12
      %v3019 = vpop.permute.xlu0 %3018
      %3052 = vst.msk [vmem:[#allocation5] sm:$0xff] %vm956, %v2957
      %3053 = vst.msk [vmem:[#allocation5 + $0x8] sm:$0xff] %vm956, %v2959
      %3054 = vst.msk [vmem:[#allocation5 + $0x10] sm:$0xff] %vm956, %v2961
      %3055 = vst.msk [vmem:[#allocation5 + $0x18] sm:$0xff] %vm956, %v2963
      %3056 = vst.msk [vmem:[#allocation5 + $0x20] sm:$0xff] %vm956, %v2965
      %3057 = vst.msk [vmem:[#allocation5 + $0x28] sm:$0xff] %vm956, %v2967
      %3058 = vst.msk [vmem:[#allocation5 + $0x30] sm:$0xff] %vm956, %v2969
      %3059 = vst.msk [vmem:[#allocation5 + $0x38] sm:$0xff] %vm956, %v2971
      %3060 = vst.msk [vmem:[#allocation5 + $0x40] sm:$0xff] %vm956, %v2973
      %3061 = vst.msk [vmem:[#allocation5 + $0x48] sm:$0xff] %vm956, %v2975
      %3062 = vst.msk [vmem:[#allocation5 + $0x50] sm:$0xff] %vm956, %v2977
      %3063 = vst.msk [vmem:[#allocation5 + $0x58] sm:$0xff] %vm956, %v2979
      %3064 = vst.msk [vmem:[#allocation5 + $0x60] sm:$0xff] %vm956, %v2981
      %3065 = vst.msk [vmem:[#allocation5 + $0x68] sm:$0xff] %vm956, %v2983
      %3066 = vst.msk [vmem:[#allocation5 + $0x70] sm:$0xff] %vm956, %v2985
      %3067 = vst.msk [vmem:[#allocation5 + $0x78] sm:$0xff] %vm956, %v2987
      %3068 = vst.msk [vmem:[#allocation5 + $0x80] sm:$0xff] %vm956, %v2989
      %3069 = vst.msk [vmem:[#allocation5 + $0x88] sm:$0xff] %vm956, %v2991
      %3070 = vst.msk [vmem:[#allocation5 + $0x90] sm:$0xff] %vm956, %v2993
      %3071 = vst.msk [vmem:[#allocation5 + $0x98] sm:$0xff] %vm956, %v2995
      %3072 = vst.msk [vmem:[#allocation5 + $0xa0] sm:$0xff] %vm956, %v2997
      %3073 = vst.msk [vmem:[#allocation5 + $0xa8] sm:$0xff] %vm956, %v2999
      %3074 = vst.msk [vmem:[#allocation5 + $0xb0] sm:$0xff] %vm956, %v3001
      %3075 = vst.msk [vmem:[#allocation5 + $0xb8] sm:$0xff] %vm956, %v3003
      %3076 = vst.msk [vmem:[#allocation5 + $0xc0] sm:$0xff] %vm956, %v3005
      %3077 = vst.msk [vmem:[#allocation5 + $0xc8] sm:$0xff] %vm956, %v3007
      %3078 = vst.msk [vmem:[#allocation5 + $0xd0] sm:$0xff] %vm956, %v3009
      %3079 = vst.msk [vmem:[#allocation5 + $0xd8] sm:$0xff] %vm956, %v3011
      %3080 = vst.msk [vmem:[#allocation5 + $0xe0] sm:$0xff] %vm956, %v3013
      %3081 = vst.msk [vmem:[#allocation5 + $0xe8] sm:$0xff] %vm956, %v3015
      %3082 = vst.msk [vmem:[#allocation5 + $0xf0] sm:$0xff] %vm956, %v3017
      %3083 = vst.msk [vmem:[#allocation5 + $0xf8] sm:$0xff] %vm956, %v3019
      %v3084 = vld [vmem:[%s2411 + $0x1] sm:$0xff]
      %v3085 = vld [vmem:[%s2411 + $0x9] sm:$0xff]
      %v3086 = vld [vmem:[%s2411 + $0x19] sm:$0xff]
      %v3087 = vld [vmem:[%s2411 + $0x21] sm:$0xff]
      %v3088 = vld [vmem:[%s2411 + $0x31] sm:$0xff]
      %v3089 = vld [vmem:[%s2411 + $0x39] sm:$0xff]
      %v3090 = vld [vmem:[%s2411 + $0x49] sm:$0xff]
      %v3091 = vld [vmem:[%s2411 + $0x51] sm:$0xff]
      %v3092 = vld [vmem:[%s2411 + $0x61] sm:$0xff]
      %v3093 = vld [vmem:[%s2411 + $0x69] sm:$0xff]
      %v3094 = vld [vmem:[%s2411 + $0x79] sm:$0xff]
      %v3095 = vld [vmem:[%s2411 + $0x81] sm:$0xff]
      %v3096 = vld [vmem:[%s2411 + $0x91] sm:$0xff]
      %v3097 = vld [vmem:[%s2411 + $0x99] sm:$0xff]
      %v3098 = vld [vmem:[%s2411 + $0xa9] sm:$0xff]
      %v3099 = vld [vmem:[%s2411 + $0xb1] sm:$0xff]
      %v3100 = vld [vmem:[%s2411 + $0xc1] sm:$0xff]
      %v3101 = vld [vmem:[%s2411 + $0xc9] sm:$0xff]
      %v3102 = vld [vmem:[%s2411 + $0xd9] sm:$0xff]
      %v3103 = vld [vmem:[%s2411 + $0xe1] sm:$0xff]
      %v3104 = vld [vmem:[%s2411 + $0xf1] sm:$0xff]
      %v3105 = vld [vmem:[%s2411 + $0xf9] sm:$0xff]
      %v3106 = vld [vmem:[%s2411 + $0x109] sm:$0xff]
      %v3107 = vld [vmem:[%s2411 + $0x111] sm:$0xff]
      %v3108 = vld [vmem:[%s2411 + $0x121] sm:$0xff]
      %v3109 = vld [vmem:[%s2411 + $0x129] sm:$0xff]
      %v3110 = vld [vmem:[%s2411 + $0x139] sm:$0xff]
      %v3111 = vld [vmem:[%s2411 + $0x141] sm:$0xff]
      %v3112 = vld [vmem:[%s2411 + $0x151] sm:$0xff]
      %v3113 = vld [vmem:[%s2411 + $0x159] sm:$0xff]
      %v3114 = vld [vmem:[%s2411 + $0x169] sm:$0xff]
      %v3115 = vld [vmem:[%s2411 + $0x171] sm:$0xff]
      %3148 = vrot.lane.b32.xlu0 %v3084, 16
      %v3149 = vpop.permute.xlu0 %3148
      %3150 = vrot.lane.b32.xlu0 %v3085, 16
      %v3151 = vpop.permute.xlu0 %3150
      %3152 = vrot.lane.b32.xlu0 %v3086, 16
      %v3153 = vpop.permute.xlu0 %3152
      %3154 = vrot.lane.b32.xlu0 %v3087, 16
      %v3155 = vpop.permute.xlu0 %3154
      %3156 = vrot.lane.b32.xlu0 %v3088, 16
      %v3157 = vpop.permute.xlu0 %3156
      %3158 = vrot.lane.b32.xlu0 %v3089, 16
      %v3159 = vpop.permute.xlu0 %3158
      %3160 = vrot.lane.b32.xlu0 %v3090, 16
      %v3161 = vpop.permute.xlu0 %3160
      %3162 = vrot.lane.b32.xlu0 %v3091, 16
      %v3163 = vpop.permute.xlu0 %3162
      %3164 = vrot.lane.b32.xlu0 %v3092, 16
      %v3165 = vpop.permute.xlu0 %3164
      %3166 = vrot.lane.b32.xlu0 %v3093, 16
      %v3167 = vpop.permute.xlu0 %3166
      %3168 = vrot.lane.b32.xlu0 %v3094, 16
      %v3169 = vpop.permute.xlu0 %3168
      %3170 = vrot.lane.b32.xlu0 %v3095, 16
      %v3171 = vpop.permute.xlu0 %3170
      %3172 = vrot.lane.b32.xlu0 %v3096, 16
      %v3173 = vpop.permute.xlu0 %3172
      %3174 = vrot.lane.b32.xlu0 %v3097, 16
      %v3175 = vpop.permute.xlu0 %3174
      %3176 = vrot.lane.b32.xlu0 %v3098, 16
      %v3177 = vpop.permute.xlu0 %3176
      %3178 = vrot.lane.b32.xlu0 %v3099, 16
      %v3179 = vpop.permute.xlu0 %3178
      %3180 = vrot.lane.b32.xlu0 %v3100, 16
      %v3181 = vpop.permute.xlu0 %3180
      %3182 = vrot.lane.b32.xlu0 %v3101, 16
      %v3183 = vpop.permute.xlu0 %3182
      %3184 = vrot.lane.b32.xlu0 %v3102, 16
      %v3185 = vpop.permute.xlu0 %3184
      %3186 = vrot.lane.b32.xlu0 %v3103, 16
      %v3187 = vpop.permute.xlu0 %3186
      %3188 = vrot.lane.b32.xlu0 %v3104, 16
      %v3189 = vpop.permute.xlu0 %3188
      %3190 = vrot.lane.b32.xlu0 %v3105, 16
      %v3191 = vpop.permute.xlu0 %3190
      %3192 = vrot.lane.b32.xlu0 %v3106, 16
      %v3193 = vpop.permute.xlu0 %3192
      %3194 = vrot.lane.b32.xlu0 %v3107, 16
      %v3195 = vpop.permute.xlu0 %3194
      %3196 = vrot.lane.b32.xlu0 %v3108, 16
      %v3197 = vpop.permute.xlu0 %3196
      %3198 = vrot.lane.b32.xlu0 %v3109, 16
      %v3199 = vpop.permute.xlu0 %3198
      %3200 = vrot.lane.b32.xlu0 %v3110, 16
      %v3201 = vpop.permute.xlu0 %3200
      %3202 = vrot.lane.b32.xlu0 %v3111, 16
      %v3203 = vpop.permute.xlu0 %3202
      %3204 = vrot.lane.b32.xlu0 %v3112, 16
      %v3205 = vpop.permute.xlu0 %3204
      %3206 = vrot.lane.b32.xlu0 %v3113, 16
      %v3207 = vpop.permute.xlu0 %3206
      %3208 = vrot.lane.b32.xlu0 %v3114, 16
      %v3209 = vpop.permute.xlu0 %3208
      %3210 = vrot.lane.b32.xlu0 %v3115, 16
      %v3211 = vpop.permute.xlu0 %3210
      %3244 = vst.msk [vmem:[#allocation5] sm:$0xff] %vm1149, %v3149
      %3245 = vst.msk [vmem:[#allocation5 + $0x8] sm:$0xff] %vm1149, %v3151
      %3246 = vst.msk [vmem:[#allocation5 + $0x10] sm:$0xff] %vm1149, %v3153
      %3247 = vst.msk [vmem:[#allocation5 + $0x18] sm:$0xff] %vm1149, %v3155
      %3248 = vst.msk [vmem:[#allocation5 + $0x20] sm:$0xff] %vm1149, %v3157
      %3249 = vst.msk [vmem:[#allocation5 + $0x28] sm:$0xff] %vm1149, %v3159
      %3250 = vst.msk [vmem:[#allocation5 + $0x30] sm:$0xff] %vm1149, %v3161
      %3251 = vst.msk [vmem:[#allocation5 + $0x38] sm:$0xff] %vm1149, %v3163
      %3252 = vst.msk [vmem:[#allocation5 + $0x40] sm:$0xff] %vm1149, %v3165
      %3253 = vst.msk [vmem:[#allocation5 + $0x48] sm:$0xff] %vm1149, %v3167
      %3254 = vst.msk [vmem:[#allocation5 + $0x50] sm:$0xff] %vm1149, %v3169
      %3255 = vst.msk [vmem:[#allocation5 + $0x58] sm:$0xff] %vm1149, %v3171
      %3256 = vst.msk [vmem:[#allocation5 + $0x60] sm:$0xff] %vm1149, %v3173
      %3257 = vst.msk [vmem:[#allocation5 + $0x68] sm:$0xff] %vm1149, %v3175
      %3258 = vst.msk [vmem:[#allocation5 + $0x70] sm:$0xff] %vm1149, %v3177
      %3259 = vst.msk [vmem:[#allocation5 + $0x78] sm:$0xff] %vm1149, %v3179
      %3260 = vst.msk [vmem:[#allocation5 + $0x80] sm:$0xff] %vm1149, %v3181
      %3261 = vst.msk [vmem:[#allocation5 + $0x88] sm:$0xff] %vm1149, %v3183
      %3262 = vst.msk [vmem:[#allocation5 + $0x90] sm:$0xff] %vm1149, %v3185
      %3263 = vst.msk [vmem:[#allocation5 + $0x98] sm:$0xff] %vm1149, %v3187
      %3264 = vst.msk [vmem:[#allocation5 + $0xa0] sm:$0xff] %vm1149, %v3189
      %3265 = vst.msk [vmem:[#allocation5 + $0xa8] sm:$0xff] %vm1149, %v3191
      %3266 = vst.msk [vmem:[#allocation5 + $0xb0] sm:$0xff] %vm1149, %v3193
      %3267 = vst.msk [vmem:[#allocation5 + $0xb8] sm:$0xff] %vm1149, %v3195
      %3268 = vst.msk [vmem:[#allocation5 + $0xc0] sm:$0xff] %vm1149, %v3197
      %3269 = vst.msk [vmem:[#allocation5 + $0xc8] sm:$0xff] %vm1149, %v3199
      %3270 = vst.msk [vmem:[#allocation5 + $0xd0] sm:$0xff] %vm1149, %v3201
      %3271 = vst.msk [vmem:[#allocation5 + $0xd8] sm:$0xff] %vm1149, %v3203
      %3272 = vst.msk [vmem:[#allocation5 + $0xe0] sm:$0xff] %vm1149, %v3205
      %3273 = vst.msk [vmem:[#allocation5 + $0xe8] sm:$0xff] %vm1149, %v3207
      %3274 = vst.msk [vmem:[#allocation5 + $0xf0] sm:$0xff] %vm1149, %v3209
      %3275 = vst.msk [vmem:[#allocation5 + $0xf8] sm:$0xff] %vm1149, %v3211
      %v3276 = vld [vmem:[%s2411 + $0x2] sm:$0xff]
      %v3277 = vld [vmem:[%s2411 + $0xa] sm:$0xff]
      %v3278 = vld [vmem:[%s2411 + $0x1a] sm:$0xff]
      %v3279 = vld [vmem:[%s2411 + $0x22] sm:$0xff]
      %v3280 = vld [vmem:[%s2411 + $0x32] sm:$0xff]
      %v3281 = vld [vmem:[%s2411 + $0x3a] sm:$0xff]
      %v3282 = vld [vmem:[%s2411 + $0x4a] sm:$0xff]
      %v3283 = vld [vmem:[%s2411 + $0x52] sm:$0xff]
      %v3284 = vld [vmem:[%s2411 + $0x62] sm:$0xff]
      %v3285 = vld [vmem:[%s2411 + $0x6a] sm:$0xff]
      %v3286 = vld [vmem:[%s2411 + $0x7a] sm:$0xff]
      %v3287 = vld [vmem:[%s2411 + $0x82] sm:$0xff]
      %v3288 = vld [vmem:[%s2411 + $0x92] sm:$0xff]
      %v3289 = vld [vmem:[%s2411 + $0x9a] sm:$0xff]
      %v3290 = vld [vmem:[%s2411 + $0xaa] sm:$0xff]
      %v3291 = vld [vmem:[%s2411 + $0xb2] sm:$0xff]
      %v3292 = vld [vmem:[%s2411 + $0xc2] sm:$0xff]
      %v3293 = vld [vmem:[%s2411 + $0xca] sm:$0xff]
      %v3294 = vld [vmem:[%s2411 + $0xda] sm:$0xff]
      %v3295 = vld [vmem:[%s2411 + $0xe2] sm:$0xff]
      %v3296 = vld [vmem:[%s2411 + $0xf2] sm:$0xff]
      %v3297 = vld [vmem:[%s2411 + $0xfa] sm:$0xff]
      %v3298 = vld [vmem:[%s2411 + $0x10a] sm:$0xff]
      %v3299 = vld [vmem:[%s2411 + $0x112] sm:$0xff]
      %v3300 = vld [vmem:[%s2411 + $0x122] sm:$0xff]
      %v3301 = vld [vmem:[%s2411 + $0x12a] sm:$0xff]
      %v3302 = vld [vmem:[%s2411 + $0x13a] sm:$0xff]
      %v3303 = vld [vmem:[%s2411 + $0x142] sm:$0xff]
      %v3304 = vld [vmem:[%s2411 + $0x152] sm:$0xff]
      %v3305 = vld [vmem:[%s2411 + $0x15a] sm:$0xff]
      %v3306 = vld [vmem:[%s2411 + $0x16a] sm:$0xff]
      %v3307 = vld [vmem:[%s2411 + $0x172] sm:$0xff]
      %3340 = vrot.lane.b32.xlu0 %v3276, 20
      %v3341 = vpop.permute.xlu0 %3340
      %3342 = vrot.lane.b32.xlu0 %v3277, 20
      %v3343 = vpop.permute.xlu0 %3342
      %3344 = vrot.lane.b32.xlu0 %v3278, 20
      %v3345 = vpop.permute.xlu0 %3344
      %3346 = vrot.lane.b32.xlu0 %v3279, 20
      %v3347 = vpop.permute.xlu0 %3346
      %3348 = vrot.lane.b32.xlu0 %v3280, 20
      %v3349 = vpop.permute.xlu0 %3348
      %3350 = vrot.lane.b32.xlu0 %v3281, 20
      %v3351 = vpop.permute.xlu0 %3350
      %3352 = vrot.lane.b32.xlu0 %v3282, 20
      %v3353 = vpop.permute.xlu0 %3352
      %3354 = vrot.lane.b32.xlu0 %v3283, 20
      %v3355 = vpop.permute.xlu0 %3354
      %3356 = vrot.lane.b32.xlu0 %v3284, 20
      %v3357 = vpop.permute.xlu0 %3356
      %3358 = vrot.lane.b32.xlu0 %v3285, 20
      %v3359 = vpop.permute.xlu0 %3358
      %3360 = vrot.lane.b32.xlu0 %v3286, 20
      %v3361 = vpop.permute.xlu0 %3360
      %3362 = vrot.lane.b32.xlu0 %v3287, 20
      %v3363 = vpop.permute.xlu0 %3362
      %3364 = vrot.lane.b32.xlu0 %v3288, 20
      %v3365 = vpop.permute.xlu0 %3364
      %3366 = vrot.lane.b32.xlu0 %v3289, 20
      %v3367 = vpop.permute.xlu0 %3366
      %3368 = vrot.lane.b32.xlu0 %v3290, 20
      %v3369 = vpop.permute.xlu0 %3368
      %3370 = vrot.lane.b32.xlu0 %v3291, 20
      %v3371 = vpop.permute.xlu0 %3370
      %3372 = vrot.lane.b32.xlu0 %v3292, 20
      %v3373 = vpop.permute.xlu0 %3372
      %3374 = vrot.lane.b32.xlu0 %v3293, 20
      %v3375 = vpop.permute.xlu0 %3374
      %3376 = vrot.lane.b32.xlu0 %v3294, 20
      %v3377 = vpop.permute.xlu0 %3376
      %3378 = vrot.lane.b32.xlu0 %v3295, 20
      %v3379 = vpop.permute.xlu0 %3378
      %3380 = vrot.lane.b32.xlu0 %v3296, 20
      %v3381 = vpop.permute.xlu0 %3380
      %3382 = vrot.lane.b32.xlu0 %v3297, 20
      %v3383 = vpop.permute.xlu0 %3382
      %3384 = vrot.lane.b32.xlu0 %v3298, 20
      %v3385 = vpop.permute.xlu0 %3384
      %3386 = vrot.lane.b32.xlu0 %v3299, 20
      %v3387 = vpop.permute.xlu0 %3386
      %3388 = vrot.lane.b32.xlu0 %v3300, 20
      %v3389 = vpop.permute.xlu0 %3388
      %3390 = vrot.lane.b32.xlu0 %v3301, 20
      %v3391 = vpop.permute.xlu0 %3390
      %3392 = vrot.lane.b32.xlu0 %v3302, 20
      %v3393 = vpop.permute.xlu0 %3392
      %3394 = vrot.lane.b32.xlu0 %v3303, 20
      %v3395 = vpop.permute.xlu0 %3394
      %3396 = vrot.lane.b32.xlu0 %v3304, 20
      %v3397 = vpop.permute.xlu0 %3396
      %3398 = vrot.lane.b32.xlu0 %v3305, 20
      %v3399 = vpop.permute.xlu0 %3398
      %3400 = vrot.lane.b32.xlu0 %v3306, 20
      %v3401 = vpop.permute.xlu0 %3400
      %3402 = vrot.lane.b32.xlu0 %v3307, 20
      %v3403 = vpop.permute.xlu0 %3402
      %3436 = vst.msk [vmem:[#allocation5] sm:$0xff] %vm1342, %v3341
      %3437 = vst.msk [vmem:[#allocation5 + $0x8] sm:$0xff] %vm1342, %v3343
      %3438 = vst.msk [vmem:[#allocation5 + $0x10] sm:$0xff] %vm1342, %v3345
      %3439 = vst.msk [vmem:[#allocation5 + $0x18] sm:$0xff] %vm1342, %v3347
      %3440 = vst.msk [vmem:[#allocation5 + $0x20] sm:$0xff] %vm1342, %v3349
      %3441 = vst.msk [vmem:[#allocation5 + $0x28] sm:$0xff] %vm1342, %v3351
      %3442 = vst.msk [vmem:[#allocation5 + $0x30] sm:$0xff] %vm1342, %v3353
      %3443 = vst.msk [vmem:[#allocation5 + $0x38] sm:$0xff] %vm1342, %v3355
      %3444 = vst.msk [vmem:[#allocation5 + $0x40] sm:$0xff] %vm1342, %v3357
      %3445 = vst.msk [vmem:[#allocation5 + $0x48] sm:$0xff] %vm1342, %v3359
      %3446 = vst.msk [vmem:[#allocation5 + $0x50] sm:$0xff] %vm1342, %v3361
      %3447 = vst.msk [vmem:[#allocation5 + $0x58] sm:$0xff] %vm1342, %v3363
      %3448 = vst.msk [vmem:[#allocation5 + $0x60] sm:$0xff] %vm1342, %v3365
      %3449 = vst.msk [vmem:[#allocation5 + $0x68] sm:$0xff] %vm1342, %v3367
      %3450 = vst.msk [vmem:[#allocation5 + $0x70] sm:$0xff] %vm1342, %v3369
      %3451 = vst.msk [vmem:[#allocation5 + $0x78] sm:$0xff] %vm1342, %v3371
      %3452 = vst.msk [vmem:[#allocation5 + $0x80] sm:$0xff] %vm1342, %v3373
      %3453 = vst.msk [vmem:[#allocation5 + $0x88] sm:$0xff] %vm1342, %v3375
      %3454 = vst.msk [vmem:[#allocation5 + $0x90] sm:$0xff] %vm1342, %v3377
      %3455 = vst.msk [vmem:[#allocation5 + $0x98] sm:$0xff] %vm1342, %v3379
      %3456 = vst.msk [vmem:[#allocation5 + $0xa0] sm:$0xff] %vm1342, %v3381
      %3457 = vst.msk [vmem:[#allocation5 + $0xa8] sm:$0xff] %vm1342, %v3383
      %3458 = vst.msk [vmem:[#allocation5 + $0xb0] sm:$0xff] %vm1342, %v3385
      %3459 = vst.msk [vmem:[#allocation5 + $0xb8] sm:$0xff] %vm1342, %v3387
      %3460 = vst.msk [vmem:[#allocation5 + $0xc0] sm:$0xff] %vm1342, %v3389
      %3461 = vst.msk [vmem:[#allocation5 + $0xc8] sm:$0xff] %vm1342, %v3391
      %3462 = vst.msk [vmem:[#allocation5 + $0xd0] sm:$0xff] %vm1342, %v3393
      %3463 = vst.msk [vmem:[#allocation5 + $0xd8] sm:$0xff] %vm1342, %v3395
      %3464 = vst.msk [vmem:[#allocation5 + $0xe0] sm:$0xff] %vm1342, %v3397
      %3465 = vst.msk [vmem:[#allocation5 + $0xe8] sm:$0xff] %vm1342, %v3399
      %3466 = vst.msk [vmem:[#allocation5 + $0xf0] sm:$0xff] %vm1342, %v3401
      %3467 = vst.msk [vmem:[#allocation5 + $0xf8] sm:$0xff] %vm1342, %v3403
      %s3468 = scalar_lea.vmem [#allocation3], 48
      %v3469 = vld [vmem:[%s3468] sm:$0xff]
      %v3470 = vld [vmem:[%s3468 + $0x8] sm:$0xff]
      %v3471 = vld [vmem:[%s3468 + $0x18] sm:$0xff]
      %v3472 = vld [vmem:[%s3468 + $0x20] sm:$0xff]
      %v3473 = vld [vmem:[%s3468 + $0x30] sm:$0xff]
      %v3474 = vld [vmem:[%s3468 + $0x38] sm:$0xff]
      %v3475 = vld [vmem:[%s3468 + $0x48] sm:$0xff]
      %v3476 = vld [vmem:[%s3468 + $0x50] sm:$0xff]
      %v3477 = vld [vmem:[%s3468 + $0x60] sm:$0xff]
      %v3478 = vld [vmem:[%s3468 + $0x68] sm:$0xff]
      %v3479 = vld [vmem:[%s3468 + $0x78] sm:$0xff]
      %v3480 = vld [vmem:[%s3468 + $0x80] sm:$0xff]
      %v3481 = vld [vmem:[%s3468 + $0x90] sm:$0xff]
      %v3482 = vld [vmem:[%s3468 + $0x98] sm:$0xff]
      %v3483 = vld [vmem:[%s3468 + $0xa8] sm:$0xff]
      %v3484 = vld [vmem:[%s3468 + $0xb0] sm:$0xff]
      %v3485 = vld [vmem:[%s3468 + $0xc0] sm:$0xff]
      %v3486 = vld [vmem:[%s3468 + $0xc8] sm:$0xff]
      %v3487 = vld [vmem:[%s3468 + $0xd8] sm:$0xff]
      %v3488 = vld [vmem:[%s3468 + $0xe0] sm:$0xff]
      %v3489 = vld [vmem:[%s3468 + $0xf0] sm:$0xff]
      %v3490 = vld [vmem:[%s3468 + $0xf8] sm:$0xff]
      %v3491 = vld [vmem:[%s3468 + $0x108] sm:$0xff]
      %v3492 = vld [vmem:[%s3468 + $0x110] sm:$0xff]
      %v3493 = vld [vmem:[%s3468 + $0x120] sm:$0xff]
      %v3494 = vld [vmem:[%s3468 + $0x128] sm:$0xff]
      %v3495 = vld [vmem:[%s3468 + $0x138] sm:$0xff]
      %v3496 = vld [vmem:[%s3468 + $0x140] sm:$0xff]
      %v3497 = vld [vmem:[%s3468 + $0x150] sm:$0xff]
      %v3498 = vld [vmem:[%s3468 + $0x158] sm:$0xff]
      %v3499 = vld [vmem:[%s3468 + $0x168] sm:$0xff]
      %v3500 = vld [vmem:[%s3468 + $0x170] sm:$0xff]
      %3533 = vrot.lane.b32.xlu0 %v3469, 24
      %v3534 = vpop.permute.xlu0 %3533
      %3535 = vrot.lane.b32.xlu0 %v3470, 24
      %v3536 = vpop.permute.xlu0 %3535
      %3537 = vrot.lane.b32.xlu0 %v3471, 24
      %v3538 = vpop.permute.xlu0 %3537
      %3539 = vrot.lane.b32.xlu0 %v3472, 24
      %v3540 = vpop.permute.xlu0 %3539
      %3541 = vrot.lane.b32.xlu0 %v3473, 24
      %v3542 = vpop.permute.xlu0 %3541
      %3543 = vrot.lane.b32.xlu0 %v3474, 24
      %v3544 = vpop.permute.xlu0 %3543
      %3545 = vrot.lane.b32.xlu0 %v3475, 24
      %v3546 = vpop.permute.xlu0 %3545
      %3547 = vrot.lane.b32.xlu0 %v3476, 24
      %v3548 = vpop.permute.xlu0 %3547
      %3549 = vrot.lane.b32.xlu0 %v3477, 24
      %v3550 = vpop.permute.xlu0 %3549
      %3551 = vrot.lane.b32.xlu0 %v3478, 24
      %v3552 = vpop.permute.xlu0 %3551
      %3553 = vrot.lane.b32.xlu0 %v3479, 24
      %v3554 = vpop.permute.xlu0 %3553
      %3555 = vrot.lane.b32.xlu0 %v3480, 24
      %v3556 = vpop.permute.xlu0 %3555
      %3557 = vrot.lane.b32.xlu0 %v3481, 24
      %v3558 = vpop.permute.xlu0 %3557
      %3559 = vrot.lane.b32.xlu0 %v3482, 24
      %v3560 = vpop.permute.xlu0 %3559
      %3561 = vrot.lane.b32.xlu0 %v3483, 24
      %v3562 = vpop.permute.xlu0 %3561
      %3563 = vrot.lane.b32.xlu0 %v3484, 24
      %v3564 = vpop.permute.xlu0 %3563
      %3565 = vrot.lane.b32.xlu0 %v3485, 24
      %v3566 = vpop.permute.xlu0 %3565
      %3567 = vrot.lane.b32.xlu0 %v3486, 24
      %v3568 = vpop.permute.xlu0 %3567
      %3569 = vrot.lane.b32.xlu0 %v3487, 24
      %v3570 = vpop.permute.xlu0 %3569
      %3571 = vrot.lane.b32.xlu0 %v3488, 24
      %v3572 = vpop.permute.xlu0 %3571
      %3573 = vrot.lane.b32.xlu0 %v3489, 24
      %v3574 = vpop.permute.xlu0 %3573
      %3575 = vrot.lane.b32.xlu0 %v3490, 24
      %v3576 = vpop.permute.xlu0 %3575
      %3577 = vrot.lane.b32.xlu0 %v3491, 24
      %v3578 = vpop.permute.xlu0 %3577
      %3579 = vrot.lane.b32.xlu0 %v3492, 24
      %v3580 = vpop.permute.xlu0 %3579
      %3581 = vrot.lane.b32.xlu0 %v3493, 24
      %v3582 = vpop.permute.xlu0 %3581
      %3583 = vrot.lane.b32.xlu0 %v3494, 24
      %v3584 = vpop.permute.xlu0 %3583
      %3585 = vrot.lane.b32.xlu0 %v3495, 24
      %v3586 = vpop.permute.xlu0 %3585
      %3587 = vrot.lane.b32.xlu0 %v3496, 24
      %v3588 = vpop.permute.xlu0 %3587
      %3589 = vrot.lane.b32.xlu0 %v3497, 24
      %v3590 = vpop.permute.xlu0 %3589
      %3591 = vrot.lane.b32.xlu0 %v3498, 24
      %v3592 = vpop.permute.xlu0 %3591
      %3593 = vrot.lane.b32.xlu0 %v3499, 24
      %v3594 = vpop.permute.xlu0 %3593
      %3595 = vrot.lane.b32.xlu0 %v3500, 24
      %v3596 = vpop.permute.xlu0 %3595
      %3629 = vst.msk [vmem:[#allocation5] sm:$0xff] %vm1536, %v3534
      %3630 = vst.msk [vmem:[#allocation5 + $0x8] sm:$0xff] %vm1536, %v3536
      %3631 = vst.msk [vmem:[#allocation5 + $0x10] sm:$0xff] %vm1536, %v3538
      %3632 = vst.msk [vmem:[#allocation5 + $0x18] sm:$0xff] %vm1536, %v3540
      %3633 = vst.msk [vmem:[#allocation5 + $0x20] sm:$0xff] %vm1536, %v3542
      %3634 = vst.msk [vmem:[#allocation5 + $0x28] sm:$0xff] %vm1536, %v3544
      %3635 = vst.msk [vmem:[#allocation5 + $0x30] sm:$0xff] %vm1536, %v3546
      %3636 = vst.msk [vmem:[#allocation5 + $0x38] sm:$0xff] %vm1536, %v3548
      %3637 = vst.msk [vmem:[#allocation5 + $0x40] sm:$0xff] %vm1536, %v3550
      %3638 = vst.msk [vmem:[#allocation5 + $0x48] sm:$0xff] %vm1536, %v3552
      %3639 = vst.msk [vmem:[#allocation5 + $0x50] sm:$0xff] %vm1536, %v3554
      %3640 = vst.msk [vmem:[#allocation5 + $0x58] sm:$0xff] %vm1536, %v3556
      %3641 = vst.msk [vmem:[#allocation5 + $0x60] sm:$0xff] %vm1536, %v3558
      %3642 = vst.msk [vmem:[#allocation5 + $0x68] sm:$0xff] %vm1536, %v3560
      %3643 = vst.msk [vmem:[#allocation5 + $0x70] sm:$0xff] %vm1536, %v3562
      %3644 = vst.msk [vmem:[#allocation5 + $0x78] sm:$0xff] %vm1536, %v3564
      %3645 = vst.msk [vmem:[#allocation5 + $0x80] sm:$0xff] %vm1536, %v3566
      %3646 = vst.msk [vmem:[#allocation5 + $0x88] sm:$0xff] %vm1536, %v3568
      %3647 = vst.msk [vmem:[#allocation5 + $0x90] sm:$0xff] %vm1536, %v3570
      %3648 = vst.msk [vmem:[#allocation5 + $0x98] sm:$0xff] %vm1536, %v3572
      %3649 = vst.msk [vmem:[#allocation5 + $0xa0] sm:$0xff] %vm1536, %v3574
      %3650 = vst.msk [vmem:[#allocation5 + $0xa8] sm:$0xff] %vm1536, %v3576
      %3651 = vst.msk [vmem:[#allocation5 + $0xb0] sm:$0xff] %vm1536, %v3578
      %3652 = vst.msk [vmem:[#allocation5 + $0xb8] sm:$0xff] %vm1536, %v3580
      %3653 = vst.msk [vmem:[#allocation5 + $0xc0] sm:$0xff] %vm1536, %v3582
      %3654 = vst.msk [vmem:[#allocation5 + $0xc8] sm:$0xff] %vm1536, %v3584
      %3655 = vst.msk [vmem:[#allocation5 + $0xd0] sm:$0xff] %vm1536, %v3586
      %3656 = vst.msk [vmem:[#allocation5 + $0xd8] sm:$0xff] %vm1536, %v3588
      %3657 = vst.msk [vmem:[#allocation5 + $0xe0] sm:$0xff] %vm1536, %v3590
      %3658 = vst.msk [vmem:[#allocation5 + $0xe8] sm:$0xff] %vm1536, %v3592
      %3659 = vst.msk [vmem:[#allocation5 + $0xf0] sm:$0xff] %vm1536, %v3594
      %3660 = vst.msk [vmem:[#allocation5 + $0xf8] sm:$0xff] %vm1536, %v3596
      %v3661 = vld [vmem:[%s3468 + $0x1] sm:$0xff]
      %v3662 = vld [vmem:[%s3468 + $0x9] sm:$0xff]
      %v3663 = vld [vmem:[%s3468 + $0x19] sm:$0xff]
      %v3664 = vld [vmem:[%s3468 + $0x21] sm:$0xff]
      %v3665 = vld [vmem:[%s3468 + $0x31] sm:$0xff]
      %v3666 = vld [vmem:[%s3468 + $0x39] sm:$0xff]
      %v3667 = vld [vmem:[%s3468 + $0x49] sm:$0xff]
      %v3668 = vld [vmem:[%s3468 + $0x51] sm:$0xff]
      %v3669 = vld [vmem:[%s3468 + $0x61] sm:$0xff]
      %v3670 = vld [vmem:[%s3468 + $0x69] sm:$0xff]
      %v3671 = vld [vmem:[%s3468 + $0x79] sm:$0xff]
      %v3672 = vld [vmem:[%s3468 + $0x81] sm:$0xff]
      %v3673 = vld [vmem:[%s3468 + $0x91] sm:$0xff]
      %v3674 = vld [vmem:[%s3468 + $0x99] sm:$0xff]
      %v3675 = vld [vmem:[%s3468 + $0xa9] sm:$0xff]
      %v3676 = vld [vmem:[%s3468 + $0xb1] sm:$0xff]
      %v3677 = vld [vmem:[%s3468 + $0xc1] sm:$0xff]
      %v3678 = vld [vmem:[%s3468 + $0xc9] sm:$0xff]
      %v3679 = vld [vmem:[%s3468 + $0xd9] sm:$0xff]
      %v3680 = vld [vmem:[%s3468 + $0xe1] sm:$0xff]
      %v3681 = vld [vmem:[%s3468 + $0xf1] sm:$0xff]
      %v3682 = vld [vmem:[%s3468 + $0xf9] sm:$0xff]
      %v3683 = vld [vmem:[%s3468 + $0x109] sm:$0xff]
      %v3684 = vld [vmem:[%s3468 + $0x111] sm:$0xff]
      %v3685 = vld [vmem:[%s3468 + $0x121] sm:$0xff]
      %v3686 = vld [vmem:[%s3468 + $0x129] sm:$0xff]
      %v3687 = vld [vmem:[%s3468 + $0x139] sm:$0xff]
      %v3688 = vld [vmem:[%s3468 + $0x141] sm:$0xff]
      %v3689 = vld [vmem:[%s3468 + $0x151] sm:$0xff]
      %v3690 = vld [vmem:[%s3468 + $0x159] sm:$0xff]
      %v3691 = vld [vmem:[%s3468 + $0x169] sm:$0xff]
      %v3692 = vld [vmem:[%s3468 + $0x171] sm:$0xff]
      %3725 = vrot.lane.b32.xlu0 %v3661, 28
      %v3726 = vpop.permute.xlu0 %3725
      %3727 = vrot.lane.b32.xlu0 %v3662, 28
      %v3728 = vpop.permute.xlu0 %3727
      %3729 = vrot.lane.b32.xlu0 %v3663, 28
      %v3730 = vpop.permute.xlu0 %3729
      %3731 = vrot.lane.b32.xlu0 %v3664, 28
      %v3732 = vpop.permute.xlu0 %3731
      %3733 = vrot.lane.b32.xlu0 %v3665, 28
      %v3734 = vpop.permute.xlu0 %3733
      %3735 = vrot.lane.b32.xlu0 %v3666, 28
      %v3736 = vpop.permute.xlu0 %3735
      %3737 = vrot.lane.b32.xlu0 %v3667, 28
      %v3738 = vpop.permute.xlu0 %3737
      %3739 = vrot.lane.b32.xlu0 %v3668, 28
      %v3740 = vpop.permute.xlu0 %3739
      %3741 = vrot.lane.b32.xlu0 %v3669, 28
      %v3742 = vpop.permute.xlu0 %3741
      %3743 = vrot.lane.b32.xlu0 %v3670, 28
      %v3744 = vpop.permute.xlu0 %3743
      %3745 = vrot.lane.b32.xlu0 %v3671, 28
      %v3746 = vpop.permute.xlu0 %3745
      %3747 = vrot.lane.b32.xlu0 %v3672, 28
      %v3748 = vpop.permute.xlu0 %3747
      %3749 = vrot.lane.b32.xlu0 %v3673, 28
      %v3750 = vpop.permute.xlu0 %3749
      %3751 = vrot.lane.b32.xlu0 %v3674, 28
      %v3752 = vpop.permute.xlu0 %3751
      %3753 = vrot.lane.b32.xlu0 %v3675, 28
      %v3754 = vpop.permute.xlu0 %3753
      %3755 = vrot.lane.b32.xlu0 %v3676, 28
      %v3756 = vpop.permute.xlu0 %3755
      %3757 = vrot.lane.b32.xlu0 %v3677, 28
      %v3758 = vpop.permute.xlu0 %3757
      %3759 = vrot.lane.b32.xlu0 %v3678, 28
      %v3760 = vpop.permute.xlu0 %3759
      %3761 = vrot.lane.b32.xlu0 %v3679, 28
      %v3762 = vpop.permute.xlu0 %3761
      %3763 = vrot.lane.b32.xlu0 %v3680, 28
      %v3764 = vpop.permute.xlu0 %3763
      %3765 = vrot.lane.b32.xlu0 %v3681, 28
      %v3766 = vpop.permute.xlu0 %3765
      %3767 = vrot.lane.b32.xlu0 %v3682, 28
      %v3768 = vpop.permute.xlu0 %3767
      %3769 = vrot.lane.b32.xlu0 %v3683, 28
      %v3770 = vpop.permute.xlu0 %3769
      %3771 = vrot.lane.b32.xlu0 %v3684, 28
      %v3772 = vpop.permute.xlu0 %3771
      %3773 = vrot.lane.b32.xlu0 %v3685, 28
      %v3774 = vpop.permute.xlu0 %3773
      %3775 = vrot.lane.b32.xlu0 %v3686, 28
      %v3776 = vpop.permute.xlu0 %3775
      %3777 = vrot.lane.b32.xlu0 %v3687, 28
      %v3778 = vpop.permute.xlu0 %3777
      %3779 = vrot.lane.b32.xlu0 %v3688, 28
      %v3780 = vpop.permute.xlu0 %3779
      %3781 = vrot.lane.b32.xlu0 %v3689, 28
      %v3782 = vpop.permute.xlu0 %3781
      %3783 = vrot.lane.b32.xlu0 %v3690, 28
      %v3784 = vpop.permute.xlu0 %3783
      %3785 = vrot.lane.b32.xlu0 %v3691, 28
      %v3786 = vpop.permute.xlu0 %3785
      %3787 = vrot.lane.b32.xlu0 %v3692, 28
      %v3788 = vpop.permute.xlu0 %3787
      %3821 = vst.msk [vmem:[#allocation5] sm:$0xff] %vm1729, %v3726
      %3822 = vst.msk [vmem:[#allocation5 + $0x8] sm:$0xff] %vm1729, %v3728
      %3823 = vst.msk [vmem:[#allocation5 + $0x10] sm:$0xff] %vm1729, %v3730
      %3824 = vst.msk [vmem:[#allocation5 + $0x18] sm:$0xff] %vm1729, %v3732
      %3825 = vst.msk [vmem:[#allocation5 + $0x20] sm:$0xff] %vm1729, %v3734
      %3826 = vst.msk [vmem:[#allocation5 + $0x28] sm:$0xff] %vm1729, %v3736
      %3827 = vst.msk [vmem:[#allocation5 + $0x30] sm:$0xff] %vm1729, %v3738
      %3828 = vst.msk [vmem:[#allocation5 + $0x38] sm:$0xff] %vm1729, %v3740
      %3829 = vst.msk [vmem:[#allocation5 + $0x40] sm:$0xff] %vm1729, %v3742
      %3830 = vst.msk [vmem:[#allocation5 + $0x48] sm:$0xff] %vm1729, %v3744
      %3831 = vst.msk [vmem:[#allocation5 + $0x50] sm:$0xff] %vm1729, %v3746
      %3832 = vst.msk [vmem:[#allocation5 + $0x58] sm:$0xff] %vm1729, %v3748
      %3833 = vst.msk [vmem:[#allocation5 + $0x60] sm:$0xff] %vm1729, %v3750
      %3834 = vst.msk [vmem:[#allocation5 + $0x68] sm:$0xff] %vm1729, %v3752
      %3835 = vst.msk [vmem:[#allocation5 + $0x70] sm:$0xff] %vm1729, %v3754
      %3836 = vst.msk [vmem:[#allocation5 + $0x78] sm:$0xff] %vm1729, %v3756
      %3837 = vst.msk [vmem:[#allocation5 + $0x80] sm:$0xff] %vm1729, %v3758
      %3838 = vst.msk [vmem:[#allocation5 + $0x88] sm:$0xff] %vm1729, %v3760
      %3839 = vst.msk [vmem:[#allocation5 + $0x90] sm:$0xff] %vm1729, %v3762
      %3840 = vst.msk [vmem:[#allocation5 + $0x98] sm:$0xff] %vm1729, %v3764
      %3841 = vst.msk [vmem:[#allocation5 + $0xa0] sm:$0xff] %vm1729, %v3766
      %3842 = vst.msk [vmem:[#allocation5 + $0xa8] sm:$0xff] %vm1729, %v3768
      %3843 = vst.msk [vmem:[#allocation5 + $0xb0] sm:$0xff] %vm1729, %v3770
      %3844 = vst.msk [vmem:[#allocation5 + $0xb8] sm:$0xff] %vm1729, %v3772
      %3845 = vst.msk [vmem:[#allocation5 + $0xc0] sm:$0xff] %vm1729, %v3774
      %3846 = vst.msk [vmem:[#allocation5 + $0xc8] sm:$0xff] %vm1729, %v3776
      %3847 = vst.msk [vmem:[#allocation5 + $0xd0] sm:$0xff] %vm1729, %v3778
      %3848 = vst.msk [vmem:[#allocation5 + $0xd8] sm:$0xff] %vm1729, %v3780
      %3849 = vst.msk [vmem:[#allocation5 + $0xe0] sm:$0xff] %vm1729, %v3782
      %3850 = vst.msk [vmem:[#allocation5 + $0xe8] sm:$0xff] %vm1729, %v3784
      %3851 = vst.msk [vmem:[#allocation5 + $0xf0] sm:$0xff] %vm1729, %v3786
      %3852 = vst.msk [vmem:[#allocation5 + $0xf8] sm:$0xff] %vm1729, %v3788
      %v3853 = vld [vmem:[%s3468 + $0x2] sm:$0xff]
      %v3854 = vld [vmem:[%s3468 + $0xa] sm:$0xff]
      %v3855 = vld [vmem:[%s3468 + $0x1a] sm:$0xff]
      %v3856 = vld [vmem:[%s3468 + $0x22] sm:$0xff]
      %v3857 = vld [vmem:[%s3468 + $0x32] sm:$0xff]
      %v3858 = vld [vmem:[%s3468 + $0x3a] sm:$0xff]
      %v3859 = vld [vmem:[%s3468 + $0x4a] sm:$0xff]
      %v3860 = vld [vmem:[%s3468 + $0x52] sm:$0xff]
      %v3861 = vld [vmem:[%s3468 + $0x62] sm:$0xff]
      %v3862 = vld [vmem:[%s3468 + $0x6a] sm:$0xff]
      %v3863 = vld [vmem:[%s3468 + $0x7a] sm:$0xff]
      %v3864 = vld [vmem:[%s3468 + $0x82] sm:$0xff]
      %v3865 = vld [vmem:[%s3468 + $0x92] sm:$0xff]
      %v3866 = vld [vmem:[%s3468 + $0x9a] sm:$0xff]
      %v3867 = vld [vmem:[%s3468 + $0xaa] sm:$0xff]
      %v3868 = vld [vmem:[%s3468 + $0xb2] sm:$0xff]
      %v3869 = vld [vmem:[%s3468 + $0xc2] sm:$0xff]
      %v3870 = vld [vmem:[%s3468 + $0xca] sm:$0xff]
      %v3871 = vld [vmem:[%s3468 + $0xda] sm:$0xff]
      %v3872 = vld [vmem:[%s3468 + $0xe2] sm:$0xff]
      %v3873 = vld [vmem:[%s3468 + $0xf2] sm:$0xff]
      %v3874 = vld [vmem:[%s3468 + $0xfa] sm:$0xff]
      %v3875 = vld [vmem:[%s3468 + $0x10a] sm:$0xff]
      %v3876 = vld [vmem:[%s3468 + $0x112] sm:$0xff]
      %v3877 = vld [vmem:[%s3468 + $0x122] sm:$0xff]
      %v3878 = vld [vmem:[%s3468 + $0x12a] sm:$0xff]
      %v3879 = vld [vmem:[%s3468 + $0x13a] sm:$0xff]
      %v3880 = vld [vmem:[%s3468 + $0x142] sm:$0xff]
      %v3881 = vld [vmem:[%s3468 + $0x152] sm:$0xff]
      %v3882 = vld [vmem:[%s3468 + $0x15a] sm:$0xff]
      %v3883 = vld [vmem:[%s3468 + $0x16a] sm:$0xff]
      %v3884 = vld [vmem:[%s3468 + $0x172] sm:$0xff]
      %3917 = vrot.lane.b32.xlu0 %v3853, 32
      %v3918 = vpop.permute.xlu0 %3917
      %3919 = vrot.lane.b32.xlu0 %v3854, 32
      %v3920 = vpop.permute.xlu0 %3919
      %3921 = vrot.lane.b32.xlu0 %v3855, 32
      %v3922 = vpop.permute.xlu0 %3921
      %3923 = vrot.lane.b32.xlu0 %v3856, 32
      %v3924 = vpop.permute.xlu0 %3923
      %3925 = vrot.lane.b32.xlu0 %v3857, 32
      %v3926 = vpop.permute.xlu0 %3925
      %3927 = vrot.lane.b32.xlu0 %v3858, 32
      %v3928 = vpop.permute.xlu0 %3927
      %3929 = vrot.lane.b32.xlu0 %v3859, 32
      %v3930 = vpop.permute.xlu0 %3929
      %3931 = vrot.lane.b32.xlu0 %v3860, 32
      %v3932 = vpop.permute.xlu0 %3931
      %3933 = vrot.lane.b32.xlu0 %v3861, 32
      %v3934 = vpop.permute.xlu0 %3933
      %3935 = vrot.lane.b32.xlu0 %v3862, 32
      %v3936 = vpop.permute.xlu0 %3935
      %3937 = vrot.lane.b32.xlu0 %v3863, 32
      %v3938 = vpop.permute.xlu0 %3937
      %3939 = vrot.lane.b32.xlu0 %v3864, 32
      %v3940 = vpop.permute.xlu0 %3939
      %3941 = vrot.lane.b32.xlu0 %v3865, 32
      %v3942 = vpop.permute.xlu0 %3941
      %3943 = vrot.lane.b32.xlu0 %v3866, 32
      %v3944 = vpop.permute.xlu0 %3943
      %3945 = vrot.lane.b32.xlu0 %v3867, 32
      %v3946 = vpop.permute.xlu0 %3945
      %3947 = vrot.lane.b32.xlu0 %v3868, 32
      %v3948 = vpop.permute.xlu0 %3947
      %3949 = vrot.lane.b32.xlu0 %v3869, 32
      %v3950 = vpop.permute.xlu0 %3949
      %3951 = vrot.lane.b32.xlu0 %v3870, 32
      %v3952 = vpop.permute.xlu0 %3951
      %3953 = vrot.lane.b32.xlu0 %v3871, 32
      %v3954 = vpop.permute.xlu0 %3953
      %3955 = vrot.lane.b32.xlu0 %v3872, 32
      %v3956 = vpop.permute.xlu0 %3955
      %3957 = vrot.lane.b32.xlu0 %v3873, 32
      %v3958 = vpop.permute.xlu0 %3957
      %3959 = vrot.lane.b32.xlu0 %v3874, 32
      %v3960 = vpop.permute.xlu0 %3959
      %3961 = vrot.lane.b32.xlu0 %v3875, 32
      %v3962 = vpop.permute.xlu0 %3961
      %3963 = vrot.lane.b32.xlu0 %v3876, 32
      %v3964 = vpop.permute.xlu0 %3963
      %3965 = vrot.lane.b32.xlu0 %v3877, 32
      %v3966 = vpop.permute.xlu0 %3965
      %3967 = vrot.lane.b32.xlu0 %v3878, 32
      %v3968 = vpop.permute.xlu0 %3967
      %3969 = vrot.lane.b32.xlu0 %v3879, 32
      %v3970 = vpop.permute.xlu0 %3969
      %3971 = vrot.lane.b32.xlu0 %v3880, 32
      %v3972 = vpop.permute.xlu0 %3971
      %3973 = vrot.lane.b32.xlu0 %v3881, 32
      %v3974 = vpop.permute.xlu0 %3973
      %3975 = vrot.lane.b32.xlu0 %v3882, 32
      %v3976 = vpop.permute.xlu0 %3975
      %3977 = vrot.lane.b32.xlu0 %v3883, 32
      %v3978 = vpop.permute.xlu0 %3977
      %3979 = vrot.lane.b32.xlu0 %v3884, 32
      %v3980 = vpop.permute.xlu0 %3979
      %4013 = vst.msk [vmem:[#allocation5] sm:$0xff] %vm1922, %v3918
      %4014 = vst.msk [vmem:[#allocation5 + $0x8] sm:$0xff] %vm1922, %v3920
      %4015 = vst.msk [vmem:[#allocation5 + $0x10] sm:$0xff] %vm1922, %v3922
      %4016 = vst.msk [vmem:[#allocation5 + $0x18] sm:$0xff] %vm1922, %v3924
      %4017 = vst.msk [vmem:[#allocation5 + $0x20] sm:$0xff] %vm1922, %v3926
      %4018 = vst.msk [vmem:[#allocation5 + $0x28] sm:$0xff] %vm1922, %v3928
      %4019 = vst.msk [vmem:[#allocation5 + $0x30] sm:$0xff] %vm1922, %v3930
      %4020 = vst.msk [vmem:[#allocation5 + $0x38] sm:$0xff] %vm1922, %v3932
      %4021 = vst.msk [vmem:[#allocation5 + $0x40] sm:$0xff] %vm1922, %v3934
      %4022 = vst.msk [vmem:[#allocation5 + $0x48] sm:$0xff] %vm1922, %v3936
      %4023 = vst.msk [vmem:[#allocation5 + $0x50] sm:$0xff] %vm1922, %v3938
      %4024 = vst.msk [vmem:[#allocation5 + $0x58] sm:$0xff] %vm1922, %v3940
      %4025 = vst.msk [vmem:[#allocation5 + $0x60] sm:$0xff] %vm1922, %v3942
      %4026 = vst.msk [vmem:[#allocation5 + $0x68] sm:$0xff] %vm1922, %v3944
      %4027 = vst.msk [vmem:[#allocation5 + $0x70] sm:$0xff] %vm1922, %v3946
      %4028 = vst.msk [vmem:[#allocation5 + $0x78] sm:$0xff] %vm1922, %v3948
      %4029 = vst.msk [vmem:[#allocation5 + $0x80] sm:$0xff] %vm1922, %v3950
      %4030 = vst.msk [vmem:[#allocation5 + $0x88] sm:$0xff] %vm1922, %v3952
      %4031 = vst.msk [vmem:[#allocation5 + $0x90] sm:$0xff] %vm1922, %v3954
      %4032 = vst.msk [vmem:[#allocation5 + $0x98] sm:$0xff] %vm1922, %v3956
      %4033 = vst.msk [vmem:[#allocation5 + $0xa0] sm:$0xff] %vm1922, %v3958
      %4034 = vst.msk [vmem:[#allocation5 + $0xa8] sm:$0xff] %vm1922, %v3960
      %4035 = vst.msk [vmem:[#allocation5 + $0xb0] sm:$0xff] %vm1922, %v3962
      %4036 = vst.msk [vmem:[#allocation5 + $0xb8] sm:$0xff] %vm1922, %v3964
      %4037 = vst.msk [vmem:[#allocation5 + $0xc0] sm:$0xff] %vm1922, %v3966
      %4038 = vst.msk [vmem:[#allocation5 + $0xc8] sm:$0xff] %vm1922, %v3968
      %4039 = vst.msk [vmem:[#allocation5 + $0xd0] sm:$0xff] %vm1922, %v3970
      %4040 = vst.msk [vmem:[#allocation5 + $0xd8] sm:$0xff] %vm1922, %v3972
      %4041 = vst.msk [vmem:[#allocation5 + $0xe0] sm:$0xff] %vm1922, %v3974
      %4042 = vst.msk [vmem:[#allocation5 + $0xe8] sm:$0xff] %vm1922, %v3976
      %4043 = vst.msk [vmem:[#allocation5 + $0xf0] sm:$0xff] %vm1922, %v3978
      %4044 = vst.msk [vmem:[#allocation5 + $0xf8] sm:$0xff] %vm1922, %v3980
      %v4045 = vld [vmem:[#allocation5] sm:$0xff]
      %v4046 = vld [vmem:[#allocation5 + $0x8] sm:$0xff]
      %v4047 = vld [vmem:[#allocation5 + $0x10] sm:$0xff]
      %v4048 = vld [vmem:[#allocation5 + $0x18] sm:$0xff]
      %v4049 = vld [vmem:[#allocation5 + $0x20] sm:$0xff]
      %v4050 = vld [vmem:[#allocation5 + $0x28] sm:$0xff]
      %v4051 = vld [vmem:[#allocation5 + $0x30] sm:$0xff]
      %v4052 = vld [vmem:[#allocation5 + $0x38] sm:$0xff]
      %v4053 = vld [vmem:[#allocation5 + $0x40] sm:$0xff]
      %v4054 = vld [vmem:[#allocation5 + $0x48] sm:$0xff]
      %v4055 = vld [vmem:[#allocation5 + $0x50] sm:$0xff]
      %v4056 = vld [vmem:[#allocation5 + $0x58] sm:$0xff]
      %v4057 = vld [vmem:[#allocation5 + $0x60] sm:$0xff]
      %v4058 = vld [vmem:[#allocation5 + $0x68] sm:$0xff]
      %v4059 = vld [vmem:[#allocation5 + $0x70] sm:$0xff]
      %v4060 = vld [vmem:[#allocation5 + $0x78] sm:$0xff]
      %v4061 = vld [vmem:[#allocation5 + $0x80] sm:$0xff]
      %v4062 = vld [vmem:[#allocation5 + $0x88] sm:$0xff]
      %v4063 = vld [vmem:[#allocation5 + $0x90] sm:$0xff]
      %v4064 = vld [vmem:[#allocation5 + $0x98] sm:$0xff]
      %v4065 = vld [vmem:[#allocation5 + $0xa0] sm:$0xff]
      %v4066 = vld [vmem:[#allocation5 + $0xa8] sm:$0xff]
      %v4067 = vld [vmem:[#allocation5 + $0xb0] sm:$0xff]
      %v4068 = vld [vmem:[#allocation5 + $0xb8] sm:$0xff]
      %v4069 = vld [vmem:[#allocation5 + $0xc0] sm:$0xff]
      %v4070 = vld [vmem:[#allocation5 + $0xc8] sm:$0xff]
      %v4071 = vld [vmem:[#allocation5 + $0xd0] sm:$0xff]
      %v4072 = vld [vmem:[#allocation5 + $0xd8] sm:$0xff]
      %v4073 = vld [vmem:[#allocation5 + $0xe0] sm:$0xff]
      %v4074 = vld [vmem:[#allocation5 + $0xe8] sm:$0xff]
      %v4075 = vld [vmem:[#allocation5 + $0xf0] sm:$0xff]
      %v4076 = vld [vmem:[#allocation5 + $0xf8] sm:$0xff]
      %v4077 = vld [vmem:[%s3] sm:$0xff]
      %v4078 = vld [vmem:[%s3 + $0x8] sm:$0xff]
      %v4079 = vld [vmem:[%s3 + $0x10] sm:$0xff]
      %v4080 = vld [vmem:[%s3 + $0x18] sm:$0xff]
      %v4081 = vld [vmem:[%s3 + $0x20] sm:$0xf]
      %v4082 = vld [vmem:[%s4] sm:$0x1]
      %v4084 = vlaneseq
      %v4085 = vshrl.u32 %v4084, 7
      %v4086 = vsub.s32 0, %v4085
      %v4087 = vrot.slane %v4082, %v4086
      %v4090 = vsel %vm1999, %v4045, 0
      %v4093 = vsel %vm1999, %v4046, 0
      %v4096 = vsel %vm1999, %v4047, 0
      %v4099 = vsel %vm1999, %v4048, 0
      %v4102 = vsel %vm1999, %v4049, 0
      %v4105 = vsel %vm1999, %v4050, 0
      %v4108 = vsel %vm1999, %v4051, 0
      %v4111 = vsel %vm1999, %v4052, 0
      %v4114 = vsel %vm1999, %v4053, 0
      %v4117 = vsel %vm1999, %v4054, 0
      %v4120 = vsel %vm1999, %v4055, 0
      %v4123 = vsel %vm1999, %v4056, 0
      %v4126 = vsel %vm1999, %v4057, 0
      %v4129 = vsel %vm1999, %v4058, 0
      %v4132 = vsel %vm1999, %v4059, 0
      %v4135 = vsel %vm1999, %v4060, 0
      %v4138 = vsel %vm1999, %v4061, 0
      %v4141 = vsel %vm1999, %v4062, 0
      %v4144 = vsel %vm1999, %v4063, 0
      %v4147 = vsel %vm1999, %v4064, 0
      %v4150 = vsel %vm1999, %v4065, 0
      %v4153 = vsel %vm1999, %v4066, 0
      %v4156 = vsel %vm1999, %v4067, 0
      %v4159 = vsel %vm1999, %v4068, 0
      %v4162 = vsel %vm1999, %v4069, 0
      %v4165 = vsel %vm1999, %v4070, 0
      %v4168 = vsel %vm1999, %v4071, 0
      %v4171 = vsel %vm1999, %v4072, 0
      %v4174 = vsel %vm1999, %v4073, 0
      %v4177 = vsel %vm1999, %v4074, 0
      %v4180 = vsel %vm1999, %v4075, 0
      %v4183 = vsel %vm1999, %v4076, 0
      %v4186 = vsel %vm2096, %v4081, 0
      %4188 = vmatprep.subr.mxu0 0.0
      %4189 = vmatpush1.msra.mxu0 %v4077
      %4190 = vmatprep.subr.mxu0 0.0
      %4191 = vmatpush1.msra.mxu0 %v4078
      %4192 = vmatprep.subr.mxu0 0.0
      %4193 = vmatpush1.msra.mxu0 %v4079
      %4194 = vmatprep.subr.mxu0 0.0
      %4195 = vmatpush1.msra.mxu0 %v4080
      %4196 = vmatprep.subr.mxu0 0.0
      %4197 = vmatpush1.msra.mxu0 %v4186
      %4198 = vmatprep.subr.mxu0 0.0
      %4199 = vmatpush1.msra.mxu0 0.0
      %4200 = vmatprep.subr.mxu0 0.0
      %4201 = vmatpush1.msra.mxu0 0.0
      %4202 = vmatprep.subr.mxu0 0.0
      %4203 = vmatpush1.msra.mxu0 0.0
      %4204 = vmatprep.subr.mxu0 0.0
      %4205 = vmatpush1.msra.mxu0 0.0
      %4206 = vmatprep.subr.mxu0 0.0
      %4207 = vmatpush1.msra.mxu0 0.0
      %4208 = vmatprep.subr.mxu0 0.0
      %4209 = vmatpush1.msra.mxu0 0.0
      %4210 = vmatprep.subr.mxu0 0.0
      %4211 = vmatpush1.msra.mxu0 0.0
      %4212 = vmatprep.subr.mxu0 0.0
      %4213 = vmatpush1.msra.mxu0 0.0
      %4214 = vmatprep.subr.mxu0 0.0
      %4215 = vmatpush1.msra.mxu0 0.0
      %4216 = vmatprep.subr.mxu0 0.0
      %4217 = vmatpush1.msra.mxu0 0.0
      %4218 = vmatprep.subr.mxu0 0.0
      %4219 = vmatpush1.msra.mxu0 0.0
      %4220 = vmatprep.subr.mxu0 0.0
      %4221 = vmatpush1.msra.mxu0 0.0
      %4222 = vmatprep.subr.mxu0 0.0
      %4223 = vmatpush1.msra.mxu0 0.0
      %4224 = vmatprep.subr.mxu0 0.0
      %4225 = vmatpush1.msra.mxu0 0.0
      %4226 = vmatprep.subr.mxu0 0.0
      %4227 = vmatpush1.msra.mxu0 0.0
      %4228 = vmatprep.subr.mxu0 0.0
      %4229 = vmatpush1.msra.mxu0 0.0
      %4230 = vmatprep.subr.mxu0 0.0
      %4231 = vmatpush1.msra.mxu0 0.0
      %4232 = vmatprep.subr.mxu0 0.0
      %4233 = vmatpush1.msra.mxu0 0.0
      %4234 = vmatprep.subr.mxu0 0.0
      %4235 = vmatpush1.msra.mxu0 0.0
      %4236 = vmatprep.subr.mxu0 0.0
      %4237 = vmatpush1.msra.mxu0 0.0
      %4238 = vmatprep.subr.mxu0 0.0
      %4239 = vmatpush1.msra.mxu0 0.0
      %4240 = vmatprep.subr.mxu0 0.0
      %4241 = vmatpush1.msra.mxu0 0.0
      %4242 = vmatprep.subr.mxu0 0.0
      %4243 = vmatpush1.msra.mxu0 0.0
      %4244 = vmatprep.subr.mxu0 0.0
      %4245 = vmatpush1.msra.mxu0 0.0
      %4246 = vmatprep.subr.mxu0 0.0
      %4247 = vmatpush1.msra.mxu0 0.0
      %4248 = vmatprep.subr.mxu0 0.0
      %4249 = vmatpush1.msra.mxu0 0.0
      %4250 = vmatprep.subr.mxu0 0.0
      %4251 = vmatpush1.msra.mxu0 0.0
      %4252 = vmatprep.mubr.f32.mxu0 0.0
      %4253 = vmatmul.mubr.f32.gmra.mrb[0].mxu0 %v4090
      %v4254 = vpop.f32.mrb[0].mxu0
      %v4255 = vadd.f32 %v4087, %v4254
      %v4256 = vpop.f32.mrb[0].mxu0
      %4257 = vmatprep.mubr.f32.mxu0 0.0
      %4258 = vmatmul.mubr.f32.gmra.mrb[0].mxu0 %v4093
      %v4259 = vpop.f32.mrb[0].mxu0
      %v4260 = vadd.f32 %v4087, %v4259
      %v4261 = vpop.f32.mrb[0].mxu0
      %4262 = vmatprep.mubr.f32.mxu0 0.0
      %4263 = vmatmul.mubr.f32.gmra.mrb[0].mxu0 %v4096
      %v4264 = vpop.f32.mrb[0].mxu0
      %v4265 = vadd.f32 %v4087, %v4264
      %v4266 = vpop.f32.mrb[0].mxu0
      %4267 = vmatprep.mubr.f32.mxu0 0.0
      %4268 = vmatmul.mubr.f32.gmra.mrb[0].mxu0 %v4099
      %v4269 = vpop.f32.mrb[0].mxu0
      %v4270 = vadd.f32 %v4087, %v4269
      %v4271 = vpop.f32.mrb[0].mxu0
      %4272 = vmatprep.mubr.f32.mxu0 0.0
      %4273 = vmatmul.mubr.f32.gmra.mrb[0].mxu0 %v4102
      %v4274 = vpop.f32.mrb[0].mxu0
      %v4275 = vadd.f32 %v4087, %v4274
      %v4276 = vpop.f32.mrb[0].mxu0
      %4277 = vmatprep.mubr.f32.mxu0 0.0
      %4278 = vmatmul.mubr.f32.gmra.mrb[0].mxu0 %v4105
      %v4279 = vpop.f32.mrb[0].mxu0
      %v4280 = vadd.f32 %v4087, %v4279
      %v4281 = vpop.f32.mrb[0].mxu0
      %4282 = vmatprep.mubr.f32.mxu0 0.0
      %4283 = vmatmul.mubr.f32.gmra.mrb[0].mxu0 %v4108
      %v4284 = vpop.f32.mrb[0].mxu0
      %v4285 = vadd.f32 %v4087, %v4284
      %v4286 = vpop.f32.mrb[0].mxu0
      %4287 = vmatprep.mubr.f32.mxu0 0.0
      %4288 = vmatmul.mubr.f32.gmra.mrb[0].mxu0 %v4111
      %v4289 = vpop.f32.mrb[0].mxu0
      %v4290 = vadd.f32 %v4087, %v4289
      %v4291 = vpop.f32.mrb[0].mxu0
      %4292 = vmatprep.mubr.f32.mxu0 0.0
      %4293 = vmatmul.mubr.f32.gmra.mrb[0].mxu0 %v4114
      %v4294 = vpop.f32.mrb[0].mxu0
      %v4295 = vadd.f32 %v4087, %v4294
      %v4296 = vpop.f32.mrb[0].mxu0
      %4297 = vmatprep.mubr.f32.mxu0 0.0
      %4298 = vmatmul.mubr.f32.gmra.mrb[0].mxu0 %v4117
      %v4299 = vpop.f32.mrb[0].mxu0
      %v4300 = vadd.f32 %v4087, %v4299
      %v4301 = vpop.f32.mrb[0].mxu0
      %4302 = vmatprep.mubr.f32.mxu0 0.0
      %4303 = vmatmul.mubr.f32.gmra.mrb[0].mxu0 %v4120
      %v4304 = vpop.f32.mrb[0].mxu0
      %v4305 = vadd.f32 %v4087, %v4304
      %v4306 = vpop.f32.mrb[0].mxu0
      %4307 = vmatprep.mubr.f32.mxu0 0.0
      %4308 = vmatmul.mubr.f32.gmra.mrb[0].mxu0 %v4123
      %v4309 = vpop.f32.mrb[0].mxu0
      %v4310 = vadd.f32 %v4087, %v4309
      %v4311 = vpop.f32.mrb[0].mxu0
      %4312 = vmatprep.mubr.f32.mxu0 0.0
      %4313 = vmatmul.mubr.f32.gmra.mrb[0].mxu0 %v4126
      %v4314 = vpop.f32.mrb[0].mxu0
      %v4315 = vadd.f32 %v4087, %v4314
      %v4316 = vpop.f32.mrb[0].mxu0
      %4317 = vmatprep.mubr.f32.mxu0 0.0
      %4318 = vmatmul.mubr.f32.gmra.mrb[0].mxu0 %v4129
      %v4319 = vpop.f32.mrb[0].mxu0
      %v4320 = vadd.f32 %v4087, %v4319
      %v4321 = vpop.f32.mrb[0].mxu0
      %4322 = vmatprep.mubr.f32.mxu0 0.0
      %4323 = vmatmul.mubr.f32.gmra.mrb[0].mxu0 %v4132
      %v4324 = vpop.f32.mrb[0].mxu0
      %v4325 = vadd.f32 %v4087, %v4324
      %v4326 = vpop.f32.mrb[0].mxu0
      %4327 = vmatprep.mubr.f32.mxu0 0.0
      %4328 = vmatmul.mubr.f32.gmra.mrb[0].mxu0 %v4135
      %v4329 = vpop.f32.mrb[0].mxu0
      %v4330 = vadd.f32 %v4087, %v4329
      %v4331 = vpop.f32.mrb[0].mxu0
      %4332 = vmatprep.mubr.f32.mxu0 0.0
      %4333 = vmatmul.mubr.f32.gmra.mrb[0].mxu0 %v4138
      %v4334 = vpop.f32.mrb[0].mxu0
      %v4335 = vadd.f32 %v4087, %v4334
      %v4336 = vpop.f32.mrb[0].mxu0
      %4337 = vmatprep.mubr.f32.mxu0 0.0
      %4338 = vmatmul.mubr.f32.gmra.mrb[0].mxu0 %v4141
      %v4339 = vpop.f32.mrb[0].mxu0
      %v4340 = vadd.f32 %v4087, %v4339
      %v4341 = vpop.f32.mrb[0].mxu0
      %4342 = vmatprep.mubr.f32.mxu0 0.0
      %4343 = vmatmul.mubr.f32.gmra.mrb[0].mxu0 %v4144
      %v4344 = vpop.f32.mrb[0].mxu0
      %v4345 = vadd.f32 %v4087, %v4344
      %v4346 = vpop.f32.mrb[0].mxu0
      %4347 = vmatprep.mubr.f32.mxu0 0.0
      %4348 = vmatmul.mubr.f32.gmra.mrb[0].mxu0 %v4147
      %v4349 = vpop.f32.mrb[0].mxu0
      %v4350 = vadd.f32 %v4087, %v4349
      %v4351 = vpop.f32.mrb[0].mxu0
      %4352 = vmatprep.mubr.f32.mxu0 0.0
      %4353 = vmatmul.mubr.f32.gmra.mrb[0].mxu0 %v4150
      %v4354 = vpop.f32.mrb[0].mxu0
      %v4355 = vadd.f32 %v4087, %v4354
      %v4356 = vpop.f32.mrb[0].mxu0
      %4357 = vmatprep.mubr.f32.mxu0 0.0
      %4358 = vmatmul.mubr.f32.gmra.mrb[0].mxu0 %v4153
      %v4359 = vpop.f32.mrb[0].mxu0
      %v4360 = vadd.f32 %v4087, %v4359
      %v4361 = vpop.f32.mrb[0].mxu0
      %4362 = vmatprep.mubr.f32.mxu0 0.0
      %4363 = vmatmul.mubr.f32.gmra.mrb[0].mxu0 %v4156
      %v4364 = vpop.f32.mrb[0].mxu0
      %v4365 = vadd.f32 %v4087, %v4364
      %v4366 = vpop.f32.mrb[0].mxu0
      %4367 = vmatprep.mubr.f32.mxu0 0.0
      %4368 = vmatmul.mubr.f32.gmra.mrb[0].mxu0 %v4159
      %v4369 = vpop.f32.mrb[0].mxu0
      %v4370 = vadd.f32 %v4087, %v4369
      %v4371 = vpop.f32.mrb[0].mxu0
      %4372 = vmatprep.mubr.f32.mxu0 0.0
      %4373 = vmatmul.mubr.f32.gmra.mrb[0].mxu0 %v4162
      %v4374 = vpop.f32.mrb[0].mxu0
      %v4375 = vadd.f32 %v4087, %v4374
      %v4376 = vpop.f32.mrb[0].mxu0
      %4377 = vmatprep.mubr.f32.mxu0 0.0
      %4378 = vmatmul.mubr.f32.gmra.mrb[0].mxu0 %v4165
      %v4379 = vpop.f32.mrb[0].mxu0
      %v4380 = vadd.f32 %v4087, %v4379
      %v4381 = vpop.f32.mrb[0].mxu0
      %4382 = vmatprep.mubr.f32.mxu0 0.0
      %4383 = vmatmul.mubr.f32.gmra.mrb[0].mxu0 %v4168
      %v4384 = vpop.f32.mrb[0].mxu0
      %v4385 = vadd.f32 %v4087, %v4384
      %v4386 = vpop.f32.mrb[0].mxu0
      %4387 = vmatprep.mubr.f32.mxu0 0.0
      %4388 = vmatmul.mubr.f32.gmra.mrb[0].mxu0 %v4171
      %v4389 = vpop.f32.mrb[0].mxu0
      %v4390 = vadd.f32 %v4087, %v4389
      %v4391 = vpop.f32.mrb[0].mxu0
      %4392 = vmatprep.mubr.f32.mxu0 0.0
      %4393 = vmatmul.mubr.f32.gmra.mrb[0].mxu0 %v4174
      %v4394 = vpop.f32.mrb[0].mxu0
      %v4395 = vadd.f32 %v4087, %v4394
      %v4396 = vpop.f32.mrb[0].mxu0
      %4397 = vmatprep.mubr.f32.mxu0 0.0
      %4398 = vmatmul.mubr.f32.gmra.mrb[0].mxu0 %v4177
      %v4399 = vpop.f32.mrb[0].mxu0
      %v4400 = vadd.f32 %v4087, %v4399
      %v4401 = vpop.f32.mrb[0].mxu0
      %4402 = vmatprep.mubr.f32.mxu0 0.0
      %4403 = vmatmul.mubr.f32.gmra.mrb[0].mxu0 %v4180
      %v4404 = vpop.f32.mrb[0].mxu0
      %v4405 = vadd.f32 %v4087, %v4404
      %v4406 = vpop.f32.mrb[0].mxu0
      %4407 = vmatprep.mubr.f32.mxu0 0.0
      %4408 = vmatmul.mubr.f32.gmra.mrb[0].mxu0 %v4183
      %v4409 = vpop.f32.mrb[0].mxu0
      %v4410 = vadd.f32 %v4087, %v4409
      %v4411 = vpop.f32.mrb[0].mxu0
      %4412 = vdwg.mxu0
      %v4413 = vld [vmem:[%s219] sm:$0xff]
      %v4414 = vld [vmem:[%s219 + $0x8] sm:$0xff]
      %v4415 = vld [vmem:[%s219 + $0x10] sm:$0xff]
      %v4416 = vld [vmem:[%s219 + $0x18] sm:$0xff]
      %v4417 = vld [vmem:[%s219 + $0x20] sm:$0xff]
      %v4418 = vld [vmem:[%s219 + $0x28] sm:$0xff]
      %v4419 = vld [vmem:[%s219 + $0x30] sm:$0xff]
      %v4420 = vld [vmem:[%s219 + $0x38] sm:$0xff]
      %v4421 = vld [vmem:[%s219 + $0x40] sm:$0xff]
      %v4422 = vld [vmem:[%s219 + $0x48] sm:$0xff]
      %v4423 = vld [vmem:[%s219 + $0x50] sm:$0xff]
      %v4424 = vld [vmem:[%s219 + $0x58] sm:$0xff]
      %v4425 = vld [vmem:[%s219 + $0x60] sm:$0xff]
      %v4426 = vld [vmem:[%s219 + $0x68] sm:$0xff]
      %v4427 = vld [vmem:[%s219 + $0x70] sm:$0xff]
      %v4428 = vld [vmem:[%s219 + $0x78] sm:$0xff]
      %v4429 = vld [vmem:[%s219 + $0x80] sm:$0xff]
      %v4430 = vld [vmem:[%s219 + $0x88] sm:$0xff]
      %v4431 = vld [vmem:[%s219 + $0x90] sm:$0xff]
      %v4432 = vld [vmem:[%s219 + $0x98] sm:$0xff]
      %v4433 = vld [vmem:[%s219 + $0xa0] sm:$0xff]
      %v4434 = vld [vmem:[%s219 + $0xa8] sm:$0xff]
      %v4435 = vld [vmem:[%s219 + $0xb0] sm:$0xff]
      %v4436 = vld [vmem:[%s219 + $0xb8] sm:$0xff]
      %v4437 = vld [vmem:[%s219 + $0xc0] sm:$0xff]
      %v4438 = vld [vmem:[%s219 + $0xc8] sm:$0xff]
      %v4439 = vld [vmem:[%s219 + $0xd0] sm:$0xff]
      %v4440 = vld [vmem:[%s219 + $0xd8] sm:$0xff]
      %v4441 = vld [vmem:[%s219 + $0xe0] sm:$0xff]
      %v4442 = vld [vmem:[%s219 + $0xe8] sm:$0xff]
      %v4443 = vld [vmem:[%s219 + $0xf0] sm:$0xff]
      %v4444 = vld [vmem:[%s219 + $0xf8] sm:$0xff]
      %v4445 = vadd.f32 %v4255, %v4413
      %v4446 = vadd.f32 %v4260, %v4414
      %v4447 = vadd.f32 %v4265, %v4415
      %v4448 = vadd.f32 %v4270, %v4416
      %v4449 = vadd.f32 %v4275, %v4417
      %v4450 = vadd.f32 %v4280, %v4418
      %v4451 = vadd.f32 %v4285, %v4419
      %v4452 = vadd.f32 %v4290, %v4420
      %v4453 = vadd.f32 %v4295, %v4421
      %v4454 = vadd.f32 %v4300, %v4422
      %v4455 = vadd.f32 %v4305, %v4423
      %v4456 = vadd.f32 %v4310, %v4424
      %v4457 = vadd.f32 %v4315, %v4425
      %v4458 = vadd.f32 %v4320, %v4426
      %v4459 = vadd.f32 %v4325, %v4427
      %v4460 = vadd.f32 %v4330, %v4428
      %v4461 = vadd.f32 %v4335, %v4429
      %v4462 = vadd.f32 %v4340, %v4430
      %v4463 = vadd.f32 %v4345, %v4431
      %v4464 = vadd.f32 %v4350, %v4432
      %v4465 = vadd.f32 %v4355, %v4433
      %v4466 = vadd.f32 %v4360, %v4434
      %v4467 = vadd.f32 %v4365, %v4435
      %v4468 = vadd.f32 %v4370, %v4436
      %v4469 = vadd.f32 %v4375, %v4437
      %v4470 = vadd.f32 %v4380, %v4438
      %v4471 = vadd.f32 %v4385, %v4439
      %v4472 = vadd.f32 %v4390, %v4440
      %v4473 = vadd.f32 %v4395, %v4441
      %v4474 = vadd.f32 %v4400, %v4442
      %v4475 = vadd.f32 %v4405, %v4443
      %v4476 = vadd.f32 %v4410, %v4444
      %v4477 = vmax.f32 %v4445, 0.0
      %v4478 = vmax.f32 %v4446, 0.0
      %v4479 = vmax.f32 %v4447, 0.0
      %v4480 = vmax.f32 %v4448, 0.0
      %v4481 = vmax.f32 %v4449, 0.0
      %v4482 = vmax.f32 %v4450, 0.0
      %v4483 = vmax.f32 %v4451, 0.0
      %v4484 = vmax.f32 %v4452, 0.0
      %v4485 = vmax.f32 %v4453, 0.0
      %v4486 = vmax.f32 %v4454, 0.0
      %v4487 = vmax.f32 %v4455, 0.0
      %v4488 = vmax.f32 %v4456, 0.0
      %v4489 = vmax.f32 %v4457, 0.0
      %v4490 = vmax.f32 %v4458, 0.0
      %v4491 = vmax.f32 %v4459, 0.0
      %v4492 = vmax.f32 %v4460, 0.0
      %v4493 = vmax.f32 %v4461, 0.0
      %v4494 = vmax.f32 %v4462, 0.0
      %v4495 = vmax.f32 %v4463, 0.0
      %v4496 = vmax.f32 %v4464, 0.0
      %v4497 = vmax.f32 %v4465, 0.0
      %v4498 = vmax.f32 %v4466, 0.0
      %v4499 = vmax.f32 %v4467, 0.0
      %v4500 = vmax.f32 %v4468, 0.0
      %v4501 = vmax.f32 %v4469, 0.0
      %v4502 = vmax.f32 %v4470, 0.0
      %v4503 = vmax.f32 %v4471, 0.0
      %v4504 = vmax.f32 %v4472, 0.0
      %v4505 = vmax.f32 %v4473, 0.0
      %v4506 = vmax.f32 %v4474, 0.0
      %v4507 = vmax.f32 %v4475, 0.0
      %v4508 = vmax.f32 %v4476, 0.0
      %4509 = vst.msk [vmem:[%s224] sm:$0xff] %vm225, %v4477
      %4510 = vst.msk [vmem:[%s224 + $0x8] sm:$0xff] %vm225, %v4478
      %4511 = vst.msk [vmem:[%s224 + $0x10] sm:$0xff] %vm225, %v4479
      %4512 = vst.msk [vmem:[%s224 + $0x18] sm:$0xff] %vm225, %v4480
      %4513 = vst.msk [vmem:[%s224 + $0x20] sm:$0xff] %vm225, %v4481
      %4514 = vst.msk [vmem:[%s224 + $0x28] sm:$0xff] %vm225, %v4482
      %4515 = vst.msk [vmem:[%s224 + $0x30] sm:$0xff] %vm225, %v4483
      %4516 = vst.msk [vmem:[%s224 + $0x38] sm:$0xff] %vm225, %v4484
      %4517 = vst.msk [vmem:[%s224 + $0x40] sm:$0xff] %vm225, %v4485
      %4518 = vst.msk [vmem:[%s224 + $0x48] sm:$0xff] %vm225, %v4486
      %4519 = vst.msk [vmem:[%s224 + $0x50] sm:$0xff] %vm225, %v4487
      %4520 = vst.msk [vmem:[%s224 + $0x58] sm:$0xff] %vm225, %v4488
      %4521 = vst.msk [vmem:[%s224 + $0x60] sm:$0xff] %vm225, %v4489
      %4522 = vst.msk [vmem:[%s224 + $0x68] sm:$0xff] %vm225, %v4490
      %4523 = vst.msk [vmem:[%s224 + $0x70] sm:$0xff] %vm225, %v4491
      %4524 = vst.msk [vmem:[%s224 + $0x78] sm:$0xff] %vm225, %v4492
      %4525 = vst.msk [vmem:[%s224 + $0x80] sm:$0xff] %vm225, %v4493
      %4526 = vst.msk [vmem:[%s224 + $0x88] sm:$0xff] %vm225, %v4494
      %4527 = vst.msk [vmem:[%s224 + $0x90] sm:$0xff] %vm225, %v4495
      %4528 = vst.msk [vmem:[%s224 + $0x98] sm:$0xff] %vm225, %v4496
      %4529 = vst.msk [vmem:[%s224 + $0xa0] sm:$0xff] %vm225, %v4497
      %4530 = vst.msk [vmem:[%s224 + $0xa8] sm:$0xff] %vm225, %v4498
      %4531 = vst.msk [vmem:[%s224 + $0xb0] sm:$0xff] %vm225, %v4499
      %4532 = vst.msk [vmem:[%s224 + $0xb8] sm:$0xff] %vm225, %v4500
      %4533 = vst.msk [vmem:[%s224 + $0xc0] sm:$0xff] %vm225, %v4501
      %4534 = vst.msk [vmem:[%s224 + $0xc8] sm:$0xff] %vm225, %v4502
      %4535 = vst.msk [vmem:[%s224 + $0xd0] sm:$0xff] %vm225, %v4503
      %4536 = vst.msk [vmem:[%s224 + $0xd8] sm:$0xff] %vm225, %v4504
      %4537 = vst.msk [vmem:[%s224 + $0xe0] sm:$0xff] %vm225, %v4505
      %4538 = vst.msk [vmem:[%s224 + $0xe8] sm:$0xff] %vm225, %v4506
      %4539 = vst.msk [vmem:[%s224 + $0xf0] sm:$0xff] %vm225, %v4507
      %4540 = vst.msk [vmem:[%s224 + $0xf8] sm:$0xff] %vm225, %v4508
      %p4541 = scmp.lt.s32.totalorder %s16, 1
      %s4542 = scalar_select %p4541, %s16, 1
      %s4543 = smul.addr %s4542, 32
      %s4544 = smul.addr %s4543, 8
      %s4545 = scalar_lea.vmem %s5, %s4544
      // Predicated region
      $region41: #{tpu_custom_call.1} parent=39 // pred_check
        %p4546 = pneg %p144
      $region42: #{tpu_custom_call.1} parent=39 // pred_check_branch
        %4548 = sbr.rel (%p4546) target = $region44
      $region43: #{tpu_custom_call.1} parent=39 // pred_region
        _
      $region44: #{tpu_custom_call.1} parent=39 // pred_fallthru
        _
    $region40: #{tpu_custom_call.1} parent=5 // pred_fallthru
      _
    %p4549 = scmp.le.s32.totalorder 2, %s11
    // Predicated region
    $region45: #{tpu_custom_call.1} parent=5 // pred_check
      %p4550 = pneg %p4549
    $region46: #{tpu_custom_call.1} parent=5 // pred_check_branch
      %4552 = sbr.rel (%p4550) target = $region48
    $region47: #{tpu_custom_call.1} parent=5 // pred_region
      %s4553 = ssub.s32 %s11, 2
      // Predicated region
      $region49: #{tpu_custom_call.1} parent=47 // pred_check
        %p4554 = pneg %p150
      $region50: #{tpu_custom_call.1} parent=47 // pred_check_branch
        %4556 = sbr.rel (%p4554) target = $region52
      $region51: #{tpu_custom_call.1} parent=47 // pred_region
        %p4557 = scmp.lt.s32.totalorder %s17, 1
        %s4558 = scalar_select %p4557, %s17, 1
        %s4559 = smul.addr %s4558, 32
        %s4560 = smul.addr %s4559, 8
        %s4561 = scalar_lea.vmem %s5, %s4560
      $region52: #{tpu_custom_call.1} parent=47 // pred_fallthru
        _
    $region48: #{tpu_custom_call.1} parent=5 // pred_fallthru
      _
  $region6: #{tpu_custom_call.1} parent=0 // loop_footer
    %s15 = sadd.s32 1, %s11
  $region7: #{tpu_custom_call.1} parent=0 // loop_footer_branch
    %10 = sbr.rel target = $region3
  $region8: #{tpu_custom_call.1} parent=0 // loop_exit
    _

</llo_original>
